<compile_context>
chip_gen: v7x
topology: tpu7x:2x2x1
jax: 0.10.0
libtpu: 0.0.40
codegen_flags: <defaults>
</compile_context>

<pallas_src>
import functools

import jax
import jax.numpy as jnp
from jax import lax
from jax.experimental import pallas as pl
from jax.experimental.pallas import tpu as pltpu


# ----------------------------------------------------------------------------
# Generation-aware sizing helpers
# ----------------------------------------------------------------------------
def _round_up(x, m):
    return ((x + m - 1) // m) * m


def _vmem_limit_bytes():
    cap = 64 * 1024 * 1024
    try:
        info = pltpu.get_tpu_info()
        cap = int(getattr(info, "vmem_capacity_bytes", cap))
    except Exception:
        pass
    # Leave headroom for compiler-internal scratch; never exceed 96 MiB.
    return int(min(cap * 3 // 4, 96 * 1024 * 1024))


def _choose_t_chunk(T, BT, Dp, Hp, max_chunk=128):
    """Largest divisor of T (<= max_chunk) whose per-chunk footprint fits."""
    budget = _vmem_limit_bytes()
    weights = (Dp + Hp) * 3 * Hp * 2 + 3 * Hp * 4 + Hp * 4   # bf16 W + f32 b
    best = 1
    for tc in range(1, min(T, max_chunk) + 1):
        if T % tc:
            continue
        x_b = 2 * tc * BT * Dp * 2          # double-buffered bf16 input chunk
        o_b = 2 * tc * BT * Hp * 2          # double-buffered bf16 output chunk
        gx_b = tc * BT * 3 * Hp * 4         # f32 gx scratch
        h_b = BT * Hp * 4                   # carried hidden scratch
        if weights + x_b + o_b + gx_b + h_b <= budget:
            best = tc
    return best


def _compiler_params():
    return pltpu.CompilerParams(
        dimension_semantics=("parallel", "arbitrary"),
        vmem_limit_bytes=_vmem_limit_bytes())


# ----------------------------------------------------------------------------
# Per-layer GRU kernels (grid = (batch_tile, time_chunk))
# ----------------------------------------------------------------------------
def _gru_chunk(x_ref, h0_ref, wih_ref, whh_ref, bproj_ref, bhn_ref,
               gx_scr, h_scr, out_ref=None):
    """Process one (batch_tile, time_chunk) block of the recurrence.

    x_ref    : (TC, BT, Dp)  bf16  layer input chunk (time-major)
    h0_ref   : (BT, Hp)      f32   initial hidden (resident across chunks)
    wih_ref  : (Dp, 3Hp)     bf16  W_ih^T, gate blocks r|z|n each lane-padded
    whh_ref  : (Hp, 3Hp)     bf16  W_hh^T
    bproj_ref: (1, 3Hp)      f32   b_ih + [b_hr, b_hz, 0]
    bhn_ref  : (1, Hp)       f32   b_hn (scaled by r -> kept separate)
    gx_scr   : (TC, BT, 3Hp) f32   VMEM scratch for the chunk's projection
    h_scr    : (BT, Hp)      f32   VMEM scratch carrying h across chunks
    out_ref  : (TC, BT, Hp)  bf16  per-timestep outputs (optional)
    """
    TC, BT, Dp = x_ref.shape
    Hp = h_scr.shape[-1]

    @pl.when(pl.program_id(1) == 0)
    def _():
        h_scr[...] = h0_ref[...]

    # Dense MXU input projection for the whole chunk, into explicit scratch.
    # BT is a multiple of 16, Dp/Hp multiples of 128 -> reshapes are views.
    x2d = x_ref[...].reshape(TC * BT, Dp)
    gx2d = jnp.dot(x2d, wih_ref[...],
                   preferred_element_type=jnp.float32) + bproj_ref[...]
    gx_scr[...] = gx2d.reshape(TC, BT, 3 * Hp)

    whh = whh_ref[...]                                      # loaded once
    bhn_b = jnp.broadcast_to(bhn_ref[...], (BT, Hp))        # hoisted broadcast

    def step(t, h):
        gx_t = gx_scr[t]                                    # (BT, 3Hp) f32
        gh = jnp.dot(h.astype(jnp.bfloat16), whh,
                     preferred_element_type=jnp.float32)    # (BT, 3Hp)
        r = jax.nn.sigmoid(gx_t[:, :Hp] + gh[:, :Hp])
        z = jax.nn.sigmoid(gx_t[:, Hp:2 * Hp] + gh[:, Hp:2 * Hp])
        n = jnp.tanh(gx_t[:, 2 * Hp:] + r * (gh[:, 2 * Hp:] + bhn_b))
        h_new = (1.0 - z) * n + z * h
        if out_ref is not None:
            out_ref[t] = h_new.astype(out_ref.dtype)        # dense bf16 tile
        return h_new

    h = lax.fori_loop(0, TC, step, h_scr[...], unroll=min(TC, 4))
    h_scr[...] = h
    return h


def _gru_layer_kernel(x_ref, h0_ref, wih_ref, whh_ref, bproj_ref, bhn_ref,
                      out_ref, hn_ref, gx_scr, h_scr):
    h = _gru_chunk(x_ref, h0_ref, wih_ref, whh_ref, bproj_ref, bhn_ref,
                   gx_scr, h_scr, out_ref)

    @pl.when(pl.program_id(1) == pl.num_programs(1) - 1)
    def _():
        hn_ref[...] = h                      # f32 final hidden (no bf16 loss)


def _gru_last_layer_kernel(x_ref, h0_ref, wih_ref, whh_ref, bproj_ref, bhn_ref,
                           fcw_ref, fcb_ref, logits_ref, hn_ref,
                           gx_scr, h_scr):
    h = _gru_chunk(x_ref, h0_ref, wih_ref, whh_ref, bproj_ref, bhn_ref,
                   gx_scr, h_scr, out_ref=None)

    @pl.when(pl.program_id(1) == pl.num_programs(1) - 1)
    def _():
        hn_ref[...] = h
        # Fused head: fc(relu(h_T)) — no extra kernel, no HBM round trip.
        a = jnp.maximum(h, 0.0).astype(jnp.bfloat16)
        logits_ref[...] = (jnp.dot(a, fcw_ref[...],
                                   preferred_element_type=jnp.float32)
                           + fcb_ref[...])


def _common_in_specs(TC, BT, Dp, Hp):
    return [
        pl.BlockSpec((TC, BT, Dp), lambda b, c: (c, b, 0)),   # input chunk
        pl.BlockSpec((BT, Hp), lambda b, c: (b, 0)),          # h0 (resident)
        pl.BlockSpec((Dp, 3 * Hp), lambda b, c: (0, 0)),      # W_ih^T
        pl.BlockSpec((Hp, 3 * Hp), lambda b, c: (0, 0)),      # W_hh^T
        pl.BlockSpec((1, 3 * Hp), lambda b, c: (0, 0)),       # folded bias
        pl.BlockSpec((1, Hp), lambda b, c: (0, 0)),           # b_hn
    ]


def _scratch_shapes(TC, BT, Hp):
    return [pltpu.VMEM((TC, BT, 3 * Hp), jnp.float32),        # gx chunk
            pltpu.VMEM((BT, Hp), jnp.float32)]                # carried hidden


def gru_layer(x, h0, wih_t, whh_t, b_proj, b_hn, *, t_chunk, batch_tile):
    """One (non-final) GRU layer.  x: (T, Bp, Dp) bf16 -> out (T, Bp, Hp) bf16,
    plus the final hidden state (Bp, Hp) f32."""
    T, Bp, Dp = x.shape
    Hp = h0.shape[-1]
    TC, BT = t_chunk, batch_tile
    grid = (Bp // BT, T // TC)
    return pl.pallas_call(
        _gru_layer_kernel,
        out_shape=(jax.ShapeDtypeStruct((T, Bp, Hp), jnp.bfloat16),
                   jax.ShapeDtypeStruct((Bp, Hp), jnp.float32)),
        grid_spec=pltpu.PrefetchScalarGridSpec(
            num_scalar_prefetch=0, grid=grid,
            in_specs=_common_in_specs(TC, BT, Dp, Hp),
            out_specs=[pl.BlockSpec((TC, BT, Hp), lambda b, c: (c, b, 0)),
                       pl.BlockSpec((BT, Hp), lambda b, c: (b, 0))],
            scratch_shapes=_scratch_shapes(TC, BT, Hp)),
        compiler_params=_compiler_params(),
    )(x, h0, wih_t, whh_t, b_proj, b_hn)


def gru_last_layer_with_head(x, h0, wih_t, whh_t, b_proj, b_hn, fc_w_t, fc_b,
                             *, t_chunk, batch_tile):
    """Final GRU layer with fused fc(relu(.)) head.  Returns (logits, h_T)."""
    T, Bp, Dp = x.shape
    Hp = h0.shape[-1]
    Op = fc_w_t.shape[1]
    TC, BT = t_chunk, batch_tile
    grid = (Bp // BT, T // TC)
    in_specs = _common_in_specs(TC, BT, Dp, Hp) + [
        pl.BlockSpec((Hp, Op), lambda b, c: (0, 0)),          # fc weight
        pl.BlockSpec((1, Op), lambda b, c: (0, 0)),           # fc bias
    ]
    return pl.pallas_call(
        _gru_last_layer_kernel,
        out_shape=(jax.ShapeDtypeStruct((Bp, Op), jnp.float32),
                   jax.ShapeDtypeStruct((Bp, Hp), jnp.float32)),
        grid_spec=pltpu.PrefetchScalarGridSpec(
            num_scalar_prefetch=0, grid=grid,
            in_specs=in_specs,
            out_specs=[pl.BlockSpec((BT, Op), lambda b, c: (b, 0)),
                       pl.BlockSpec((BT, Hp), lambda b, c: (b, 0))],
            scratch_shapes=_scratch_shapes(TC, BT, Hp)),
        compiler_params=_compiler_params(),
    )(x, h0, wih_t, whh_t, b_proj, b_hn, fc_w_t, fc_b)


# ----------------------------------------------------------------------------
# Full GRUNet forward (glue + padding in plain JAX)
# ----------------------------------------------------------------------------
@functools.partial(jax.jit,
                   static_argnames=("n_layers", "output_dim", "t_chunk"))
def grunet_forward(prepped, x, h, *, n_layers, output_dim, t_chunk=None):
    """x: (B, T, D) batch_first, h: (n_layers, B, H).  Returns (logits, h_new)."""
    B, T, D = x.shape
    H = h.shape[-1]
    Hp = prepped["layers"][0][1].shape[0]         # whh_t: (Hp, 3Hp)
    Dp0 = prepped["layers"][0][0].shape[0]        # layer-0 wih_t: (Dp, 3Hp)

    Bp = _round_up(B, 16)                         # dense bf16 sublane tiles
    BT = 16                                       # batch tile ("parallel" axis)
    TC = t_chunk if t_chunk is not None else _choose_t_chunk(
        T, BT, max(Dp0, Hp), Hp)
    assert T % TC == 0, "T must be divisible by t_chunk"

    # Time-major, lane/sublane padded, bf16 (the matmuls cast anyway).
    x_tm = jnp.transpose(x, (1, 0, 2)).astype(jnp.bfloat16)       # (T, B, D)
    layer_in = jnp.zeros((T, Bp, Dp0), jnp.bfloat16).at[:, :B, :D].set(x_tm)
    h_pad = jnp.zeros((n_layers, Bp, Hp), jnp.float32).at[:, :B, :H].set(h)

    h_finals = []
    for l in range(n_layers - 1):
        wih_t, whh_t, b_proj, b_hn = prepped["layers"][l]
        out, h_last = gru_layer(layer_in, h_pad[l], wih_t, whh_t, b_proj, b_hn,
                                t_chunk=TC, batch_tile=BT)
        h_finals.append(h_last)
        layer_in = out
        # TODO(synk): nn.GRU inter-layer dropout is train-time only.
    wih_t, whh_t, b_proj, b_hn = prepped["layers"][n_layers - 1]
    logits, h_last = gru_last_layer_with_head(
        layer_in, h_pad[n_layers - 1], wih_t, whh_t, b_proj, b_hn,
        prepped["fc_w_t"], prepped["fc_b"], t_chunk=TC, batch_tile=BT)
    h_finals.append(h_last)
    h_new = jnp.stack(h_finals, axis=0)[:, :B, :H]
    return logits[:B, :output_dim], h_new


# ----------------------------------------------------------------------------
# Parameters: PyTorch-layout init + one-time kernel-layout preparation
# ----------------------------------------------------------------------------
def init_params(key, input_dim, hidden_dim, output_dim, n_layers):
    """nn.GRU / nn.Linear shapes, U(-k, k) init."""
    k = 1.0 / jnp.sqrt(hidden_dim)
    params = {"gru": []}
    for l in range(n_layers):
        in_dim = input_dim if l == 0 else hidden_dim
        key, k1, k2, k3, k4 = jax.random.split(key, 5)
        w_ih = jax.random.uniform(k1, (3 * hidden_dim, in_dim), jnp.float32, -k, k)
        w_hh = jax.random.uniform(k2, (3 * hidden_dim, hidden_dim), jnp.float32, -k, k)
        b_ih = jax.random.uniform(k3, (3 * hidden_dim,), jnp.float32, -k, k)
        b_hh = jax.random.uniform(k4, (3 * hidden_dim,), jnp.float32, -k, k)
        params["gru"].append((w_ih, w_hh, b_ih, b_hh))
    key, k5, k6 = jax.random.split(key, 3)
    params["fc_w"] = jax.random.uniform(k5, (output_dim, hidden_dim), jnp.float32, -k, k)
    params["fc_b"] = jax.random.uniform(k6, (output_dim,), jnp.float32, -k, k)
    return params


def _pad_gate_cols(w, H, Hp):
    """(R, 3H) gate-ordered r|z|n -> (R, 3Hp), each gate block padded to Hp."""
    R = w.shape[0]
    out = jnp.zeros((R, 3 * Hp), w.dtype)
    for g in range(3):
        out = out.at[:, g * Hp:g * Hp + H].set(w[:, g * H:(g + 1) * H])
    return out


def _pad_rows(w, Rp):
    return jnp.zeros((Rp, w.shape[1]), w.dtype).at[:w.shape[0], :].set(w)


def prepare_params(params, hidden_dim, output_dim):
    """One-time prep: transpose, lane-pad each gate block to 128, cast matmul
    operands to bf16, fold b_hr/b_hz into the projection bias (b_hn stays
    separate because it is scaled by r).  Zero padding keeps padded hidden
    units exactly zero through the recurrence."""
    H = hidden_dim
    Hp = _round_up(H, 128)
    layers = []
    for l, (w_ih, w_hh, b_ih, b_hh) in enumerate(params["gru"]):
        D = w_ih.shape[1]
        Dp = _round_up(D, 128) if l == 0 else Hp
        wih_t = _pad_rows(_pad_gate_cols(jnp.transpose(w_ih), H, Hp), Dp)
        whh_t = _pad_rows(_pad_gate_cols(jnp.transpose(w_hh), H, Hp), Hp)
        b_proj = b_ih + jnp.concatenate([b_hh[:2 * H],
                                         jnp.zeros((H,), b_hh.dtype)])
        b_proj = _pad_gate_cols(b_proj.reshape(1, 3 * H), H, Hp)     # (1, 3Hp)
        b_hn = jnp.zeros((1, Hp), jnp.float32).at[0, :H].set(b_hh[2 * H:])
        layers.append((wih_t.astype(jnp.bfloat16),
                       whh_t.astype(jnp.bfloat16), b_proj, b_hn))
    Op = _round_up(output_dim, 128)
    fc_w_t = jnp.zeros((Hp, Op), jnp.float32).at[:H, :output_dim].set(
        jnp.transpose(params["fc_w"]))
    fc_b = jnp.zeros((1, Op), jnp.float32).at[0, :output_dim].set(params["fc_b"])
    return {"layers": layers,
            "fc_w_t": fc_w_t.astype(jnp.bfloat16),
            "fc_b": fc_b}


# ----------------------------------------------------------------------------
# Pure-JAX reference
# ----------------------------------------------------------------------------
def grunet_reference(params, x, h, n_layers, matmul_dtype=jnp.float32):
    """matmul_dtype=bfloat16 mirrors the kernel's bf16-operand / f32-accumulate
    MXU numerics; float32 is the exact PyTorch-semantics reference."""
    B, T, D = x.shape
    H = h.shape[-1]

    def mm(a, b):
        return jnp.dot(a.astype(matmul_dtype), b.astype(matmul_dtype),
                       preferred_element_type=jnp.float32)

    layer_in = x
    h_finals = []
    for l in range(n_layers):
        w_ih, w_hh, b_ih, b_hh = params["gru"][l]
        h_t = h[l]
        outs = []
        for t in range(T):
            x_t = layer_in[:, t]
            gx = mm(x_t, w_ih.T) + b_ih
            gh = mm(h_t, w_hh.T) + b_hh
            r = jax.nn.sigmoid(gx[:, :H] + gh[:, :H])
            z = jax.nn.sigmoid(gx[:, H:2 * H] + gh[:, H:2 * H])
            n = jnp.tanh(gx[:, 2 * H:] + r * gh[:, 2 * H:])
            h_t = (1.0 - z) * n + z * h_t
            outs.append(h_t)
        layer_in = jnp.stack(outs, axis=1)
        h_finals.append(h_t)
    out = mm(jnp.maximum(layer_in[:, -1], 0.0), params["fc_w"].T) + params["fc_b"]
    return out, jnp.stack(h_finals, axis=0)


if __name__ == "__main__":
    B, T = 2, 8
    input_dim, hidden_dim, output_dim, n_layers = 16, 32, 4, 2

    key = jax.random.PRNGKey(0)
    kp, kx = jax.random.split(key)
    params = init_params(kp, input_dim, hidden_dim, output_dim, n_layers)
    prepped = prepare_params(params, hidden_dim, output_dim)
    x = jax.random.normal(kx, (B, T, input_dim), jnp.float32)
    h0 = jnp.zeros((n_layers, B, hidden_dim), jnp.float32)      # init_hidden()

    # t_chunk=4 -> 2 time chunks per layer, exercising the scratch h carry.
    out, h_new = grunet_forward(prepped, x, h0, n_layers=n_layers,
                                output_dim=output_dim, t_chunk=4)
    out = jax.block_until_ready(out)
    h_new = jax.block_until_ready(h_new)

    assert out.shape == (B, output_dim)
    assert h_new.shape == (n_layers, B, hidden_dim)

    # Tight check against a reference with the same bf16-matmul numerics.
    out_bf, h_bf = grunet_reference(params, x, h0, n_layers,
                                    matmul_dtype=jnp.bfloat16)
    assert jnp.allclose(out, out_bf, rtol=2e-3, atol=2e-3)
    assert jnp.allclose(h_new, h_bf, rtol=2e-3, atol=2e-3)

    # Loose check against the exact f32 (PyTorch-semantics) reference.
    out_f32, h_f32 = grunet_reference(params, x, h0, n_layers,
                                      matmul_dtype=jnp.float32)
    assert jnp.allclose(out, out_f32, rtol=5e-2, atol=5e-2)
    assert jnp.allclose(h_new, h_f32, rtol=5e-2, atol=5e-2)

    print("KERNEL_OK")
</pallas_src>

<mosaic_0001>
module attributes {stable_mosaic.version = 11 : i64} {
  func.func @_gru_layer_kernel(%arg0: i32, %arg1: i32, %arg2: memref<4x16x128xbf16, #tpu.memory_space<vmem>>, %arg3: memref<16x128xf32, #tpu.memory_space<vmem>>, %arg4: memref<128x384xbf16, #tpu.memory_space<vmem>>, %arg5: memref<128x384xbf16, #tpu.memory_space<vmem>>, %arg6: memref<1x384xf32, #tpu.memory_space<vmem>>, %arg7: memref<1x128xf32, #tpu.memory_space<vmem>>, %arg8: memref<4x16x128xbf16, #tpu.memory_space<vmem>>, %arg9: memref<16x128xf32, #tpu.memory_space<vmem>>, %arg10: memref<4x16x384xf32, #tpu.memory_space<vmem>>, %arg11: memref<16x128xf32, #tpu.memory_space<vmem>>) attributes {dimension_semantics = [#tpu.dimension_semantics<parallel>, #tpu.dimension_semantics<arbitrary>], iteration_bounds = array<i64: 1, 2>, scalar_prefetch = 0 : i64, scratch_operands = 2 : i64, tpu.core_type = #tpu.core_type<tc>, window_params = [{transform_indices = @transform_0, window_bounds = array<i64: 4, 16, 128>}, {transform_indices = @transform_1, window_bounds = array<i64: 16, 128>}, {pipeline_mode = #tpu.pipeline_mode<synchronous>, transform_indices = @transform_2, window_bounds = array<i64: 128, 384>}, {pipeline_mode = #tpu.pipeline_mode<synchronous>, transform_indices = @transform_3, window_bounds = array<i64: 128, 384>}, {pipeline_mode = #tpu.pipeline_mode<synchronous>, transform_indices = @transform_4, window_bounds = array<i64: 1, 384>}, {pipeline_mode = #tpu.pipeline_mode<synchronous>, transform_indices = @transform_5, window_bounds = array<i64: 1, 128>}, {transform_indices = @transform_6, window_bounds = array<i64: 4, 16, 128>}, {transform_indices = @transform_7, window_bounds = array<i64: 16, 128>}]} {
    %c0_i32 = arith.constant 0 : i32
    %0 = arith.cmpi eq, %arg1, %c0_i32 : i32
    %1 = arith.extui %0 : i1 to i32
    %c0_i32_0 = arith.constant 0 : i32
    %2 = arith.cmpi ne, %1, %c0_i32_0 : i32
    scf.if %2 {
      %c0_53 = arith.constant 0 : index
      %c0_54 = arith.constant 0 : index
      %169 = vector.load %arg3[%c0_53, %c0_54] : memref<16x128xf32, #tpu.memory_space<vmem>>, vector<16x128xf32>
      %c0_55 = arith.constant 0 : index
      %c0_56 = arith.constant 0 : index
      %170 = vector.load %arg11[%c0_55, %c0_56] : memref<16x128xf32, #tpu.memory_space<vmem>>, vector<16x128xf32>
      tpu.vector_store %arg11[%c0_55, %c0_56], %169 {strides = array<i32>} : memref<16x128xf32, #tpu.memory_space<vmem>>, vector<16x128xf32>,
    } else {
    }
    %c0 = arith.constant 0 : index
    %c0_1 = arith.constant 0 : index
    %c0_2 = arith.constant 0 : index
    %3 = vector.load %arg2[%c0, %c0_1, %c0_2] : memref<4x16x128xbf16, #tpu.memory_space<vmem>>, vector<4x16x128xbf16>
    %4 = vector.shape_cast %3 : vector<4x16x128xbf16> to vector<64x128xbf16>
    %c0_3 = arith.constant 0 : index
    %c0_4 = arith.constant 0 : index
    %5 = vector.load %arg4[%c0_3, %c0_4] : memref<128x384xbf16, #tpu.memory_space<vmem>>, vector<128x384xbf16>
    %cst = arith.constant dense<0.000000e+00> : vector<64x384xf32>
    %6 = tpu.matmul %4, %5, %cst {dimension_numbers = #tpu.dot_dimension_numbers<[1], [0], [0], [1], [0, 0, 1, 1], [], []>} : vector<64x128xbf16>, vector<128x384xbf16>, vector<64x384xf32> -> vector<64x384xf32>
    %c0_5 = arith.constant 0 : index
    %c0_6 = arith.constant 0 : index
    %7 = vector.load %arg6[%c0_5, %c0_6] : memref<1x384xf32, #tpu.memory_space<vmem>>, vector<1x384xf32>
    %8 = vector.broadcast %7 : vector<1x384xf32> to vector<64x384xf32>
    %9 = arith.addf %6, %8 : vector<64x384xf32>
    %10 = vector.shape_cast %9 : vector<64x384xf32> to vector<4x16x384xf32>
    %c0_7 = arith.constant 0 : index
    %c0_8 = arith.constant 0 : index
    %c0_9 = arith.constant 0 : index
    %11 = vector.load %arg10[%c0_7, %c0_8, %c0_9] : memref<4x16x384xf32, #tpu.memory_space<vmem>>, vector<4x16x384xf32>
    tpu.vector_store %arg10[%c0_7, %c0_8, %c0_9], %10 {strides = array<i32>} : memref<4x16x384xf32, #tpu.memory_space<vmem>>, vector<4x16x384xf32>,
    %c0_10 = arith.constant 0 : index
    %c0_11 = arith.constant 0 : index
    %12 = vector.load %arg5[%c0_10, %c0_11] : memref<128x384xbf16, #tpu.memory_space<vmem>>, vector<128x384xbf16>
    %c0_12 = arith.constant 0 : index
    %c0_13 = arith.constant 0 : index
    %13 = vector.load %arg7[%c0_12, %c0_13] : memref<1x128xf32, #tpu.memory_space<vmem>>, vector<1x128xf32>
    %14 = vector.shape_cast %13 : vector<1x128xf32> to vector<1x128xf32>
    %15 = vector.broadcast %14 : vector<1x128xf32> to vector<16x128xf32>
    %c0_14 = arith.constant 0 : index
    %c0_15 = arith.constant 0 : index
    %16 = vector.load %arg11[%c0_14, %c0_15] : memref<16x128xf32, #tpu.memory_space<vmem>>, vector<16x128xf32>
    %c0_i32_16 = arith.constant 0 : i32
    %17 = arith.index_cast %c0_i32_16 : i32 to index
    %c0_17 = arith.constant 0 : index
    %c0_18 = arith.constant 0 : index
    %18 = vector.load %arg10[%17, %c0_17, %c0_18] : memref<4x16x384xf32, #tpu.memory_space<vmem>>, vector<1x16x384xf32>
    %19 = vector.shape_cast %18 : vector<1x16x384xf32> to vector<16x384xf32>
    %20 = arith.truncf %16 : vector<16x128xf32> to vector<16x128xbf16>
    %cst_19 = arith.constant dense<0.000000e+00> : vector<16x384xf32>
    %21 = tpu.matmul %20, %12, %cst_19 {dimension_numbers = #tpu.dot_dimension_numbers<[1], [0], [0], [1], [0, 0, 1, 1], [], []>} : vector<16x128xbf16>, vector<128x384xbf16>, vector<16x384xf32> -> vector<16x384xf32>
    %22 = vector.extract_strided_slice %19 {offsets = [0, 0], sizes = [16, 128], strides = [1, 1]} : vector<16x384xf32> to vector<16x128xf32>
    %23 = vector.extract_strided_slice %21 {offsets = [0, 0], sizes = [16, 128], strides = [1, 1]} : vector<16x384xf32> to vector<16x128xf32>
    %24 = arith.addf %22, %23 : vector<16x128xf32>
    %25 = arith.negf %24 : vector<16x128xf32>
    %26 = math.exp %25 : vector<16x128xf32>
    %cst_20 = arith.constant 1.000000e+00 : f32
    %27 = vector.broadcast %cst_20 : f32 to vector<16x128xf32>
    %28 = arith.addf %27, %26 : vector<16x128xf32>
    %29 = arith.divf %27, %28 : vector<16x128xf32>
    %30 = vector.extract_strided_slice %19 {offsets = [0, 128], sizes = [16, 128], strides = [1, 1]} : vector<16x384xf32> to vector<16x128xf32>
    %31 = vector.extract_strided_slice %21 {offsets = [0, 128], sizes = [16, 128], strides = [1, 1]} : vector<16x384xf32> to vector<16x128xf32>
    %32 = arith.addf %30, %31 : vector<16x128xf32>
    %33 = arith.negf %32 : vector<16x128xf32>
    %34 = math.exp %33 : vector<16x128xf32>
    %cst_21 = arith.constant 1.000000e+00 : f32
    %35 = vector.broadcast %cst_21 : f32 to vector<16x128xf32>
    %36 = arith.addf %35, %34 : vector<16x128xf32>
    %37 = arith.divf %35, %36 : vector<16x128xf32>
    %38 = vector.extract_strided_slice %19 {offsets = [0, 256], sizes = [16, 128], strides = [1, 1]} : vector<16x384xf32> to vector<16x128xf32>
    %39 = vector.extract_strided_slice %21 {offsets = [0, 256], sizes = [16, 128], strides = [1, 1]} : vector<16x384xf32> to vector<16x128xf32>
    %40 = arith.addf %39, %15 : vector<16x128xf32>
    %41 = arith.mulf %29, %40 : vector<16x128xf32>
    %42 = arith.addf %38, %41 : vector<16x128xf32>
    %43 = math.tanh %42 : vector<16x128xf32>
    %cst_22 = arith.constant 1.000000e+00 : f32
    %44 = vector.broadcast %cst_22 : f32 to vector<16x128xf32>
    %45 = arith.subf %44, %37 : vector<16x128xf32>
    %46 = arith.mulf %45, %43 : vector<16x128xf32>
    %47 = arith.mulf %37, %16 : vector<16x128xf32>
    %48 = arith.addf %46, %47 : vector<16x128xf32>
    %49 = arith.truncf %48 : vector<16x128xf32> to vector<16x128xbf16>
    %50 = arith.index_cast %c0_i32_16 : i32 to index
    %c0_23 = arith.constant 0 : index
    %c0_24 = arith.constant 0 : index
    %51 = vector.load %arg8[%50, %c0_23, %c0_24] : memref<4x16x128xbf16, #tpu.memory_space<vmem>>, vector<1x16x128xbf16>
    %52 = vector.shape_cast %51 : vector<1x16x128xbf16> to vector<16x128xbf16>
    %53 = vector.shape_cast %49 : vector<16x128xbf16> to vector<1x16x128xbf16>
    tpu.vector_store %arg8[%50, %c0_23, %c0_24], %53 {strides = array<i32>} : memref<4x16x128xbf16, #tpu.memory_space<vmem>>, vector<1x16x128xbf16>,
    %c1_i32 = arith.constant 1 : i32
    %54 = arith.index_cast %c1_i32 : i32 to index
    %c0_25 = arith.constant 0 : index
    %c0_26 = arith.constant 0 : index
    %55 = vector.load %arg10[%54, %c0_25, %c0_26] : memref<4x16x384xf32, #tpu.memory_space<vmem>>, vector<1x16x384xf32>
    %56 = vector.shape_cast %55 : vector<1x16x384xf32> to vector<16x384xf32>
    %57 = arith.truncf %48 : vector<16x128xf32> to vector<16x128xbf16>
    %cst_27 = arith.constant dense<0.000000e+00> : vector<16x384xf32>
    %58 = tpu.matmul %57, %12, %cst_27 {dimension_numbers = #tpu.dot_dimension_numbers<[1], [0], [0], [1], [0, 0, 1, 1], [], []>} : vector<16x128xbf16>, vector<128x384xbf16>, vector<16x384xf32> -> vector<16x384xf32>
    %59 = vector.extract_strided_slice %56 {offsets = [0, 0], sizes = [16, 128], strides = [1, 1]} : vector<16x384xf32> to vector<16x128xf32>
    %60 = vector.extract_strided_slice %58 {offsets = [0, 0], sizes = [16, 128], strides = [1, 1]} : vector<16x384xf32> to vector<16x128xf32>
    %61 = arith.addf %59, %60 : vector<16x128xf32>
    %62 = arith.negf %61 : vector<16x128xf32>
    %63 = math.exp %62 : vector<16x128xf32>
    %cst_28 = arith.constant 1.000000e+00 : f32
    %64 = vector.broadcast %cst_28 : f32 to vector<16x128xf32>
    %65 = arith.addf %64, %63 : vector<16x128xf32>
    %66 = arith.divf %64, %65 : vector<16x128xf32>
    %67 = vector.extract_strided_slice %56 {offsets = [0, 128], sizes = [16, 128], strides = [1, 1]} : vector<16x384xf32> to vector<16x128xf32>
    %68 = vector.extract_strided_slice %58 {offsets = [0, 128], sizes = [16, 128], strides = [1, 1]} : vector<16x384xf32> to vector<16x128xf32>
    %69 = arith.addf %67, %68 : vector<16x128xf32>
    %70 = arith.negf %69 : vector<16x128xf32>
    %71 = math.exp %70 : vector<16x128xf32>
    %cst_29 = arith.constant 1.000000e+00 : f32
    %72 = vector.broadcast %cst_29 : f32 to vector<16x128xf32>
    %73 = arith.addf %72, %71 : vector<16x128xf32>
    %74 = arith.divf %72, %73 : vector<16x128xf32>
    %75 = vector.extract_strided_slice %56 {offsets = [0, 256], sizes = [16, 128], strides = [1, 1]} : vector<16x384xf32> to vector<16x128xf32>
    %76 = vector.extract_strided_slice %58 {offsets = [0, 256], sizes = [16, 128], strides = [1, 1]} : vector<16x384xf32> to vector<16x128xf32>
    %77 = arith.addf %76, %15 : vector<16x128xf32>
    %78 = arith.mulf %66, %77 : vector<16x128xf32>
    %79 = arith.addf %75, %78 : vector<16x128xf32>
    %80 = math.tanh %79 : vector<16x128xf32>
    %cst_30 = arith.constant 1.000000e+00 : f32
    %81 = vector.broadcast %cst_30 : f32 to vector<16x128xf32>
    %82 = arith.subf %81, %74 : vector<16x128xf32>
    %83 = arith.mulf %82, %80 : vector<16x128xf32>
    %84 = arith.mulf %74, %48 : vector<16x128xf32>
    %85 = arith.addf %83, %84 : vector<16x128xf32>
    %86 = arith.truncf %85 : vector<16x128xf32> to vector<16x128xbf16>
    %87 = arith.index_cast %c1_i32 : i32 to index
    %c0_31 = arith.constant 0 : index
    %c0_32 = arith.constant 0 : index
    %88 = vector.load %arg8[%87, %c0_31, %c0_32] : memref<4x16x128xbf16, #tpu.memory_space<vmem>>, vector<1x16x128xbf16>
    %89 = vector.shape_cast %88 : vector<1x16x128xbf16> to vector<16x128xbf16>
    %90 = vector.shape_cast %86 : vector<16x128xbf16> to vector<1x16x128xbf16>
    tpu.vector_store %arg8[%87, %c0_31, %c0_32], %90 {strides = array<i32>} : memref<4x16x128xbf16, #tpu.memory_space<vmem>>, vector<1x16x128xbf16>,
    %c2_i32 = arith.constant 2 : i32
    %91 = arith.index_cast %c2_i32 : i32 to index
    %c0_33 = arith.constant 0 : index
    %c0_34 = arith.constant 0 : index
    %92 = vector.load %arg10[%91, %c0_33, %c0_34] : memref<4x16x384xf32, #tpu.memory_space<vmem>>, vector<1x16x384xf32>
    %93 = vector.shape_cast %92 : vector<1x16x384xf32> to vector<16x384xf32>
    %94 = arith.truncf %85 : vector<16x128xf32> to vector<16x128xbf16>
    %cst_35 = arith.constant dense<0.000000e+00> : vector<16x384xf32>
    %95 = tpu.matmul %94, %12, %cst_35 {dimension_numbers = #tpu.dot_dimension_numbers<[1], [0], [0], [1], [0, 0, 1, 1], [], []>} : vector<16x128xbf16>, vector<128x384xbf16>, vector<16x384xf32> -> vector<16x384xf32>
    %96 = vector.extract_strided_slice %93 {offsets = [0, 0], sizes = [16, 128], strides = [1, 1]} : vector<16x384xf32> to vector<16x128xf32>
    %97 = vector.extract_strided_slice %95 {offsets = [0, 0], sizes = [16, 128], strides = [1, 1]} : vector<16x384xf32> to vector<16x128xf32>
    %98 = arith.addf %96, %97 : vector<16x128xf32>
    %99 = arith.negf %98 : vector<16x128xf32>
    %100 = math.exp %99 : vector<16x128xf32>
    %cst_36 = arith.constant 1.000000e+00 : f32
    %101 = vector.broadcast %cst_36 : f32 to vector<16x128xf32>
    %102 = arith.addf %101, %100 : vector<16x128xf32>
    %103 = arith.divf %101, %102 : vector<16x128xf32>
    %104 = vector.extract_strided_slice %93 {offsets = [0, 128], sizes = [16, 128], strides = [1, 1]} : vector<16x384xf32> to vector<16x128xf32>
    %105 = vector.extract_strided_slice %95 {offsets = [0, 128], sizes = [16, 128], strides = [1, 1]} : vector<16x384xf32> to vector<16x128xf32>
    %106 = arith.addf %104, %105 : vector<16x128xf32>
    %107 = arith.negf %106 : vector<16x128xf32>
    %108 = math.exp %107 : vector<16x128xf32>
    %cst_37 = arith.constant 1.000000e+00 : f32
    %109 = vector.broadcast %cst_37 : f32 to vector<16x128xf32>
    %110 = arith.addf %109, %108 : vector<16x128xf32>
    %111 = arith.divf %109, %110 : vector<16x128xf32>
    %112 = vector.extract_strided_slice %93 {offsets = [0, 256], sizes = [16, 128], strides = [1, 1]} : vector<16x384xf32> to vector<16x128xf32>
    %113 = vector.extract_strided_slice %95 {offsets = [0, 256], sizes = [16, 128], strides = [1, 1]} : vector<16x384xf32> to vector<16x128xf32>
    %114 = arith.addf %113, %15 : vector<16x128xf32>
    %115 = arith.mulf %103, %114 : vector<16x128xf32>
    %116 = arith.addf %112, %115 : vector<16x128xf32>
    %117 = math.tanh %116 : vector<16x128xf32>
    %cst_38 = arith.constant 1.000000e+00 : f32
    %118 = vector.broadcast %cst_38 : f32 to vector<16x128xf32>
    %119 = arith.subf %118, %111 : vector<16x128xf32>
    %120 = arith.mulf %119, %117 : vector<16x128xf32>
    %121 = arith.mulf %111, %85 : vector<16x128xf32>
    %122 = arith.addf %120, %121 : vector<16x128xf32>
    %123 = arith.truncf %122 : vector<16x128xf32> to vector<16x128xbf16>
    %124 = arith.index_cast %c2_i32 : i32 to index
    %c0_39 = arith.constant 0 : index
    %c0_40 = arith.constant 0 : index
    %125 = vector.load %arg8[%124, %c0_39, %c0_40] : memref<4x16x128xbf16, #tpu.memory_space<vmem>>, vector<1x16x128xbf16>
    %126 = vector.shape_cast %125 : vector<1x16x128xbf16> to vector<16x128xbf16>
    %127 = vector.shape_cast %123 : vector<16x128xbf16> to vector<1x16x128xbf16>
    tpu.vector_store %arg8[%124, %c0_39, %c0_40], %127 {strides = array<i32>} : memref<4x16x128xbf16, #tpu.memory_space<vmem>>, vector<1x16x128xbf16>,
    %c3_i32 = arith.constant 3 : i32
    %128 = arith.index_cast %c3_i32 : i32 to index
    %c0_41 = arith.constant 0 : index
    %c0_42 = arith.constant 0 : index
    %129 = vector.load %arg10[%128, %c0_41, %c0_42] : memref<4x16x384xf32, #tpu.memory_space<vmem>>, vector<1x16x384xf32>
    %130 = vector.shape_cast %129 : vector<1x16x384xf32> to vector<16x384xf32>
    %131 = arith.truncf %122 : vector<16x128xf32> to vector<16x128xbf16>
    %cst_43 = arith.constant dense<0.000000e+00> : vector<16x384xf32>
    %132 = tpu.matmul %131, %12, %cst_43 {dimension_numbers = #tpu.dot_dimension_numbers<[1], [0], [0], [1], [0, 0, 1, 1], [], []>} : vector<16x128xbf16>, vector<128x384xbf16>, vector<16x384xf32> -> vector<16x384xf32>
    %133 = vector.extract_strided_slice %130 {offsets = [0, 0], sizes = [16, 128], strides = [1, 1]} : vector<16x384xf32> to vector<16x128xf32>
    %134 = vector.extract_strided_slice %132 {offsets = [0, 0], sizes = [16, 128], strides = [1, 1]} : vector<16x384xf32> to vector<16x128xf32>
    %135 = arith.addf %133, %134 : vector<16x128xf32>
    %136 = arith.negf %135 : vector<16x128xf32>
    %137 = math.exp %136 : vector<16x128xf32>
    %cst_44 = arith.constant 1.000000e+00 : f32
    %138 = vector.broadcast %cst_44 : f32 to vector<16x128xf32>
    %139 = arith.addf %138, %137 : vector<16x128xf32>
    %140 = arith.divf %138, %139 : vector<16x128xf32>
    %141 = vector.extract_strided_slice %130 {offsets = [0, 128], sizes = [16, 128], strides = [1, 1]} : vector<16x384xf32> to vector<16x128xf32>
    %142 = vector.extract_strided_slice %132 {offsets = [0, 128], sizes = [16, 128], strides = [1, 1]} : vector<16x384xf32> to vector<16x128xf32>
    %143 = arith.addf %141, %142 : vector<16x128xf32>
    %144 = arith.negf %143 : vector<16x128xf32>
    %145 = math.exp %144 : vector<16x128xf32>
    %cst_45 = arith.constant 1.000000e+00 : f32
    %146 = vector.broadcast %cst_45 : f32 to vector<16x128xf32>
    %147 = arith.addf %146, %145 : vector<16x128xf32>
    %148 = arith.divf %146, %147 : vector<16x128xf32>
    %149 = vector.extract_strided_slice %130 {offsets = [0, 256], sizes = [16, 128], strides = [1, 1]} : vector<16x384xf32> to vector<16x128xf32>
    %150 = vector.extract_strided_slice %132 {offsets = [0, 256], sizes = [16, 128], strides = [1, 1]} : vector<16x384xf32> to vector<16x128xf32>
    %151 = arith.addf %150, %15 : vector<16x128xf32>
    %152 = arith.mulf %140, %151 : vector<16x128xf32>
    %153 = arith.addf %149, %152 : vector<16x128xf32>
    %154 = math.tanh %153 : vector<16x128xf32>
    %cst_46 = arith.constant 1.000000e+00 : f32
    %155 = vector.broadcast %cst_46 : f32 to vector<16x128xf32>
    %156 = arith.subf %155, %148 : vector<16x128xf32>
    %157 = arith.mulf %156, %154 : vector<16x128xf32>
    %158 = arith.mulf %148, %122 : vector<16x128xf32>
    %159 = arith.addf %157, %158 : vector<16x128xf32>
    %160 = arith.truncf %159 : vector<16x128xf32> to vector<16x128xbf16>
    %161 = arith.index_cast %c3_i32 : i32 to index
    %c0_47 = arith.constant 0 : index
    %c0_48 = arith.constant 0 : index
    %162 = vector.load %arg8[%161, %c0_47, %c0_48] : memref<4x16x128xbf16, #tpu.memory_space<vmem>>, vector<1x16x128xbf16>
    %163 = vector.shape_cast %162 : vector<1x16x128xbf16> to vector<16x128xbf16>
    %164 = vector.shape_cast %160 : vector<16x128xbf16> to vector<1x16x128xbf16>
    tpu.vector_store %arg8[%161, %c0_47, %c0_48], %164 {strides = array<i32>} : memref<4x16x128xbf16, #tpu.memory_space<vmem>>, vector<1x16x128xbf16>,
    %c4_i32 = arith.constant 4 : i32
    %c0_49 = arith.constant 0 : index
    %c0_50 = arith.constant 0 : index
    %165 = vector.load %arg11[%c0_49, %c0_50] : memref<16x128xf32, #tpu.memory_space<vmem>>, vector<16x128xf32>
    tpu.vector_store %arg11[%c0_49, %c0_50], %159 {strides = array<i32>} : memref<16x128xf32, #tpu.memory_space<vmem>>, vector<16x128xf32>,
    %c1_i32_51 = arith.constant 1 : i32
    %166 = arith.cmpi eq, %arg1, %c1_i32_51 : i32
    %167 = arith.extui %166 : i1 to i32
    %c0_i32_52 = arith.constant 0 : i32
    %168 = arith.cmpi ne, %167, %c0_i32_52 : i32
    scf.if %168 {
      %c0_53 = arith.constant 0 : index
      %c0_54 = arith.constant 0 : index
      %169 = vector.load %arg9[%c0_53, %c0_54] : memref<16x128xf32, #tpu.memory_space<vmem>>, vector<16x128xf32>
      tpu.vector_store %arg9[%c0_53, %c0_54], %159 {strides = array<i32>} : memref<16x128xf32, #tpu.memory_space<vmem>>, vector<16x128xf32>,
    } else {
    }
    return
  }
  func.func @transform_0(%arg0: i32, %arg1: i32) -> (i32, i32, i32) {
    %c0_i32 = arith.constant 0 : i32
    %c0_i32_0 = arith.constant 0 : i32
    return %arg1, %arg0, %c0_i32 : i32, i32, i32
  }
  func.func @transform_1(%arg0: i32, %arg1: i32) -> (i32, i32) {
    %c0_i32 = arith.constant 0 : i32
    %c0_i32_0 = arith.constant 0 : i32
    return %arg0, %c0_i32 : i32, i32
  }
  func.func @transform_2(%arg0: i32, %arg1: i32) -> (i32, i32) {
    %c0_i32 = arith.constant 0 : i32
    %c0_i32_0 = arith.constant 0 : i32
    %c0_i32_1 = arith.constant 0 : i32
    return %c0_i32, %c0_i32_0 : i32, i32
  }
  func.func @transform_3(%arg0: i32, %arg1: i32) -> (i32, i32) {
    %c0_i32 = arith.constant 0 : i32
    %c0_i32_0 = arith.constant 0 : i32
    %c0_i32_1 = arith.constant 0 : i32
    return %c0_i32, %c0_i32_0 : i32, i32
  }
  func.func @transform_4(%arg0: i32, %arg1: i32) -> (i32, i32) {
    %c0_i32 = arith.constant 0 : i32
    %c0_i32_0 = arith.constant 0 : i32
    %c0_i32_1 = arith.constant 0 : i32
    return %c0_i32, %c0_i32_0 : i32, i32
  }
  func.func @transform_5(%arg0: i32, %arg1: i32) -> (i32, i32) {
    %c0_i32 = arith.constant 0 : i32
    %c0_i32_0 = arith.constant 0 : i32
    %c0_i32_1 = arith.constant 0 : i32
    return %c0_i32, %c0_i32_0 : i32, i32
  }
  func.func @transform_6(%arg0: i32, %arg1: i32) -> (i32, i32, i32) {
    %c0_i32 = arith.constant 0 : i32
    %c0_i32_0 = arith.constant 0 : i32
    return %arg1, %arg0, %c0_i32 : i32, i32, i32
  }
  func.func @transform_7(%arg0: i32, %arg1: i32) -> (i32, i32) {
    %c0_i32 = arith.constant 0 : i32
    %c0_i32_0 = arith.constant 0 : i32
    return %arg0, %c0_i32 : i32, i32
  }
}

module attributes {stable_mosaic.version = 11 : i64} {
  func.func @_gru_last_layer_kernel(%arg0: i32, %arg1: i32, %arg2: memref<4x16x128xbf16, #tpu.memory_space<vmem>>, %arg3: memref<16x128xf32, #tpu.memory_space<vmem>>, %arg4: memref<128x384xbf16, #tpu.memory_space<vmem>>, %arg5: memref<128x384xbf16, #tpu.memory_space<vmem>>, %arg6: memref<1x384xf32, #tpu.memory_space<vmem>>, %arg7: memref<1x128xf32, #tpu.memory_space<vmem>>, %arg8: memref<128x128xbf16, #tpu.memory_space<vmem>>, %arg9: memref<1x128xf32, #tpu.memory_space<vmem>>, %arg10: memref<16x128xf32, #tpu.memory_space<vmem>>, %arg11: memref<16x128xf32, #tpu.memory_space<vmem>>, %arg12: memref<4x16x384xf32, #tpu.memory_space<vmem>>, %arg13: memref<16x128xf32, #tpu.memory_space<vmem>>) attributes {dimension_semantics = [#tpu.dimension_semantics<parallel>, #tpu.dimension_semantics<arbitrary>], iteration_bounds = array<i64: 1, 2>, scalar_prefetch = 0 : i64, scratch_operands = 2 : i64, tpu.core_type = #tpu.core_type<tc>, window_params = [{transform_indices = @transform_0, window_bounds = array<i64: 4, 16, 128>}, {transform_indices = @transform_1, window_bounds = array<i64: 16, 128>}, {pipeline_mode = #tpu.pipeline_mode<synchronous>, transform_indices = @transform_2, window_bounds = array<i64: 128, 384>}, {pipeline_mode = #tpu.pipeline_mode<synchronous>, transform_indices = @transform_3, window_bounds = array<i64: 128, 384>}, {pipeline_mode = #tpu.pipeline_mode<synchronous>, transform_indices = @transform_4, window_bounds = array<i64: 1, 384>}, {pipeline_mode = #tpu.pipeline_mode<synchronous>, transform_indices = @transform_5, window_bounds = array<i64: 1, 128>}, {pipeline_mode = #tpu.pipeline_mode<synchronous>, transform_indices = @transform_6, window_bounds = array<i64: 128, 128>}, {pipeline_mode = #tpu.pipeline_mode<synchronous>, transform_indices = @transform_7, window_bounds = array<i64: 1, 128>}, {transform_indices = @transform_8, window_bounds = array<i64: 16, 128>}, {transform_indices = @transform_9, window_bounds = array<i64: 16, 128>}]} {
    %c0_i32 = arith.constant 0 : i32
    %0 = arith.cmpi eq, %arg1, %c0_i32 : i32
    %1 = arith.extui %0 : i1 to i32
    %c0_i32_0 = arith.constant 0 : i32
    %2 = arith.cmpi ne, %1, %c0_i32_0 : i32
    scf.if %2 {
      %c0_45 = arith.constant 0 : index
      %c0_46 = arith.constant 0 : index
      %149 = vector.load %arg3[%c0_45, %c0_46] : memref<16x128xf32, #tpu.memory_space<vmem>>, vector<16x128xf32>
      %c0_47 = arith.constant 0 : index
      %c0_48 = arith.constant 0 : index
      %150 = vector.load %arg13[%c0_47, %c0_48] : memref<16x128xf32, #tpu.memory_space<vmem>>, vector<16x128xf32>
      tpu.vector_store %arg13[%c0_47, %c0_48], %149 {strides = array<i32>} : memref<16x128xf32, #tpu.memory_space<vmem>>, vector<16x128xf32>,
    } else {
    }
    %c0 = arith.constant 0 : index
    %c0_1 = arith.constant 0 : index
    %c0_2 = arith.constant 0 : index
    %3 = vector.load %arg2[%c0, %c0_1, %c0_2] : memref<4x16x128xbf16, #tpu.memory_space<vmem>>, vector<4x16x128xbf16>
    %4 = vector.shape_cast %3 : vector<4x16x128xbf16> to vector<64x128xbf16>
    %c0_3 = arith.constant 0 : index
    %c0_4 = arith.constant 0 : index
    %5 = vector.load %arg4[%c0_3, %c0_4] : memref<128x384xbf16, #tpu.memory_space<vmem>>, vector<128x384xbf16>
    %cst = arith.constant dense<0.000000e+00> : vector<64x384xf32>
    %6 = tpu.matmul %4, %5, %cst {dimension_numbers = #tpu.dot_dimension_numbers<[1], [0], [0], [1], [0, 0, 1, 1], [], []>} : vector<64x128xbf16>, vector<128x384xbf16>, vector<64x384xf32> -> vector<64x384xf32>
    %c0_5 = arith.constant 0 : index
    %c0_6 = arith.constant 0 : index
    %7 = vector.load %arg6[%c0_5, %c0_6] : memref<1x384xf32, #tpu.memory_space<vmem>>, vector<1x384xf32>
    %8 = vector.broadcast %7 : vector<1x384xf32> to vector<64x384xf32>
    %9 = arith.addf %6, %8 : vector<64x384xf32>
    %10 = vector.shape_cast %9 : vector<64x384xf32> to vector<4x16x384xf32>
    %c0_7 = arith.constant 0 : index
    %c0_8 = arith.constant 0 : index
    %c0_9 = arith.constant 0 : index
    %11 = vector.load %arg12[%c0_7, %c0_8, %c0_9] : memref<4x16x384xf32, #tpu.memory_space<vmem>>, vector<4x16x384xf32>
    tpu.vector_store %arg12[%c0_7, %c0_8, %c0_9], %10 {strides = array<i32>} : memref<4x16x384xf32, #tpu.memory_space<vmem>>, vector<4x16x384xf32>,
    %c0_10 = arith.constant 0 : index
    %c0_11 = arith.constant 0 : index
    %12 = vector.load %arg5[%c0_10, %c0_11] : memref<128x384xbf16, #tpu.memory_space<vmem>>, vector<128x384xbf16>
    %c0_12 = arith.constant 0 : index
    %c0_13 = arith.constant 0 : index
    %13 = vector.load %arg7[%c0_12, %c0_13] : memref<1x128xf32, #tpu.memory_space<vmem>>, vector<1x128xf32>
    %14 = vector.shape_cast %13 : vector<1x128xf32> to vector<1x128xf32>
    %15 = vector.broadcast %14 : vector<1x128xf32> to vector<16x128xf32>
    %c0_14 = arith.constant 0 : index
    %c0_15 = arith.constant 0 : index
    %16 = vector.load %arg13[%c0_14, %c0_15] : memref<16x128xf32, #tpu.memory_space<vmem>>, vector<16x128xf32>
    %c0_i32_16 = arith.constant 0 : i32
    %17 = arith.index_cast %c0_i32_16 : i32 to index
    %c0_17 = arith.constant 0 : index
    %c0_18 = arith.constant 0 : index
    %18 = vector.load %arg12[%17, %c0_17, %c0_18] : memref<4x16x384xf32, #tpu.memory_space<vmem>>, vector<1x16x384xf32>
    %19 = vector.shape_cast %18 : vector<1x16x384xf32> to vector<16x384xf32>
    %20 = arith.truncf %16 : vector<16x128xf32> to vector<16x128xbf16>
    %cst_19 = arith.constant dense<0.000000e+00> : vector<16x384xf32>
    %21 = tpu.matmul %20, %12, %cst_19 {dimension_numbers = #tpu.dot_dimension_numbers<[1], [0], [0], [1], [0, 0, 1, 1], [], []>} : vector<16x128xbf16>, vector<128x384xbf16>, vector<16x384xf32> -> vector<16x384xf32>
    %22 = vector.extract_strided_slice %19 {offsets = [0, 0], sizes = [16, 128], strides = [1, 1]} : vector<16x384xf32> to vector<16x128xf32>
    %23 = vector.extract_strided_slice %21 {offsets = [0, 0], sizes = [16, 128], strides = [1, 1]} : vector<16x384xf32> to vector<16x128xf32>
    %24 = arith.addf %22, %23 : vector<16x128xf32>
    %25 = arith.negf %24 : vector<16x128xf32>
    %26 = math.exp %25 : vector<16x128xf32>
    %cst_20 = arith.constant 1.000000e+00 : f32
    %27 = vector.broadcast %cst_20 : f32 to vector<16x128xf32>
    %28 = arith.addf %27, %26 : vector<16x128xf32>
    %29 = arith.divf %27, %28 : vector<16x128xf32>
    %30 = vector.extract_strided_slice %19 {offsets = [0, 128], sizes = [16, 128], strides = [1, 1]} : vector<16x384xf32> to vector<16x128xf32>
    %31 = vector.extract_strided_slice %21 {offsets = [0, 128], sizes = [16, 128], strides = [1, 1]} : vector<16x384xf32> to vector<16x128xf32>
    %32 = arith.addf %30, %31 : vector<16x128xf32>
    %33 = arith.negf %32 : vector<16x128xf32>
    %34 = math.exp %33 : vector<16x128xf32>
    %cst_21 = arith.constant 1.000000e+00 : f32
    %35 = vector.broadcast %cst_21 : f32 to vector<16x128xf32>
    %36 = arith.addf %35, %34 : vector<16x128xf32>
    %37 = arith.divf %35, %36 : vector<16x128xf32>
    %38 = vector.extract_strided_slice %19 {offsets = [0, 256], sizes = [16, 128], strides = [1, 1]} : vector<16x384xf32> to vector<16x128xf32>
    %39 = vector.extract_strided_slice %21 {offsets = [0, 256], sizes = [16, 128], strides = [1, 1]} : vector<16x384xf32> to vector<16x128xf32>
    %40 = arith.addf %39, %15 : vector<16x128xf32>
    %41 = arith.mulf %29, %40 : vector<16x128xf32>
    %42 = arith.addf %38, %41 : vector<16x128xf32>
    %43 = math.tanh %42 : vector<16x128xf32>
    %cst_22 = arith.constant 1.000000e+00 : f32
    %44 = vector.broadcast %cst_22 : f32 to vector<16x128xf32>
    %45 = arith.subf %44, %37 : vector<16x128xf32>
    %46 = arith.mulf %45, %43 : vector<16x128xf32>
    %47 = arith.mulf %37, %16 : vector<16x128xf32>
    %48 = arith.addf %46, %47 : vector<16x128xf32>
    %c1_i32 = arith.constant 1 : i32
    %49 = arith.index_cast %c1_i32 : i32 to index
    %c0_23 = arith.constant 0 : index
    %c0_24 = arith.constant 0 : index
    %50 = vector.load %arg12[%49, %c0_23, %c0_24] : memref<4x16x384xf32, #tpu.memory_space<vmem>>, vector<1x16x384xf32>
    %51 = vector.shape_cast %50 : vector<1x16x384xf32> to vector<16x384xf32>
    %52 = arith.truncf %48 : vector<16x128xf32> to vector<16x128xbf16>
    %cst_25 = arith.constant dense<0.000000e+00> : vector<16x384xf32>
    %53 = tpu.matmul %52, %12, %cst_25 {dimension_numbers = #tpu.dot_dimension_numbers<[1], [0], [0], [1], [0, 0, 1, 1], [], []>} : vector<16x128xbf16>, vector<128x384xbf16>, vector<16x384xf32> -> vector<16x384xf32>
    %54 = vector.extract_strided_slice %51 {offsets = [0, 0], sizes = [16, 128], strides = [1, 1]} : vector<16x384xf32> to vector<16x128xf32>
    %55 = vector.extract_strided_slice %53 {offsets = [0, 0], sizes = [16, 128], strides = [1, 1]} : vector<16x384xf32> to vector<16x128xf32>
    %56 = arith.addf %54, %55 : vector<16x128xf32>
    %57 = arith.negf %56 : vector<16x128xf32>
    %58 = math.exp %57 : vector<16x128xf32>
    %cst_26 = arith.constant 1.000000e+00 : f32
    %59 = vector.broadcast %cst_26 : f32 to vector<16x128xf32>
    %60 = arith.addf %59, %58 : vector<16x128xf32>
    %61 = arith.divf %59, %60 : vector<16x128xf32>
    %62 = vector.extract_strided_slice %51 {offsets = [0, 128], sizes = [16, 128], strides = [1, 1]} : vector<16x384xf32> to vector<16x128xf32>
    %63 = vector.extract_strided_slice %53 {offsets = [0, 128], sizes = [16, 128], strides = [1, 1]} : vector<16x384xf32> to vector<16x128xf32>
    %64 = arith.addf %62, %63 : vector<16x128xf32>
    %65 = arith.negf %64 : vector<16x128xf32>
    %66 = math.exp %65 : vector<16x128xf32>
    %cst_27 = arith.constant 1.000000e+00 : f32
    %67 = vector.broadcast %cst_27 : f32 to vector<16x128xf32>
    %68 = arith.addf %67, %66 : vector<16x128xf32>
    %69 = arith.divf %67, %68 : vector<16x128xf32>
    %70 = vector.extract_strided_slice %51 {offsets = [0, 256], sizes = [16, 128], strides = [1, 1]} : vector<16x384xf32> to vector<16x128xf32>
    %71 = vector.extract_strided_slice %53 {offsets = [0, 256], sizes = [16, 128], strides = [1, 1]} : vector<16x384xf32> to vector<16x128xf32>
    %72 = arith.addf %71, %15 : vector<16x128xf32>
    %73 = arith.mulf %61, %72 : vector<16x128xf32>
    %74 = arith.addf %70, %73 : vector<16x128xf32>
    %75 = math.tanh %74 : vector<16x128xf32>
    %cst_28 = arith.constant 1.000000e+00 : f32
    %76 = vector.broadcast %cst_28 : f32 to vector<16x128xf32>
    %77 = arith.subf %76, %69 : vector<16x128xf32>
    %78 = arith.mulf %77, %75 : vector<16x128xf32>
    %79 = arith.mulf %69, %48 : vector<16x128xf32>
    %80 = arith.addf %78, %79 : vector<16x128xf32>
    %c2_i32 = arith.constant 2 : i32
    %81 = arith.index_cast %c2_i32 : i32 to index
    %c0_29 = arith.constant 0 : index
    %c0_30 = arith.constant 0 : index
    %82 = vector.load %arg12[%81, %c0_29, %c0_30] : memref<4x16x384xf32, #tpu.memory_space<vmem>>, vector<1x16x384xf32>
    %83 = vector.shape_cast %82 : vector<1x16x384xf32> to vector<16x384xf32>
    %84 = arith.truncf %80 : vector<16x128xf32> to vector<16x128xbf16>
    %cst_31 = arith.constant dense<0.000000e+00> : vector<16x384xf32>
    %85 = tpu.matmul %84, %12, %cst_31 {dimension_numbers = #tpu.dot_dimension_numbers<[1], [0], [0], [1], [0, 0, 1, 1], [], []>} : vector<16x128xbf16>, vector<128x384xbf16>, vector<16x384xf32> -> vector<16x384xf32>
    %86 = vector.extract_strided_slice %83 {offsets = [0, 0], sizes = [16, 128], strides = [1, 1]} : vector<16x384xf32> to vector<16x128xf32>
    %87 = vector.extract_strided_slice %85 {offsets = [0, 0], sizes = [16, 128], strides = [1, 1]} : vector<16x384xf32> to vector<16x128xf32>
    %88 = arith.addf %86, %87 : vector<16x128xf32>
    %89 = arith.negf %88 : vector<16x128xf32>
    %90 = math.exp %89 : vector<16x128xf32>
    %cst_32 = arith.constant 1.000000e+00 : f32
    %91 = vector.broadcast %cst_32 : f32 to vector<16x128xf32>
    %92 = arith.addf %91, %90 : vector<16x128xf32>
    %93 = arith.divf %91, %92 : vector<16x128xf32>
    %94 = vector.extract_strided_slice %83 {offsets = [0, 128], sizes = [16, 128], strides = [1, 1]} : vector<16x384xf32> to vector<16x128xf32>
    %95 = vector.extract_strided_slice %85 {offsets = [0, 128], sizes = [16, 128], strides = [1, 1]} : vector<16x384xf32> to vector<16x128xf32>
    %96 = arith.addf %94, %95 : vector<16x128xf32>
    %97 = arith.negf %96 : vector<16x128xf32>
    %98 = math.exp %97 : vector<16x128xf32>
    %cst_33 = arith.constant 1.000000e+00 : f32
    %99 = vector.broadcast %cst_33 : f32 to vector<16x128xf32>
    %100 = arith.addf %99, %98 : vector<16x128xf32>
    %101 = arith.divf %99, %100 : vector<16x128xf32>
    %102 = vector.extract_strided_slice %83 {offsets = [0, 256], sizes = [16, 128], strides = [1, 1]} : vector<16x384xf32> to vector<16x128xf32>
    %103 = vector.extract_strided_slice %85 {offsets = [0, 256], sizes = [16, 128], strides = [1, 1]} : vector<16x384xf32> to vector<16x128xf32>
    %104 = arith.addf %103, %15 : vector<16x128xf32>
    %105 = arith.mulf %93, %104 : vector<16x128xf32>
    %106 = arith.addf %102, %105 : vector<16x128xf32>
    %107 = math.tanh %106 : vector<16x128xf32>
    %cst_34 = arith.constant 1.000000e+00 : f32
    %108 = vector.broadcast %cst_34 : f32 to vector<16x128xf32>
    %109 = arith.subf %108, %101 : vector<16x128xf32>
    %110 = arith.mulf %109, %107 : vector<16x128xf32>
    %111 = arith.mulf %101, %80 : vector<16x128xf32>
    %112 = arith.addf %110, %111 : vector<16x128xf32>
    %c3_i32 = arith.constant 3 : i32
    %113 = arith.index_cast %c3_i32 : i32 to index
    %c0_35 = arith.constant 0 : index
    %c0_36 = arith.constant 0 : index
    %114 = vector.load %arg12[%113, %c0_35, %c0_36] : memref<4x16x384xf32, #tpu.memory_space<vmem>>, vector<1x16x384xf32>
    %115 = vector.shape_cast %114 : vector<1x16x384xf32> to vector<16x384xf32>
    %116 = arith.truncf %112 : vector<16x128xf32> to vector<16x128xbf16>
    %cst_37 = arith.constant dense<0.000000e+00> : vector<16x384xf32>
    %117 = tpu.matmul %116, %12, %cst_37 {dimension_numbers = #tpu.dot_dimension_numbers<[1], [0], [0], [1], [0, 0, 1, 1], [], []>} : vector<16x128xbf16>, vector<128x384xbf16>, vector<16x384xf32> -> vector<16x384xf32>
    %118 = vector.extract_strided_slice %115 {offsets = [0, 0], sizes = [16, 128], strides = [1, 1]} : vector<16x384xf32> to vector<16x128xf32>
    %119 = vector.extract_strided_slice %117 {offsets = [0, 0], sizes = [16, 128], strides = [1, 1]} : vector<16x384xf32> to vector<16x128xf32>
    %120 = arith.addf %118, %119 : vector<16x128xf32>
    %121 = arith.negf %120 : vector<16x128xf32>
    %122 = math.exp %121 : vector<16x128xf32>
    %cst_38 = arith.constant 1.000000e+00 : f32
    %123 = vector.broadcast %cst_38 : f32 to vector<16x128xf32>
    %124 = arith.addf %123, %122 : vector<16x128xf32>
    %125 = arith.divf %123, %124 : vector<16x128xf32>
    %126 = vector.extract_strided_slice %115 {offsets = [0, 128], sizes = [16, 128], strides = [1, 1]} : vector<16x384xf32> to vector<16x128xf32>
    %127 = vector.extract_strided_slice %117 {offsets = [0, 128], sizes = [16, 128], strides = [1, 1]} : vector<16x384xf32> to vector<16x128xf32>
    %128 = arith.addf %126, %127 : vector<16x128xf32>
    %129 = arith.negf %128 : vector<16x128xf32>
    %130 = math.exp %129 : vector<16x128xf32>
    %cst_39 = arith.constant 1.000000e+00 : f32
    %131 = vector.broadcast %cst_39 : f32 to vector<16x128xf32>
    %132 = arith.addf %131, %130 : vector<16x128xf32>
    %133 = arith.divf %131, %132 : vector<16x128xf32>
    %134 = vector.extract_strided_slice %115 {offsets = [0, 256], sizes = [16, 128], strides = [1, 1]} : vector<16x384xf32> to vector<16x128xf32>
    %135 = vector.extract_strided_slice %117 {offsets = [0, 256], sizes = [16, 128], strides = [1, 1]} : vector<16x384xf32> to vector<16x128xf32>
    %136 = arith.addf %135, %15 : vector<16x128xf32>
    %137 = arith.mulf %125, %136 : vector<16x128xf32>
    %138 = arith.addf %134, %137 : vector<16x128xf32>
    %139 = math.tanh %138 : vector<16x128xf32>
    %cst_40 = arith.constant 1.000000e+00 : f32
    %140 = vector.broadcast %cst_40 : f32 to vector<16x128xf32>
    %141 = arith.subf %140, %133 : vector<16x128xf32>
    %142 = arith.mulf %141, %139 : vector<16x128xf32>
    %143 = arith.mulf %133, %112 : vector<16x128xf32>
    %144 = arith.addf %142, %143 : vector<16x128xf32>
    %c4_i32 = arith.constant 4 : i32
    %c0_41 = arith.constant 0 : index
    %c0_42 = arith.constant 0 : index
    %145 = vector.load %arg13[%c0_41, %c0_42] : memref<16x128xf32, #tpu.memory_space<vmem>>, vector<16x128xf32>
    tpu.vector_store %arg13[%c0_41, %c0_42], %144 {strides = array<i32>} : memref<16x128xf32, #tpu.memory_space<vmem>>, vector<16x128xf32>,
    %c1_i32_43 = arith.constant 1 : i32
    %146 = arith.cmpi eq, %arg1, %c1_i32_43 : i32
    %147 = arith.extui %146 : i1 to i32
    %c0_i32_44 = arith.constant 0 : i32
    %148 = arith.cmpi ne, %147, %c0_i32_44 : i32
    scf.if %148 {
      %c0_45 = arith.constant 0 : index
      %c0_46 = arith.constant 0 : index
      %149 = vector.load %arg11[%c0_45, %c0_46] : memref<16x128xf32, #tpu.memory_space<vmem>>, vector<16x128xf32>
      tpu.vector_store %arg11[%c0_45, %c0_46], %144 {strides = array<i32>} : memref<16x128xf32, #tpu.memory_space<vmem>>, vector<16x128xf32>,
      %cst_47 = arith.constant 0.000000e+00 : f32
      %150 = vector.broadcast %cst_47 : f32 to vector<16x128xf32>
      %151 = arith.maximumf %144, %150 : vector<16x128xf32>
      %152 = arith.truncf %151 : vector<16x128xf32> to vector<16x128xbf16>
      %c0_48 = arith.constant 0 : index
      %c0_49 = arith.constant 0 : index
      %153 = vector.load %arg8[%c0_48, %c0_49] : memref<128x128xbf16, #tpu.memory_space<vmem>>, vector<128x128xbf16>
      %cst_50 = arith.constant dense<0.000000e+00> : vector<16x128xf32>
      %154 = tpu.matmul %152, %153, %cst_50 {dimension_numbers = #tpu.dot_dimension_numbers<[1], [0], [0], [1], [0, 0, 1, 1], [], []>} : vector<16x128xbf16>, vector<128x128xbf16>, vector<16x128xf32> -> vector<16x128xf32>
      %c0_51 = arith.constant 0 : index
      %c0_52 = arith.constant 0 : index
      %155 = vector.load %arg9[%c0_51, %c0_52] : memref<1x128xf32, #tpu.memory_space<vmem>>, vector<1x128xf32>
      %156 = vector.broadcast %155 : vector<1x128xf32> to vector<16x128xf32>
      %157 = arith.addf %154, %156 : vector<16x128xf32>
      %c0_53 = arith.constant 0 : index
      %c0_54 = arith.constant 0 : index
      %158 = vector.load %arg10[%c0_53, %c0_54] : memref<16x128xf32, #tpu.memory_space<vmem>>, vector<16x128xf32>
      tpu.vector_store %arg10[%c0_53, %c0_54], %157 {strides = array<i32>} : memref<16x128xf32, #tpu.memory_space<vmem>>, vector<16x128xf32>,
    } else {
    }
    return
  }
  func.func @transform_0(%arg0: i32, %arg1: i32) -> (i32, i32, i32) {
    %c0_i32 = arith.constant 0 : i32
    %c0_i32_0 = arith.constant 0 : i32
    return %arg1, %arg0, %c0_i32 : i32, i32, i32
  }
  func.func @transform_1(%arg0: i32, %arg1: i32) -> (i32, i32) {
    %c0_i32 = arith.constant 0 : i32
    %c0_i32_0 = arith.constant 0 : i32
    return %arg0, %c0_i32 : i32, i32
  }
  func.func @transform_2(%arg0: i32, %arg1: i32) -> (i32, i32) {
    %c0_i32 = arith.constant 0 : i32
    %c0_i32_0 = arith.constant 0 : i32
    %c0_i32_1 = arith.constant 0 : i32
    return %c0_i32, %c0_i32_0 : i32, i32
  }
  func.func @transform_3(%arg0: i32, %arg1: i32) -> (i32, i32) {
    %c0_i32 = arith.constant 0 : i32
    %c0_i32_0 = arith.constant 0 : i32
    %c0_i32_1 = arith.constant 0 : i32
    return %c0_i32, %c0_i32_0 : i32, i32
  }
  func.func @transform_4(%arg0: i32, %arg1: i32) -> (i32, i32) {
    %c0_i32 = arith.constant 0 : i32
    %c0_i32_0 = arith.constant 0 : i32
    %c0_i32_1 = arith.constant 0 : i32
    return %c0_i32, %c0_i32_0 : i32, i32
  }
  func.func @transform_5(%arg0: i32, %arg1: i32) -> (i32, i32) {
    %c0_i32 = arith.constant 0 : i32
    %c0_i32_0 = arith.constant 0 : i32
    %c0_i32_1 = arith.constant 0 : i32
    return %c0_i32, %c0_i32_0 : i32, i32
  }
  func.func @transform_6(%arg0: i32, %arg1: i32) -> (i32, i32) {
    %c0_i32 = arith.constant 0 : i32
    %c0_i32_0 = arith.constant 0 : i32
    %c0_i32_1 = arith.constant 0 : i32
    return %c0_i32, %c0_i32_0 : i32, i32
  }
  func.func @transform_7(%arg0: i32, %arg1: i32) -> (i32, i32) {
    %c0_i32 = arith.constant 0 : i32
    %c0_i32_0 = arith.constant 0 : i32
    %c0_i32_1 = arith.constant 0 : i32
    return %c0_i32, %c0_i32_0 : i32, i32
  }
  func.func @transform_8(%arg0: i32, %arg1: i32) -> (i32, i32) {
    %c0_i32 = arith.constant 0 : i32
    %c0_i32_0 = arith.constant 0 : i32
    return %arg0, %c0_i32 : i32, i32
  }
  func.func @transform_9(%arg0: i32, %arg1: i32) -> (i32, i32) {
    %c0_i32 = arith.constant 0 : i32
    %c0_i32_0 = arith.constant 0 : i32
    return %arg0, %c0_i32 : i32, i32
  }
}

</mosaic_0001>

<llo_original>
// kernel: grunet_forward.3
$region0: #{grunet_forward.3}
  #allocation0 [shape = 'u32[]', space=smem, size = 0x4, offset = 0x4, fixed_abs, tag = 'smem constant byte address 0x4 - core index']
  #allocation1 [shape = 'u32[144,128]{1,0:T(1,128)}', space=vmem, size = 0x12000, scoped, tag = 'internal scratch']
  #allocation2 [shape = 'f32[4,16,384]{2,1,0:T(8,128)}', space=vmem, size = 0x18000, scoped, tag = 'scratch operand']
  #allocation3 [shape = 'f32[16,128]{1,0:T(8,128)}', space=vmem, size = 0x2000, scoped, tag = 'scratch operand']
  %s0 = inlined_call_operand.vmem [shape: bf16[8,16,128], index: 0, kind: input, shape index: {}]
  %s1 = inlined_call_operand.vmem [shape: f32[16,128], index: 1, kind: input, shape index: {}]
  %s2 = inlined_call_operand.vmem [shape: bf16[128,384], index: 2, kind: input, shape index: {}]
  %s3 = inlined_call_operand.vmem [shape: bf16[128,384], index: 3, kind: input, shape index: {}]
  %s4 = inlined_call_operand.vmem [shape: f32[1,384], index: 4, kind: input, shape index: {}]
  %s5 = inlined_call_operand.vmem [shape: f32[1,128], index: 5, kind: input, shape index: {}]
  %s6 = inlined_call_operand.vmem [shape: bf16[128,128], index: 6, kind: input, shape index: {}]
  %s7 = inlined_call_operand.vmem [shape: f32[1,128], index: 7, kind: input, shape index: {}]
  %s8 = inlined_call_operand.vmem [shape: f32[16,128], index: 8, kind: output, shape index: {0}]
  %s9 = inlined_call_operand.vmem [shape: f32[16,128], index: 9, kind: output, shape index: {1}]
  %10 = xla_tuple %s8, %s9
  %s11 = sld [smem:[#allocation0]]
  $region81: #{grunet_forward.3} parent=0
    _
  %s13 = ssub.s32 1, %s11
  %s14 = scalar_select 0, %s13, %s11
  loop: start=0, step=1, limit=4
  $region2: #{grunet_forward.3} parent=0 // loop_pre_header
    _
  $region3: #{grunet_forward.3} parent=0 // loop_header
    %s16 = sphi 0, %s20
    %p17 = scmp.ge.s32.totalorder %s16, 4
    %s23 = sphi 0, %s35
    %s24 = sphi 0, %s31
    %s25 = sphi 0, %s23
    %s26 = sphi 0, %s24
    %s27 = sphi 0, %s25
    %s28 = sphi 0, %s26
    %s40 = sphi 0, %s42
    %s43 = sphi 0, %s40
    %s44 = sphi 0, %s43
    %s60 = sphi 0, %s44
    %s66 = sphi 0, %s68
    %s69 = sphi 0, %s66
    %s70 = sphi 0, %s69
    %s86 = sphi 0, %s70
    %s90 = sphi 0, %s90
    %s92 = sphi 0, %s90
    %s93 = sphi 0, %s92
    %s107 = sphi 0, %s93
    %s111 = sphi 0, %s111
    %s113 = sphi 0, %s111
    %s114 = sphi 0, %s113
    %s128 = sphi 0, %s114
    %s132 = sphi 0, %s132
    %s134 = sphi 0, %s132
    %s135 = sphi 0, %s134
    %s149 = sphi 0, %s135
    %s153 = sphi 0, %s153
    %s155 = sphi 0, %s153
    %s156 = sphi 0, %s155
    %s170 = sphi 0, %s156
    %s174 = sphi 0, %s174
    %s176 = sphi 0, %s174
    %s177 = sphi 0, %s176
    %s191 = sphi 0, %s177
    %s195 = sphi 0, %s195
    %s197 = sphi 0, %s195
    %s198 = sphi 0, %s197
    %s212 = sphi 0, %s198
    %s218 = sphi 0, %s220
    %s221 = sphi 0, %s218
    %s222 = sphi 0, %s221
    %s238 = sphi 0, %s222
    %s244 = sphi 0, %s246
    %s247 = sphi 0, %s244
    %s248 = sphi 0, %s247
    %s264 = sphi 0, %s248
  $region4: #{grunet_forward.3} parent=0 // loop_header_branch
    %19 = sbr.rel (%p17) target = $region8
  $region5: #{grunet_forward.3} parent=0 // loop_body
    %s21 = ssub.s32 %s16, 1
    %s22 = ssub.s32 %s16, 2
    %s29 = sadd.s32 1, %s24
    %p30 = scmp.ge.s32.totalorder %s29, 2
    %s31 = scalar_select %p30, 0, %s29
    %s32 = sadd.s32 1, %s23
    %s33 = scalar_select %p30, %s32, %s23
    %p34 = scmp.ge.s32.totalorder %s33, 1
    %s35 = scalar_select %p34, 0, %s33
    %s36 = ssub.s32 %s24, %s31
    %s37 = ssub.s32 %s23, %s35
    %s38 = sor.u32 %s36, %s37
    %p39 = scmp.eq.s32.totalorder %s38, 0
    %s41 = sadd.s32 %s40, 1
    %s42 = scalar_select %p39, %s40, %s41
    %p45 = pneg %p39
    %p46 = scmp.eq.s32.totalorder %s16, 1
    %p47 = por %p45, %p46
    %p48 = scmp.ne.s32.totalorder %s40, %s43
    %p49 = scmp.eq.s32.totalorder %s16, 0
    %p50 = por %p48, %p49
    %p51 = scmp.ne.s32.totalorder %s40, %s43
    %p52 = scmp.eq.s32.totalorder %s21, 1
    %p53 = por %p51, %p52
    %p54 = scmp.ne.s32.totalorder %s43, %s44
    %p55 = scmp.eq.s32.totalorder %s21, 0
    %p56 = por %p54, %p55
    %p57 = scmp.ne.s32.totalorder %s43, %s44
    %p58 = scmp.eq.s32.totalorder %s22, 1
    %p59 = por %p57, %p58
    %p61 = scmp.ne.s32.totalorder %s44, %s60
    %p62 = scmp.eq.s32.totalorder %s22, 0
    %p63 = por %p61, %p62
    %s64 = ssub.s32 %s23, %s35
    %p65 = scmp.eq.s32.totalorder %s64, 0
    %s67 = sadd.s32 %s66, 1
    %s68 = scalar_select %p65, %s66, %s67
    %p71 = pneg %p65
    %p72 = scmp.eq.s32.totalorder %s16, 1
    %p73 = por %p71, %p72
    %p74 = scmp.ne.s32.totalorder %s66, %s69
    %p75 = scmp.eq.s32.totalorder %s16, 0
    %p76 = por %p74, %p75
    %p77 = scmp.ne.s32.totalorder %s66, %s69
    %p78 = scmp.eq.s32.totalorder %s21, 1
    %p79 = por %p77, %p78
    %p80 = scmp.ne.s32.totalorder %s69, %s70
    %p81 = scmp.eq.s32.totalorder %s21, 0
    %p82 = por %p80, %p81
    %p83 = scmp.ne.s32.totalorder %s69, %s70
    %p84 = scmp.eq.s32.totalorder %s22, 1
    %p85 = por %p83, %p84
    %p87 = scmp.ne.s32.totalorder %s70, %s86
    %p88 = scmp.eq.s32.totalorder %s22, 0
    %p89 = por %p87, %p88
    %s91 = sadd.s32 %s90, 1
    %p94 = scmp.eq.s32.totalorder %s16, 1
    %p95 = scmp.ne.s32.totalorder %s90, %s92
    %p96 = scmp.eq.s32.totalorder %s16, 0
    %p97 = por %p95, %p96
    %p98 = scmp.ne.s32.totalorder %s90, %s92
    %p99 = scmp.eq.s32.totalorder %s21, 1
    %p100 = por %p98, %p99
    %p101 = scmp.ne.s32.totalorder %s92, %s93
    %p102 = scmp.eq.s32.totalorder %s21, 0
    %p103 = por %p101, %p102
    %p104 = scmp.ne.s32.totalorder %s92, %s93
    %p105 = scmp.eq.s32.totalorder %s22, 1
    %p106 = por %p104, %p105
    %p108 = scmp.ne.s32.totalorder %s93, %s107
    %p109 = scmp.eq.s32.totalorder %s22, 0
    %p110 = por %p108, %p109
    %s112 = sadd.s32 %s111, 1
    %p115 = scmp.eq.s32.totalorder %s16, 1
    %p116 = scmp.ne.s32.totalorder %s111, %s113
    %p117 = scmp.eq.s32.totalorder %s16, 0
    %p118 = por %p116, %p117
    %p119 = scmp.ne.s32.totalorder %s111, %s113
    %p120 = scmp.eq.s32.totalorder %s21, 1
    %p121 = por %p119, %p120
    %p122 = scmp.ne.s32.totalorder %s113, %s114
    %p123 = scmp.eq.s32.totalorder %s21, 0
    %p124 = por %p122, %p123
    %p125 = scmp.ne.s32.totalorder %s113, %s114
    %p126 = scmp.eq.s32.totalorder %s22, 1
    %p127 = por %p125, %p126
    %p129 = scmp.ne.s32.totalorder %s114, %s128
    %p130 = scmp.eq.s32.totalorder %s22, 0
    %p131 = por %p129, %p130
    %s133 = sadd.s32 %s132, 1
    %p136 = scmp.eq.s32.totalorder %s16, 1
    %p137 = scmp.ne.s32.totalorder %s132, %s134
    %p138 = scmp.eq.s32.totalorder %s16, 0
    %p139 = por %p137, %p138
    %p140 = scmp.ne.s32.totalorder %s132, %s134
    %p141 = scmp.eq.s32.totalorder %s21, 1
    %p142 = por %p140, %p141
    %p143 = scmp.ne.s32.totalorder %s134, %s135
    %p144 = scmp.eq.s32.totalorder %s21, 0
    %p145 = por %p143, %p144
    %p146 = scmp.ne.s32.totalorder %s134, %s135
    %p147 = scmp.eq.s32.totalorder %s22, 1
    %p148 = por %p146, %p147
    %p150 = scmp.ne.s32.totalorder %s135, %s149
    %p151 = scmp.eq.s32.totalorder %s22, 0
    %p152 = por %p150, %p151
    %s154 = sadd.s32 %s153, 1
    %p157 = scmp.eq.s32.totalorder %s16, 1
    %p158 = scmp.ne.s32.totalorder %s153, %s155
    %p159 = scmp.eq.s32.totalorder %s16, 0
    %p160 = por %p158, %p159
    %p161 = scmp.ne.s32.totalorder %s153, %s155
    %p162 = scmp.eq.s32.totalorder %s21, 1
    %p163 = por %p161, %p162
    %p164 = scmp.ne.s32.totalorder %s155, %s156
    %p165 = scmp.eq.s32.totalorder %s21, 0
    %p166 = por %p164, %p165
    %p167 = scmp.ne.s32.totalorder %s155, %s156
    %p168 = scmp.eq.s32.totalorder %s22, 1
    %p169 = por %p167, %p168
    %p171 = scmp.ne.s32.totalorder %s156, %s170
    %p172 = scmp.eq.s32.totalorder %s22, 0
    %p173 = por %p171, %p172
    %s175 = sadd.s32 %s174, 1
    %p178 = scmp.eq.s32.totalorder %s16, 1
    %p179 = scmp.ne.s32.totalorder %s174, %s176
    %p180 = scmp.eq.s32.totalorder %s16, 0
    %p181 = por %p179, %p180
    %p182 = scmp.ne.s32.totalorder %s174, %s176
    %p183 = scmp.eq.s32.totalorder %s21, 1
    %p184 = por %p182, %p183
    %p185 = scmp.ne.s32.totalorder %s176, %s177
    %p186 = scmp.eq.s32.totalorder %s21, 0
    %p187 = por %p185, %p186
    %p188 = scmp.ne.s32.totalorder %s176, %s177
    %p189 = scmp.eq.s32.totalorder %s22, 1
    %p190 = por %p188, %p189
    %p192 = scmp.ne.s32.totalorder %s177, %s191
    %p193 = scmp.eq.s32.totalorder %s22, 0
    %p194 = por %p192, %p193
    %s196 = sadd.s32 %s195, 1
    %p199 = scmp.eq.s32.totalorder %s16, 1
    %p200 = scmp.ne.s32.totalorder %s195, %s197
    %p201 = scmp.eq.s32.totalorder %s16, 0
    %p202 = por %p200, %p201
    %p203 = scmp.ne.s32.totalorder %s195, %s197
    %p204 = scmp.eq.s32.totalorder %s21, 1
    %p205 = por %p203, %p204
    %p206 = scmp.ne.s32.totalorder %s197, %s198
    %p207 = scmp.eq.s32.totalorder %s21, 0
    %p208 = por %p206, %p207
    %p209 = scmp.ne.s32.totalorder %s197, %s198
    %p210 = scmp.eq.s32.totalorder %s22, 1
    %p211 = por %p209, %p210
    %p213 = scmp.ne.s32.totalorder %s198, %s212
    %p214 = scmp.eq.s32.totalorder %s22, 0
    %p215 = por %p213, %p214
    %s216 = ssub.s32 %s23, %s35
    %p217 = scmp.eq.s32.totalorder %s216, 0
    %s219 = sadd.s32 %s218, 1
    %s220 = scalar_select %p217, %s218, %s219
    %p223 = pneg %p217
    %p224 = scmp.eq.s32.totalorder %s16, 1
    %p225 = por %p223, %p224
    %p226 = scmp.ne.s32.totalorder %s218, %s221
    %p227 = scmp.eq.s32.totalorder %s16, 0
    %p228 = por %p226, %p227
    %p229 = scmp.ne.s32.totalorder %s218, %s221
    %p230 = scmp.eq.s32.totalorder %s21, 1
    %p231 = por %p229, %p230
    %p232 = scmp.ne.s32.totalorder %s221, %s222
    %p233 = scmp.eq.s32.totalorder %s21, 0
    %p234 = por %p232, %p233
    %p235 = scmp.ne.s32.totalorder %s221, %s222
    %p236 = scmp.eq.s32.totalorder %s22, 1
    %p237 = por %p235, %p236
    %p239 = scmp.ne.s32.totalorder %s222, %s238
    %p240 = scmp.eq.s32.totalorder %s22, 0
    %p241 = por %p239, %p240
    %s242 = ssub.s32 %s23, %s35
    %p243 = scmp.eq.s32.totalorder %s242, 0
    %s245 = sadd.s32 %s244, 1
    %s246 = scalar_select %p243, %s244, %s245
    %p249 = pneg %p243
    %p250 = scmp.eq.s32.totalorder %s16, 1
    %p251 = por %p249, %p250
    %p252 = scmp.ne.s32.totalorder %s244, %s247
    %p253 = scmp.eq.s32.totalorder %s16, 0
    %p254 = por %p252, %p253
    %p255 = scmp.ne.s32.totalorder %s244, %s247
    %p256 = scmp.eq.s32.totalorder %s21, 1
    %p257 = por %p255, %p256
    %p258 = scmp.ne.s32.totalorder %s247, %s248
    %p259 = scmp.eq.s32.totalorder %s21, 0
    %p260 = por %p258, %p259
    %p261 = scmp.ne.s32.totalorder %s247, %s248
    %p262 = scmp.eq.s32.totalorder %s22, 1
    %p263 = por %p261, %p262
    %p265 = scmp.ne.s32.totalorder %s248, %s264
    %p266 = scmp.eq.s32.totalorder %s22, 0
    %p267 = por %p265, %p266
    %p268 = scmp.le.s32.totalorder 1, %s16
    %p269 = scmp.lt.s32.totalorder %s16, 3
    %p270 = pnand %p268, %p269
    %p271 = pneg %p270
    // Predicated region
    $region9: #{grunet_forward.3} parent=5 // pred_check
      _
    $region10: #{grunet_forward.3} parent=5 // pred_check_branch
      %273 = sbr.rel (%p270) target = $region12
    $region11: #{grunet_forward.3} parent=5 // pred_region
      %s274 = ssub.s32 %s16, 1
      // Predicated region
      $region13: #{grunet_forward.3} parent=11 // pred_check
        %p275 = pneg %p82
      $region14: #{grunet_forward.3} parent=11 // pred_check_branch
        %277 = sbr.rel (%p275) target = $region16
      $region15: #{grunet_forward.3} parent=11 // pred_region
        %s278 = smul.u32 2, %s25
        %p279 = scmp.lt.s32.totalorder %s278, 1
        %s280 = scalar_select %p279, %s278, 1
        %s281 = smul.addr %s280, 8
        %s282 = scalar_lea.vmem %s1, %s281
        %s283 = smul.u32 2, %s25
      $region16: #{grunet_forward.3} parent=11 // pred_fallthru
        _
      // Predicated region
      $region17: #{grunet_forward.3} parent=11 // pred_check
        %p284 = pneg %p103
      $region18: #{grunet_forward.3} parent=11 // pred_check_branch
        %286 = sbr.rel (%p284) target = $region20
      $region19: #{grunet_forward.3} parent=11 // pred_region
        _
      $region20: #{grunet_forward.3} parent=11 // pred_fallthru
        _
      // Predicated region
      $region21: #{grunet_forward.3} parent=11 // pred_check
        %p287 = pneg %p124
      $region22: #{grunet_forward.3} parent=11 // pred_check_branch
        %289 = sbr.rel (%p287) target = $region24
      $region23: #{grunet_forward.3} parent=11 // pred_region
        _
      $region24: #{grunet_forward.3} parent=11 // pred_fallthru
        _
      // Predicated region
      $region25: #{grunet_forward.3} parent=11 // pred_check
        %p290 = pneg %p145
      $region26: #{grunet_forward.3} parent=11 // pred_check_branch
        %292 = sbr.rel (%p290) target = $region28
      $region27: #{grunet_forward.3} parent=11 // pred_region
        _
      $region28: #{grunet_forward.3} parent=11 // pred_fallthru
        _
      // Predicated region
      $region29: #{grunet_forward.3} parent=11 // pred_check
        %p293 = pneg %p166
      $region30: #{grunet_forward.3} parent=11 // pred_check_branch
        %295 = sbr.rel (%p293) target = $region32
      $region31: #{grunet_forward.3} parent=11 // pred_region
        _
      $region32: #{grunet_forward.3} parent=11 // pred_fallthru
        _
      // Predicated region
      $region33: #{grunet_forward.3} parent=11 // pred_check
        %p296 = pneg %p187
      $region34: #{grunet_forward.3} parent=11 // pred_check_branch
        %298 = sbr.rel (%p296) target = $region36
      $region35: #{grunet_forward.3} parent=11 // pred_region
        _
      $region36: #{grunet_forward.3} parent=11 // pred_fallthru
        _
      // Predicated region
      $region37: #{grunet_forward.3} parent=11 // pred_check
        %p299 = pneg %p208
      $region38: #{grunet_forward.3} parent=11 // pred_check_branch
        %301 = sbr.rel (%p299) target = $region40
      $region39: #{grunet_forward.3} parent=11 // pred_region
        _
      $region40: #{grunet_forward.3} parent=11 // pred_fallthru
        _
    $region12: #{grunet_forward.3} parent=5 // pred_fallthru
      _
    %p302 = scmp.lt.s32.totalorder %s16, 2
    // Predicated region
    $region41: #{grunet_forward.3} parent=5 // pred_check
      %p303 = pneg %p302
    $region42: #{grunet_forward.3} parent=5 // pred_check_branch
      %305 = sbr.rel (%p303) target = $region44
    $region43: #{grunet_forward.3} parent=5 // pred_region
      // Predicated region
      $region45: #{grunet_forward.3} parent=43 // pred_check
        %p306 = pneg %p50
      $region46: #{grunet_forward.3} parent=43 // pred_check_branch
        %308 = sbr.rel (%p306) target = $region48
      $region47: #{grunet_forward.3} parent=43 // pred_region
        %s309 = smul.u32 4, %s24
        %s310 = smul.u32 2, %s23
        %p311 = scmp.lt.s32.totalorder %s309, 7
        %s312 = scalar_select %p311, %s309, 7
        %p313 = scmp.lt.s32.totalorder %s310, 1
        %s314 = scalar_select %p313, %s310, 1
        %s315 = smul.addr %s312, 2
        %s316 = sadd.s32 %s314, %s315
        %s317 = smul.addr %s316, 4
        %s318 = scalar_lea.vmem %s0, %s317
        %s319 = smul.u32 4, %s24
        %s320 = smul.u32 2, %s23
      $region48: #{grunet_forward.3} parent=43 // pred_fallthru
        _
    $region44: #{grunet_forward.3} parent=5 // pred_fallthru
      _
    %p321 = scmp.le.s32.totalorder 1, %s16
    %p322 = scmp.lt.s32.totalorder %s16, 3
    %p323 = pnand %p321, %p322
    %p324 = pneg %p323
    // Predicated region
    $region49: #{grunet_forward.3} parent=5 // pred_check
      _
    $region50: #{grunet_forward.3} parent=5 // pred_check_branch
      %326 = sbr.rel (%p323) target = $region52
    $region51: #{grunet_forward.3} parent=5 // pred_region
      %s327 = ssub.s32 %s16, 1
      %s328 = smul.u32 4, %s26
      %s329 = smul.u32 2, %s25
      %p330 = scmp.lt.s32.totalorder %s328, 7
      %s331 = scalar_select %p330, %s328, 7
      %p332 = scmp.lt.s32.totalorder %s329, 1
      %s333 = scalar_select %p332, %s329, 1
      %s334 = smul.addr %s331, 2
      %s335 = sadd.s32 %s333, %s334
      %s336 = smul.addr %s335, 4
      %s337 = scalar_lea.vmem %s0, %s336
      %p338 = pneg %p56
      %p339 = pneg %p53
      %s340 = smul.u32 2, %s25
      %p341 = scmp.lt.s32.totalorder %s340, 1
      %s342 = scalar_select %p341, %s340, 1
      %s343 = smul.addr %s342, 8
      %s344 = scalar_lea.vmem %s1, %s343
      %p345 = pneg %p82
      %p346 = pneg %p79
      %p347 = pneg %p103
      %p348 = pneg %p100
      %p349 = pneg %p124
      %p350 = pneg %p121
      %p351 = pneg %p145
      %p352 = pneg %p142
      %p353 = pneg %p166
      %p354 = pneg %p163
      %p355 = pneg %p187
      %p356 = pneg %p184
      %p357 = pneg %p208
      %p358 = pneg %p205
      %p359 = pneg %p234
      %p360 = pneg %p231
      %s361 = smul.u32 2, %s25
      %p362 = scmp.lt.s32.totalorder %s361, 1
      %s363 = scalar_select %p362, %s361, 1
      %s364 = smul.addr %s363, 8
      %s365 = scalar_lea.vmem %s8, %s364
      %p366 = pneg %p260
      %p367 = pneg %p257
      %s368 = smul.u32 2, %s25
      %p369 = scmp.lt.s32.totalorder %s368, 1
      %s370 = scalar_select %p369, %s368, 1
      %s371 = smul.addr %s370, 8
      %s372 = scalar_lea.vmem %s9, %s371
      %s373 = smul.u32 4, %s26
      %s374 = smul.u32 2, %s25
      %p375 = scmp.lt.s32.totalorder %s373, 7
      %s376 = scalar_select %p375, %s373, 7
      %p377 = scmp.lt.s32.totalorder %s374, 1
      %s378 = scalar_select %p377, %s374, 1
      %s379 = smul.addr %s376, 2
      %s380 = sadd.s32 %s378, %s379
      %s381 = smul.addr %s380, 4
      %s382 = scalar_lea.vmem %s0, %s381
      %s383 = smul.u32 4, %s26
      %s384 = smul.u32 2, %s25
      %s385 = smul.u32 2, %s25
      %p386 = scmp.lt.s32.totalorder %s385, 1
      %s387 = scalar_select %p386, %s385, 1
      %s388 = smul.addr %s387, 8
      %s389 = scalar_lea.vmem %s1, %s388
      %s390 = smul.u32 2, %s25
      %s391 = smul.u32 2, %s25
      %p392 = scmp.lt.s32.totalorder %s391, 1
      %s393 = scalar_select %p392, %s391, 1
      %s394 = smul.addr %s393, 8
      %s395 = scalar_lea.vmem %s8, %s394
      %s396 = smul.u32 2, %s25
      %s397 = smul.u32 2, %s25
      %p398 = scmp.lt.s32.totalorder %s397, 1
      %s399 = scalar_select %p398, %s397, 1
      %s400 = smul.addr %s399, 8
      %s401 = scalar_lea.vmem %s9, %s400
      %s402 = smul.u32 2, %s25
      %p404 = scmp.eq.s32.totalorder %s26, 0
      // Predicated region
      $region53: #{grunet_forward.3} parent=51 // pred_check
        %p405 = pneg %p404
      $region54: #{grunet_forward.3} parent=51 // pred_check_branch
        %407 = sbr.rel (%p405) target = $region56
      $region55: #{grunet_forward.3} parent=51 // pred_region
        %v408 = vld [vmem:[%s389] sm:$0xff]
        %v409 = vld [vmem:[%s389 + $0x8] sm:$0xff]
        %410 = vst [vmem:[#allocation3] sm:$0xff] %v408
        %411 = vst [vmem:[#allocation3 + $0x8] sm:$0xff] %v409
      $region56: #{grunet_forward.3} parent=51 // pred_fallthru
        _
      %v412 = vld [vmem:[%s382] sm:$0xf]
      %v413 = vld [vmem:[%s382 + $0x4] sm:$0xf]
      %v414 = vld [vmem:[%s382 + $0x8] sm:$0xf]
      %v415 = vld [vmem:[%s382 + $0xc] sm:$0xf]
      %v416 = vld [vmem:[%s382 + $0x10] sm:$0xf]
      %v417 = vld [vmem:[%s382 + $0x14] sm:$0xf]
      %v418 = vld [vmem:[%s382 + $0x18] sm:$0xf]
      %v419 = vld [vmem:[%s382 + $0x1c] sm:$0xf]
      %v420 = vld [vmem:[%s2] sm:$0xff]
      %v421 = vld [vmem:[%s2 + $0x8] sm:$0xf]
      %v422 = vld [vmem:[%s2 + $0xc] sm:$0xff]
      %v423 = vld [vmem:[%s2 + $0x14] sm:$0xf]
      %v424 = vld [vmem:[%s2 + $0x18] sm:$0xff]
      %v425 = vld [vmem:[%s2 + $0x20] sm:$0xf]
      %v426 = vld [vmem:[%s2 + $0x24] sm:$0xff]
      %v427 = vld [vmem:[%s2 + $0x2c] sm:$0xf]
      %v428 = vld [vmem:[%s2 + $0x30] sm:$0xff]
      %v429 = vld [vmem:[%s2 + $0x38] sm:$0xf]
      %v430 = vld [vmem:[%s2 + $0x3c] sm:$0xff]
      %v431 = vld [vmem:[%s2 + $0x44] sm:$0xf]
      %v432 = vld [vmem:[%s2 + $0x48] sm:$0xff]
      %v433 = vld [vmem:[%s2 + $0x50] sm:$0xf]
      %v434 = vld [vmem:[%s2 + $0x54] sm:$0xff]
      %v435 = vld [vmem:[%s2 + $0x5c] sm:$0xf]
      %v436 = vld [vmem:[%s2 + $0x60] sm:$0xff]
      %v437 = vld [vmem:[%s2 + $0x68] sm:$0xf]
      %v438 = vld [vmem:[%s2 + $0x6c] sm:$0xff]
      %v439 = vld [vmem:[%s2 + $0x74] sm:$0xf]
      %v440 = vld [vmem:[%s2 + $0x78] sm:$0xff]
      %v441 = vld [vmem:[%s2 + $0x80] sm:$0xf]
      %v442 = vld [vmem:[%s2 + $0x84] sm:$0xff]
      %v443 = vld [vmem:[%s2 + $0x8c] sm:$0xf]
      %v444 = vld [vmem:[%s2 + $0x90] sm:$0xff]
      %v445 = vld [vmem:[%s2 + $0x98] sm:$0xf]
      %v446 = vld [vmem:[%s2 + $0x9c] sm:$0xff]
      %v447 = vld [vmem:[%s2 + $0xa4] sm:$0xf]
      %v448 = vld [vmem:[%s2 + $0xa8] sm:$0xff]
      %v449 = vld [vmem:[%s2 + $0xb0] sm:$0xf]
      %v450 = vld [vmem:[%s2 + $0xb4] sm:$0xff]
      %v451 = vld [vmem:[%s2 + $0xbc] sm:$0xf]
      %v452 = vld [vmem:[%s4] sm:$0x7]
      %v454 = vlaneseq
      %v455 = vshrl.u32 %v454, 7
      %v456 = vsub.s32 0, %v455
      %v457 = vrot.slane %v452, %v456
      %v458 = vlaneseq
      %v459 = vshrl.u32 %v458, 7
      %v460 = vsub.s32 1, %v459
      %v461 = vrot.slane %v452, %v460
      %v462 = vlaneseq
      %v463 = vshrl.u32 %v462, 7
      %v464 = vsub.s32 2, %v463
      %v465 = vrot.slane %v452, %v464
      %v477 = vunpack.c.l.b16 %v412
      %v478 = vunpack.c.l.b16 %v413
      %v479 = vunpack.c.l.b16 %v414
      %v480 = vunpack.c.l.b16 %v415
      %v481 = vunpack.c.l.b16 %v416
      %v482 = vunpack.c.l.b16 %v417
      %v483 = vunpack.c.l.b16 %v418
      %v484 = vunpack.c.l.b16 %v419
      %v485 = vpack.c.b16 %v478, %v477
      %v486 = vpack.c.b16 %v480, %v479
      %v487 = vpack.c.b16 %v482, %v481
      %v488 = vpack.c.b16 %v484, %v483
      %v525 = vunpack.c.l.b16 %v420
      %v526 = vunpack.c.h.b16 %v420
      %v527 = vunpack.c.l.b16 %v421
      %v528 = vunpack.c.l.b16 %v422
      %v529 = vunpack.c.h.b16 %v422
      %v530 = vunpack.c.l.b16 %v423
      %v531 = vunpack.c.l.b16 %v424
      %v532 = vunpack.c.h.b16 %v424
      %v533 = vunpack.c.l.b16 %v425
      %v534 = vunpack.c.l.b16 %v426
      %v535 = vunpack.c.h.b16 %v426
      %v536 = vunpack.c.l.b16 %v427
      %v537 = vunpack.c.l.b16 %v428
      %v538 = vunpack.c.h.b16 %v428
      %v539 = vunpack.c.l.b16 %v429
      %v540 = vunpack.c.l.b16 %v430
      %v541 = vunpack.c.h.b16 %v430
      %v542 = vunpack.c.l.b16 %v431
      %v543 = vunpack.c.l.b16 %v432
      %v544 = vunpack.c.h.b16 %v432
      %v545 = vunpack.c.l.b16 %v433
      %v546 = vunpack.c.l.b16 %v434
      %v547 = vunpack.c.h.b16 %v434
      %v548 = vunpack.c.l.b16 %v435
      %v549 = vunpack.c.l.b16 %v436
      %v550 = vunpack.c.h.b16 %v436
      %v551 = vunpack.c.l.b16 %v437
      %v552 = vunpack.c.l.b16 %v438
      %v553 = vunpack.c.h.b16 %v438
      %v554 = vunpack.c.l.b16 %v439
      %v555 = vunpack.c.l.b16 %v440
      %v556 = vunpack.c.h.b16 %v440
      %v557 = vunpack.c.l.b16 %v441
      %v558 = vunpack.c.l.b16 %v442
      %v559 = vunpack.c.h.b16 %v442
      %v560 = vunpack.c.l.b16 %v443
      %v561 = vunpack.c.l.b16 %v444
      %v562 = vunpack.c.h.b16 %v444
      %v563 = vunpack.c.l.b16 %v445
      %v564 = vunpack.c.l.b16 %v446
      %v565 = vunpack.c.h.b16 %v446
      %v566 = vunpack.c.l.b16 %v447
      %v567 = vunpack.c.l.b16 %v448
      %v568 = vunpack.c.h.b16 %v448
      %v569 = vunpack.c.l.b16 %v449
      %v570 = vunpack.c.l.b16 %v450
      %v571 = vunpack.c.h.b16 %v450
      %v572 = vunpack.c.l.b16 %v451
      %v573 = vpack.c.b16 %v528, %v525
      %v574 = vpack.c.b16 %v529, %v526
      %v575 = vpack.c.b16 %v530, %v527
      %v576 = vpack.c.b16 %v534, %v531
      %v577 = vpack.c.b16 %v535, %v532
      %v578 = vpack.c.b16 %v536, %v533
      %v579 = vpack.c.b16 %v540, %v537
      %v580 = vpack.c.b16 %v541, %v538
      %v581 = vpack.c.b16 %v542, %v539
      %v582 = vpack.c.b16 %v546, %v543
      %v583 = vpack.c.b16 %v547, %v544
      %v584 = vpack.c.b16 %v548, %v545
      %v585 = vpack.c.b16 %v552, %v549
      %v586 = vpack.c.b16 %v553, %v550
      %v587 = vpack.c.b16 %v554, %v551
      %v588 = vpack.c.b16 %v558, %v555
      %v589 = vpack.c.b16 %v559, %v556
      %v590 = vpack.c.b16 %v560, %v557
      %v591 = vpack.c.b16 %v564, %v561
      %v592 = vpack.c.b16 %v565, %v562
      %v593 = vpack.c.b16 %v566, %v563
      %v594 = vpack.c.b16 %v570, %v567
      %v595 = vpack.c.b16 %v571, %v568
      %v596 = vpack.c.b16 %v572, %v569
      %621 = vmatprep.subr.bf16.mxu0 %v574
      %622 = vmatpush1.bf16.msra.mxu0 %v573
      %623 = vmatprep.subr.bf16.mxu0 %v577
      %624 = vmatpush1.bf16.msra.mxu0 %v576
      %625 = vmatprep.subr.bf16.mxu0 %v580
      %626 = vmatpush1.bf16.msra.mxu0 %v579
      %627 = vmatprep.subr.bf16.mxu0 %v583
      %628 = vmatpush1.bf16.msra.mxu0 %v582
      %629 = vmatprep.subr.bf16.mxu0 %v586
      %630 = vmatpush1.bf16.msra.mxu0 %v585
      %631 = vmatprep.subr.bf16.mxu0 %v589
      %632 = vmatpush1.bf16.msra.mxu0 %v588
      %633 = vmatprep.subr.bf16.mxu0 %v592
      %634 = vmatpush1.bf16.msra.mxu0 %v591
      %635 = vmatprep.subr.bf16.mxu0 %v595
      %636 = vmatpush1.bf16.msra.mxu0 %v594
      %637 = vmatprep.subr.bf16.mxu0 0
      %638 = vmatpush1.bf16.msra.mxu0 0
      %639 = vmatprep.subr.bf16.mxu0 0
      %640 = vmatpush1.bf16.msra.mxu0 0
      %641 = vmatprep.subr.bf16.mxu0 0
      %642 = vmatpush1.bf16.msra.mxu0 0
      %643 = vmatprep.subr.bf16.mxu0 0
      %644 = vmatpush1.bf16.msra.mxu0 0
      %645 = vmatprep.subr.bf16.mxu0 0
      %646 = vmatpush1.bf16.msra.mxu0 0
      %647 = vmatprep.subr.bf16.mxu0 0
      %648 = vmatpush1.bf16.msra.mxu0 0
      %649 = vmatprep.subr.bf16.mxu0 0
      %650 = vmatpush1.bf16.msra.mxu0 0
      %651 = vmatprep.subr.bf16.mxu0 0
      %652 = vmatpush1.bf16.msra.mxu0 0
      %653 = vmatprep.mubr.bf16.mxu0 0
      %654 = vmatmul.mubr.bf16.gmra.mrb[0].mxu0 %v485
      %v655 = vpop.f32.mrb[0].mxu0
      %v656 = vadd.f32 %v457, %v655
      %v657 = vpop.f32.mrb[0].mxu0
      %v658 = vadd.f32 %v461, %v657
      %v659 = vpop.f32.mrb[0].mxu0
      %v660 = vadd.f32 %v457, %v659
      %v661 = vpop.f32.mrb[0].mxu0
      %v662 = vadd.f32 %v461, %v661
      %663 = vmatprep.mubr.bf16.mxu0 0
      %664 = vmatmul.mubr.bf16.gmra.mrb[0].mxu0 %v486
      %v665 = vpop.f32.mrb[0].mxu0
      %v666 = vadd.f32 %v457, %v665
      %v667 = vpop.f32.mrb[0].mxu0
      %v668 = vadd.f32 %v461, %v667
      %v669 = vpop.f32.mrb[0].mxu0
      %v670 = vadd.f32 %v457, %v669
      %v671 = vpop.f32.mrb[0].mxu0
      %v672 = vadd.f32 %v461, %v671
      %673 = vmatprep.mubr.bf16.mxu0 0
      %674 = vmatmul.mubr.bf16.gmra.mrb[0].mxu0 %v487
      %v675 = vpop.f32.mrb[0].mxu0
      %v676 = vadd.f32 %v457, %v675
      %v677 = vpop.f32.mrb[0].mxu0
      %v678 = vadd.f32 %v461, %v677
      %v679 = vpop.f32.mrb[0].mxu0
      %v680 = vadd.f32 %v457, %v679
      %v681 = vpop.f32.mrb[0].mxu0
      %v682 = vadd.f32 %v461, %v681
      %683 = vmatprep.mubr.bf16.mxu0 0
      %684 = vmatmul.mubr.bf16.gmra.mrb[0].mxu0 %v488
      %v685 = vpop.f32.mrb[0].mxu0
      %v686 = vadd.f32 %v457, %v685
      %v687 = vpop.f32.mrb[0].mxu0
      %v688 = vadd.f32 %v461, %v687
      %v689 = vpop.f32.mrb[0].mxu0
      %v690 = vadd.f32 %v457, %v689
      %v691 = vpop.f32.mrb[0].mxu0
      %v692 = vadd.f32 %v461, %v691
      %693 = vdwg.mxu0
      %694 = vmatprep.subr.bf16.mxu0 0
      %695 = vmatpush1.bf16.msra.mxu0 %v575
      %696 = vmatprep.subr.bf16.mxu0 0
      %697 = vmatpush1.bf16.msra.mxu0 %v578
      %698 = vmatprep.subr.bf16.mxu0 0
      %699 = vmatpush1.bf16.msra.mxu0 %v581
      %700 = vmatprep.subr.bf16.mxu0 0
      %701 = vmatpush1.bf16.msra.mxu0 %v584
      %702 = vmatprep.subr.bf16.mxu0 0
      %703 = vmatpush1.bf16.msra.mxu0 %v587
      %704 = vmatprep.subr.bf16.mxu0 0
      %705 = vmatpush1.bf16.msra.mxu0 %v590
      %706 = vmatprep.subr.bf16.mxu0 0
      %707 = vmatpush1.bf16.msra.mxu0 %v593
      %708 = vmatprep.subr.bf16.mxu0 0
      %709 = vmatpush1.bf16.msra.mxu0 %v596
      %710 = vmatprep.subr.bf16.mxu0 0
      %711 = vmatpush1.bf16.msra.mxu0 0
      %712 = vmatprep.subr.bf16.mxu0 0
      %713 = vmatpush1.bf16.msra.mxu0 0
      %714 = vmatprep.subr.bf16.mxu0 0
      %715 = vmatpush1.bf16.msra.mxu0 0
      %716 = vmatprep.subr.bf16.mxu0 0
      %717 = vmatpush1.bf16.msra.mxu0 0
      %718 = vmatprep.subr.bf16.mxu0 0
      %719 = vmatpush1.bf16.msra.mxu0 0
      %720 = vmatprep.subr.bf16.mxu0 0
      %721 = vmatpush1.bf16.msra.mxu0 0
      %722 = vmatprep.subr.bf16.mxu0 0
      %723 = vmatpush1.bf16.msra.mxu0 0
      %724 = vmatprep.subr.bf16.mxu0 0
      %725 = vmatpush1.bf16.msra.mxu0 0
      %726 = vmatprep.mubr.bf16.mxu0 0
      %727 = vmatmul.mubr.bf16.gmra.mrb[0].mxu0 %v485
      %v728 = vpop.f32.mrb[0].mxu0
      %v729 = vadd.f32 %v465, %v728
      %v730 = vpop.f32.mrb[0].mxu0
      %v731 = vpop.f32.mrb[0].mxu0
      %v732 = vadd.f32 %v465, %v731
      %v733 = vpop.f32.mrb[0].mxu0
      %734 = vmatprep.mubr.bf16.mxu0 0
      %735 = vmatmul.mubr.bf16.gmra.mrb[0].mxu0 %v486
      %v736 = vpop.f32.mrb[0].mxu0
      %v737 = vadd.f32 %v465, %v736
      %v738 = vpop.f32.mrb[0].mxu0
      %v739 = vpop.f32.mrb[0].mxu0
      %v740 = vadd.f32 %v465, %v739
      %v741 = vpop.f32.mrb[0].mxu0
      %742 = vmatprep.mubr.bf16.mxu0 0
      %743 = vmatmul.mubr.bf16.gmra.mrb[0].mxu0 %v487
      %v744 = vpop.f32.mrb[0].mxu0
      %v745 = vadd.f32 %v465, %v744
      %v746 = vpop.f32.mrb[0].mxu0
      %v747 = vpop.f32.mrb[0].mxu0
      %v748 = vadd.f32 %v465, %v747
      %v749 = vpop.f32.mrb[0].mxu0
      %750 = vmatprep.mubr.bf16.mxu0 0
      %751 = vmatmul.mubr.bf16.gmra.mrb[0].mxu0 %v488
      %v752 = vpop.f32.mrb[0].mxu0
      %v753 = vadd.f32 %v465, %v752
      %v754 = vpop.f32.mrb[0].mxu0
      %v755 = vpop.f32.mrb[0].mxu0
      %v756 = vadd.f32 %v465, %v755
      %v757 = vpop.f32.mrb[0].mxu0
      %758 = vdwg.mxu0
      %759 = vst [vmem:[#allocation2] sm:$0xff] %v656
      %760 = vst [vmem:[#allocation2 + $0x8] sm:$0xff] %v658
      %761 = vst [vmem:[#allocation2 + $0x10] sm:$0xff] %v729
      %762 = vst [vmem:[#allocation2 + $0x18] sm:$0xff] %v660
      %763 = vst [vmem:[#allocation2 + $0x20] sm:$0xff] %v662
      %764 = vst [vmem:[#allocation2 + $0x28] sm:$0xff] %v732
      %765 = vst [vmem:[#allocation2 + $0x30] sm:$0xff] %v666
      %766 = vst [vmem:[#allocation2 + $0x38] sm:$0xff] %v668
      %767 = vst [vmem:[#allocation2 + $0x40] sm:$0xff] %v737
      %768 = vst [vmem:[#allocation2 + $0x48] sm:$0xff] %v670
      %769 = vst [vmem:[#allocation2 + $0x50] sm:$0xff] %v672
      %770 = vst [vmem:[#allocation2 + $0x58] sm:$0xff] %v740
      %771 = vst [vmem:[#allocation2 + $0x60] sm:$0xff] %v676
      %772 = vst [vmem:[#allocation2 + $0x68] sm:$0xff] %v678
      %773 = vst [vmem:[#allocation2 + $0x70] sm:$0xff] %v745
      %774 = vst [vmem:[#allocation2 + $0x78] sm:$0xff] %v680
      %775 = vst [vmem:[#allocation2 + $0x80] sm:$0xff] %v682
      %776 = vst [vmem:[#allocation2 + $0x88] sm:$0xff] %v748
      %777 = vst [vmem:[#allocation2 + $0x90] sm:$0xff] %v686
      %778 = vst [vmem:[#allocation2 + $0x98] sm:$0xff] %v688
      %779 = vst [vmem:[#allocation2 + $0xa0] sm:$0xff] %v753
      %780 = vst [vmem:[#allocation2 + $0xa8] sm:$0xff] %v690
      %781 = vst [vmem:[#allocation2 + $0xb0] sm:$0xff] %v692
      %782 = vst [vmem:[#allocation2 + $0xb8] sm:$0xff] %v756
      %v783 = vld [vmem:[%s3] sm:$0xff]
      %v784 = vld [vmem:[%s3 + $0x8] sm:$0xf]
      %v785 = vld [vmem:[%s3 + $0xc] sm:$0xff]
      %v786 = vld [vmem:[%s3 + $0x14] sm:$0xf]
      %v787 = vld [vmem:[%s3 + $0x18] sm:$0xff]
      %v788 = vld [vmem:[%s3 + $0x20] sm:$0xf]
      %v789 = vld [vmem:[%s3 + $0x24] sm:$0xff]
      %v790 = vld [vmem:[%s3 + $0x2c] sm:$0xf]
      %v791 = vld [vmem:[%s3 + $0x30] sm:$0xff]
      %v792 = vld [vmem:[%s3 + $0x38] sm:$0xf]
      %v793 = vld [vmem:[%s3 + $0x3c] sm:$0xff]
      %v794 = vld [vmem:[%s3 + $0x44] sm:$0xf]
      %v795 = vld [vmem:[%s3 + $0x48] sm:$0xff]
      %v796 = vld [vmem:[%s3 + $0x50] sm:$0xf]
      %v797 = vld [vmem:[%s3 + $0x54] sm:$0xff]
      %v798 = vld [vmem:[%s3 + $0x5c] sm:$0xf]
      %v799 = vld [vmem:[%s3 + $0x60] sm:$0xff]
      %v800 = vld [vmem:[%s3 + $0x68] sm:$0xf]
      %v801 = vld [vmem:[%s3 + $0x6c] sm:$0xff]
      %v802 = vld [vmem:[%s3 + $0x74] sm:$0xf]
      %v803 = vld [vmem:[%s3 + $0x78] sm:$0xff]
      %v804 = vld [vmem:[%s3 + $0x80] sm:$0xf]
      %v805 = vld [vmem:[%s3 + $0x84] sm:$0xff]
      %v806 = vld [vmem:[%s3 + $0x8c] sm:$0xf]
      %v807 = vld [vmem:[%s3 + $0x90] sm:$0xff]
      %v808 = vld [vmem:[%s3 + $0x98] sm:$0xf]
      %v809 = vld [vmem:[%s3 + $0x9c] sm:$0xff]
      %v810 = vld [vmem:[%s3 + $0xa4] sm:$0xf]
      %v811 = vld [vmem:[%s3 + $0xa8] sm:$0xff]
      %v812 = vld [vmem:[%s3 + $0xb0] sm:$0xf]
      %v813 = vld [vmem:[%s3 + $0xb4] sm:$0xff]
      %v814 = vld [vmem:[%s3 + $0xbc] sm:$0xf]
      %v815 = vld [vmem:[%s5] sm:$0x1]
      %v817 = vlaneseq
      %v818 = vshrl.u32 %v817, 7
      %v819 = vsub.s32 0, %v818
      %v820 = vrot.slane %v815, %v819
      %v822 = vld [vmem:[#allocation3] sm:$0xff]
      %v823 = vld [vmem:[#allocation3 + $0x8] sm:$0xff]
      %v824 = vld [vmem:[#allocation2] sm:$0xff]
      %v825 = vld [vmem:[#allocation2 + $0x8] sm:$0xff]
      %v826 = vld [vmem:[#allocation2 + $0x10] sm:$0xff]
      %v827 = vld [vmem:[#allocation2 + $0x18] sm:$0xff]
      %v828 = vld [vmem:[#allocation2 + $0x20] sm:$0xff]
      %v829 = vld [vmem:[#allocation2 + $0x28] sm:$0xff]
      %v830 = vpack.c.bf16 %v823, %v822
      %v863 = vunpack.c.l.b16 %v783
      %v864 = vunpack.c.h.b16 %v783
      %v865 = vunpack.c.l.b16 %v784
      %v866 = vunpack.c.l.b16 %v785
      %v867 = vunpack.c.h.b16 %v785
      %v868 = vunpack.c.l.b16 %v786
      %v869 = vunpack.c.l.b16 %v787
      %v870 = vunpack.c.h.b16 %v787
      %v871 = vunpack.c.l.b16 %v788
      %v872 = vunpack.c.l.b16 %v789
      %v873 = vunpack.c.h.b16 %v789
      %v874 = vunpack.c.l.b16 %v790
      %v875 = vunpack.c.l.b16 %v791
      %v876 = vunpack.c.h.b16 %v791
      %v877 = vunpack.c.l.b16 %v792
      %v878 = vunpack.c.l.b16 %v793
      %v879 = vunpack.c.h.b16 %v793
      %v880 = vunpack.c.l.b16 %v794
      %v881 = vunpack.c.l.b16 %v795
      %v882 = vunpack.c.h.b16 %v795
      %v883 = vunpack.c.l.b16 %v796
      %v884 = vunpack.c.l.b16 %v797
      %v885 = vunpack.c.h.b16 %v797
      %v886 = vunpack.c.l.b16 %v798
      %v887 = vunpack.c.l.b16 %v799
      %v888 = vunpack.c.h.b16 %v799
      %v889 = vunpack.c.l.b16 %v800
      %v890 = vunpack.c.l.b16 %v801
      %v891 = vunpack.c.h.b16 %v801
      %v892 = vunpack.c.l.b16 %v802
      %v893 = vunpack.c.l.b16 %v803
      %v894 = vunpack.c.h.b16 %v803
      %v895 = vunpack.c.l.b16 %v804
      %v896 = vunpack.c.l.b16 %v805
      %v897 = vunpack.c.h.b16 %v805
      %v898 = vunpack.c.l.b16 %v806
      %v899 = vunpack.c.l.b16 %v807
      %v900 = vunpack.c.h.b16 %v807
      %v901 = vunpack.c.l.b16 %v808
      %v902 = vunpack.c.l.b16 %v809
      %v903 = vunpack.c.h.b16 %v809
      %v904 = vunpack.c.l.b16 %v810
      %v905 = vunpack.c.l.b16 %v811
      %v906 = vunpack.c.h.b16 %v811
      %v907 = vunpack.c.l.b16 %v812
      %v908 = vunpack.c.l.b16 %v813
      %v909 = vunpack.c.h.b16 %v813
      %v910 = vunpack.c.l.b16 %v814
      %v911 = vpack.c.b16 %v866, %v863
      %v912 = vpack.c.b16 %v867, %v864
      %v913 = vpack.c.b16 %v868, %v865
      %v914 = vpack.c.b16 %v872, %v869
      %v915 = vpack.c.b16 %v873, %v870
      %v916 = vpack.c.b16 %v874, %v871
      %v917 = vpack.c.b16 %v878, %v875
      %v918 = vpack.c.b16 %v879, %v876
      %v919 = vpack.c.b16 %v880, %v877
      %v920 = vpack.c.b16 %v884, %v881
      %v921 = vpack.c.b16 %v885, %v882
      %v922 = vpack.c.b16 %v886, %v883
      %v923 = vpack.c.b16 %v890, %v887
      %v924 = vpack.c.b16 %v891, %v888
      %v925 = vpack.c.b16 %v892, %v889
      %v926 = vpack.c.b16 %v896, %v893
      %v927 = vpack.c.b16 %v897, %v894
      %v928 = vpack.c.b16 %v898, %v895
      %v929 = vpack.c.b16 %v902, %v899
      %v930 = vpack.c.b16 %v903, %v900
      %v931 = vpack.c.b16 %v904, %v901
      %v932 = vpack.c.b16 %v908, %v905
      %v933 = vpack.c.b16 %v909, %v906
      %v934 = vpack.c.b16 %v910, %v907
      %959 = vmatprep.subr.bf16.mxu0 %v912
      %960 = vmatpush1.bf16.msra.mxu0 %v911
      %961 = vmatprep.subr.bf16.mxu0 %v915
      %962 = vmatpush1.bf16.msra.mxu0 %v914
      %963 = vmatprep.subr.bf16.mxu0 %v918
      %964 = vmatpush1.bf16.msra.mxu0 %v917
      %965 = vmatprep.subr.bf16.mxu0 %v921
      %966 = vmatpush1.bf16.msra.mxu0 %v920
      %967 = vmatprep.subr.bf16.mxu0 %v924
      %968 = vmatpush1.bf16.msra.mxu0 %v923
      %969 = vmatprep.subr.bf16.mxu0 %v927
      %970 = vmatpush1.bf16.msra.mxu0 %v926
      %971 = vmatprep.subr.bf16.mxu0 %v930
      %972 = vmatpush1.bf16.msra.mxu0 %v929
      %973 = vmatprep.subr.bf16.mxu0 %v933
      %974 = vmatpush1.bf16.msra.mxu0 %v932
      %975 = vmatprep.subr.bf16.mxu0 0
      %976 = vmatpush1.bf16.msra.mxu0 0
      %977 = vmatprep.subr.bf16.mxu0 0
      %978 = vmatpush1.bf16.msra.mxu0 0
      %979 = vmatprep.subr.bf16.mxu0 0
      %980 = vmatpush1.bf16.msra.mxu0 0
      %981 = vmatprep.subr.bf16.mxu0 0
      %982 = vmatpush1.bf16.msra.mxu0 0
      %983 = vmatprep.subr.bf16.mxu0 0
      %984 = vmatpush1.bf16.msra.mxu0 0
      %985 = vmatprep.subr.bf16.mxu0 0
      %986 = vmatpush1.bf16.msra.mxu0 0
      %987 = vmatprep.subr.bf16.mxu0 0
      %988 = vmatpush1.bf16.msra.mxu0 0
      %989 = vmatprep.subr.bf16.mxu0 0
      %990 = vmatpush1.bf16.msra.mxu0 0
      %991 = vmatprep.mubr.bf16.mxu0 0
      %992 = vmatmul.mubr.bf16.gmra.mrb[0].mxu0 %v830
      %v993 = vpop.f32.mrb[0].mxu0
      %v994 = vadd.f32 0.0, %v993
      %v995 = vpop.f32.mrb[0].mxu0
      %v996 = vadd.f32 0.0, %v995
      %v997 = vpop.f32.mrb[0].mxu0
      %v998 = vadd.f32 0.0, %v997
      %v999 = vpop.f32.mrb[0].mxu0
      %v1000 = vadd.f32 0.0, %v999
      %1001 = vdwg.mxu0
      %1002 = vmatprep.subr.bf16.mxu0 0
      %1003 = vmatpush1.bf16.msra.mxu0 %v913
      %1004 = vmatprep.subr.bf16.mxu0 0
      %1005 = vmatpush1.bf16.msra.mxu0 %v916
      %1006 = vmatprep.subr.bf16.mxu0 0
      %1007 = vmatpush1.bf16.msra.mxu0 %v919
      %1008 = vmatprep.subr.bf16.mxu0 0
      %1009 = vmatpush1.bf16.msra.mxu0 %v922
      %1010 = vmatprep.subr.bf16.mxu0 0
      %1011 = vmatpush1.bf16.msra.mxu0 %v925
      %1012 = vmatprep.subr.bf16.mxu0 0
      %1013 = vmatpush1.bf16.msra.mxu0 %v928
      %1014 = vmatprep.subr.bf16.mxu0 0
      %1015 = vmatpush1.bf16.msra.mxu0 %v931
      %1016 = vmatprep.subr.bf16.mxu0 0
      %1017 = vmatpush1.bf16.msra.mxu0 %v934
      %1018 = vmatprep.subr.bf16.mxu0 0
      %1019 = vmatpush1.bf16.msra.mxu0 0
      %1020 = vmatprep.subr.bf16.mxu0 0
      %1021 = vmatpush1.bf16.msra.mxu0 0
      %1022 = vmatprep.subr.bf16.mxu0 0
      %1023 = vmatpush1.bf16.msra.mxu0 0
      %1024 = vmatprep.subr.bf16.mxu0 0
      %1025 = vmatpush1.bf16.msra.mxu0 0
      %1026 = vmatprep.subr.bf16.mxu0 0
      %1027 = vmatpush1.bf16.msra.mxu0 0
      %1028 = vmatprep.subr.bf16.mxu0 0
      %1029 = vmatpush1.bf16.msra.mxu0 0
      %1030 = vmatprep.subr.bf16.mxu0 0
      %1031 = vmatpush1.bf16.msra.mxu0 0
      %1032 = vmatprep.subr.bf16.mxu0 0
      %1033 = vmatpush1.bf16.msra.mxu0 0
      %1034 = vmatprep.mubr.bf16.mxu0 0
      %1035 = vmatmul.mubr.bf16.gmra.mrb[0].mxu0 %v830
      %v1036 = vpop.f32.mrb[0].mxu0
      %v1037 = vadd.f32 0.0, %v1036
      %v1038 = vpop.f32.mrb[0].mxu0
      %v1039 = vpop.f32.mrb[0].mxu0
      %v1040 = vadd.f32 0.0, %v1039
      %v1041 = vpop.f32.mrb[0].mxu0
      %1042 = vdwg.mxu0
      %v1043 = vadd.f32 %v824, %v994
      %v1044 = vadd.f32 %v827, %v998
      %v1045 = vxor.u32 %v1043, 2147483648
      %v1046 = vxor.u32 %v1044, 2147483648
      %v1047 = vmul.f32 %v1045, 1.442695
      %v1048 = vpow.pop %v1047
      %v1049 = vmul.f32 %v1046, 1.442695
      %v1050 = vpow.pop %v1049
      %v1051 = vadd.f32 %v1048, 1.0
      %v1052 = vadd.f32 %v1050, 1.0
      %v1053 = vrcp.pop %v1051
      %v1054 = vmul.f32 1.0, %v1053
      %v1055 = vrcp.pop %v1052
      %v1056 = vmul.f32 1.0, %v1055
      %v1057 = vadd.f32 %v825, %v996
      %v1058 = vadd.f32 %v828, %v1000
      %v1059 = vxor.u32 %v1057, 2147483648
      %v1060 = vxor.u32 %v1058, 2147483648
      %v1061 = vmul.f32 %v1059, 1.442695
      %v1062 = vpow.pop %v1061
      %v1063 = vmul.f32 %v1060, 1.442695
      %v1064 = vpow.pop %v1063
      %v1065 = vadd.f32 %v1062, 1.0
      %v1066 = vadd.f32 %v1064, 1.0
      %v1067 = vrcp.pop %v1065
      %v1068 = vmul.f32 1.0, %v1067
      %v1069 = vrcp.pop %v1066
      %v1070 = vmul.f32 1.0, %v1069
      %v1071 = vadd.f32 %v1037, %v820
      %v1072 = vadd.f32 %v1040, %v820
      %v1073 = vmul.f32 %v1054, %v1071
      %v1074 = vmul.f32 %v1056, %v1072
      %v1075 = vadd.f32 %v826, %v1073
      %v1076 = vadd.f32 %v829, %v1074
      %v1077 = vtanh.pop %v1075
      %v1078 = vtanh.pop %v1076
      %v1079 = vsub.f32 1.0, %v1068
      %v1080 = vsub.f32 1.0, %v1070
      %v1081 = vmul.f32 %v1079, %v1077
      %v1082 = vmul.f32 %v1080, %v1078
      %v1083 = vmul.f32 %v1068, %v822
      %v1084 = vmul.f32 %v1070, %v823
      %v1085 = vadd.f32 %v1081, %v1083
      %v1086 = vadd.f32 %v1082, %v1084
      %s1087 = scalar_lea.vmem [#allocation2], 48
      %v1088 = vld [vmem:[%s1087] sm:$0xff]
      %v1089 = vld [vmem:[%s1087 + $0x8] sm:$0xff]
      %v1090 = vld [vmem:[%s1087 + $0x10] sm:$0xff]
      %v1091 = vld [vmem:[%s1087 + $0x18] sm:$0xff]
      %v1092 = vld [vmem:[%s1087 + $0x20] sm:$0xff]
      %v1093 = vld [vmem:[%s1087 + $0x28] sm:$0xff]
      %v1094 = vpack.c.bf16 %v1086, %v1085
      %1095 = vmatprep.subr.bf16.mxu0 %v912
      %1096 = vmatpush1.bf16.msra.mxu0 %v911
      %1097 = vmatprep.subr.bf16.mxu0 %v915
      %1098 = vmatpush1.bf16.msra.mxu0 %v914
      %1099 = vmatprep.subr.bf16.mxu0 %v918
      %1100 = vmatpush1.bf16.msra.mxu0 %v917
      %1101 = vmatprep.subr.bf16.mxu0 %v921
      %1102 = vmatpush1.bf16.msra.mxu0 %v920
      %1103 = vmatprep.subr.bf16.mxu0 %v924
      %1104 = vmatpush1.bf16.msra.mxu0 %v923
      %1105 = vmatprep.subr.bf16.mxu0 %v927
      %1106 = vmatpush1.bf16.msra.mxu0 %v926
      %1107 = vmatprep.subr.bf16.mxu0 %v930
      %1108 = vmatpush1.bf16.msra.mxu0 %v929
      %1109 = vmatprep.subr.bf16.mxu0 %v933
      %1110 = vmatpush1.bf16.msra.mxu0 %v932
      %1111 = vmatprep.subr.bf16.mxu0 0
      %1112 = vmatpush1.bf16.msra.mxu0 0
      %1113 = vmatprep.subr.bf16.mxu0 0
      %1114 = vmatpush1.bf16.msra.mxu0 0
      %1115 = vmatprep.subr.bf16.mxu0 0
      %1116 = vmatpush1.bf16.msra.mxu0 0
      %1117 = vmatprep.subr.bf16.mxu0 0
      %1118 = vmatpush1.bf16.msra.mxu0 0
      %1119 = vmatprep.subr.bf16.mxu0 0
      %1120 = vmatpush1.bf16.msra.mxu0 0
      %1121 = vmatprep.subr.bf16.mxu0 0
      %1122 = vmatpush1.bf16.msra.mxu0 0
      %1123 = vmatprep.subr.bf16.mxu0 0
      %1124 = vmatpush1.bf16.msra.mxu0 0
      %1125 = vmatprep.subr.bf16.mxu0 0
      %1126 = vmatpush1.bf16.msra.mxu0 0
      %1127 = vmatprep.mubr.bf16.mxu0 0
      %1128 = vmatmul.mubr.bf16.gmra.mrb[0].mxu0 %v1094
      %v1129 = vpop.f32.mrb[0].mxu0
      %v1130 = vadd.f32 0.0, %v1129
      %v1131 = vpop.f32.mrb[0].mxu0
      %v1132 = vadd.f32 0.0, %v1131
      %v1133 = vpop.f32.mrb[0].mxu0
      %v1134 = vadd.f32 0.0, %v1133
      %v1135 = vpop.f32.mrb[0].mxu0
      %v1136 = vadd.f32 0.0, %v1135
      %1137 = vdwg.mxu0
      %1138 = vmatprep.subr.bf16.mxu0 0
      %1139 = vmatpush1.bf16.msra.mxu0 %v913
      %1140 = vmatprep.subr.bf16.mxu0 0
      %1141 = vmatpush1.bf16.msra.mxu0 %v916
      %1142 = vmatprep.subr.bf16.mxu0 0
      %1143 = vmatpush1.bf16.msra.mxu0 %v919
      %1144 = vmatprep.subr.bf16.mxu0 0
      %1145 = vmatpush1.bf16.msra.mxu0 %v922
      %1146 = vmatprep.subr.bf16.mxu0 0
      %1147 = vmatpush1.bf16.msra.mxu0 %v925
      %1148 = vmatprep.subr.bf16.mxu0 0
      %1149 = vmatpush1.bf16.msra.mxu0 %v928
      %1150 = vmatprep.subr.bf16.mxu0 0
      %1151 = vmatpush1.bf16.msra.mxu0 %v931
      %1152 = vmatprep.subr.bf16.mxu0 0
      %1153 = vmatpush1.bf16.msra.mxu0 %v934
      %1154 = vmatprep.subr.bf16.mxu0 0
      %1155 = vmatpush1.bf16.msra.mxu0 0
      %1156 = vmatprep.subr.bf16.mxu0 0
      %1157 = vmatpush1.bf16.msra.mxu0 0
      %1158 = vmatprep.subr.bf16.mxu0 0
      %1159 = vmatpush1.bf16.msra.mxu0 0
      %1160 = vmatprep.subr.bf16.mxu0 0
      %1161 = vmatpush1.bf16.msra.mxu0 0
      %1162 = vmatprep.subr.bf16.mxu0 0
      %1163 = vmatpush1.bf16.msra.mxu0 0
      %1164 = vmatprep.subr.bf16.mxu0 0
      %1165 = vmatpush1.bf16.msra.mxu0 0
      %1166 = vmatprep.subr.bf16.mxu0 0
      %1167 = vmatpush1.bf16.msra.mxu0 0
      %1168 = vmatprep.subr.bf16.mxu0 0
      %1169 = vmatpush1.bf16.msra.mxu0 0
      %1170 = vmatprep.mubr.bf16.mxu0 0
      %1171 = vmatmul.mubr.bf16.gmra.mrb[0].mxu0 %v1094
      %v1172 = vpop.f32.mrb[0].mxu0
      %v1173 = vadd.f32 0.0, %v1172
      %v1174 = vpop.f32.mrb[0].mxu0
      %v1175 = vpop.f32.mrb[0].mxu0
      %v1176 = vadd.f32 0.0, %v1175
      %v1177 = vpop.f32.mrb[0].mxu0
      %1178 = vdwg.mxu0
      %v1179 = vadd.f32 %v1088, %v1130
      %v1180 = vadd.f32 %v1091, %v1134
      %v1181 = vxor.u32 %v1179, 2147483648
      %v1182 = vxor.u32 %v1180, 2147483648
      %v1183 = vmul.f32 %v1181, 1.442695
      %v1184 = vpow.pop %v1183
      %v1185 = vmul.f32 %v1182, 1.442695
      %v1186 = vpow.pop %v1185
      %v1187 = vadd.f32 %v1184, 1.0
      %v1188 = vadd.f32 %v1186, 1.0
      %v1189 = vrcp.pop %v1187
      %v1190 = vmul.f32 1.0, %v1189
      %v1191 = vrcp.pop %v1188
      %v1192 = vmul.f32 1.0, %v1191
      %v1193 = vadd.f32 %v1089, %v1132
      %v1194 = vadd.f32 %v1092, %v1136
      %v1195 = vxor.u32 %v1193, 2147483648
      %v1196 = vxor.u32 %v1194, 2147483648
      %v1197 = vmul.f32 %v1195, 1.442695
      %v1198 = vpow.pop %v1197
      %v1199 = vmul.f32 %v1196, 1.442695
      %v1200 = vpow.pop %v1199
      %v1201 = vadd.f32 %v1198, 1.0
      %v1202 = vadd.f32 %v1200, 1.0
      %v1203 = vrcp.pop %v1201
      %v1204 = vmul.f32 1.0, %v1203
      %v1205 = vrcp.pop %v1202
      %v1206 = vmul.f32 1.0, %v1205
      %v1207 = vadd.f32 %v1173, %v820
      %v1208 = vadd.f32 %v1176, %v820
      %v1209 = vmul.f32 %v1190, %v1207
      %v1210 = vmul.f32 %v1192, %v1208
      %v1211 = vadd.f32 %v1090, %v1209
      %v1212 = vadd.f32 %v1093, %v1210
      %v1213 = vtanh.pop %v1211
      %v1214 = vtanh.pop %v1212
      %v1215 = vsub.f32 1.0, %v1204
      %v1216 = vsub.f32 1.0, %v1206
      %v1217 = vmul.f32 %v1215, %v1213
      %v1218 = vmul.f32 %v1216, %v1214
      %v1219 = vmul.f32 %v1204, %v1085
      %v1220 = vmul.f32 %v1206, %v1086
      %v1221 = vadd.f32 %v1217, %v1219
      %v1222 = vadd.f32 %v1218, %v1220
      %s1223 = scalar_lea.vmem [#allocation2], 96
      %v1224 = vld [vmem:[%s1223] sm:$0xff]
      %v1225 = vld [vmem:[%s1223 + $0x8] sm:$0xff]
      %v1226 = vld [vmem:[%s1223 + $0x10] sm:$0xff]
      %v1227 = vld [vmem:[%s1223 + $0x18] sm:$0xff]
      %v1228 = vld [vmem:[%s1223 + $0x20] sm:$0xff]
      %v1229 = vld [vmem:[%s1223 + $0x28] sm:$0xff]
      %v1230 = vpack.c.bf16 %v1222, %v1221
      %1231 = vmatprep.subr.bf16.mxu0 %v912
      %1232 = vmatpush1.bf16.msra.mxu0 %v911
      %1233 = vmatprep.subr.bf16.mxu0 %v915
      %1234 = vmatpush1.bf16.msra.mxu0 %v914
      %1235 = vmatprep.subr.bf16.mxu0 %v918
      %1236 = vmatpush1.bf16.msra.mxu0 %v917
      %1237 = vmatprep.subr.bf16.mxu0 %v921
      %1238 = vmatpush1.bf16.msra.mxu0 %v920
      %1239 = vmatprep.subr.bf16.mxu0 %v924
      %1240 = vmatpush1.bf16.msra.mxu0 %v923
      %1241 = vmatprep.subr.bf16.mxu0 %v927
      %1242 = vmatpush1.bf16.msra.mxu0 %v926
      %1243 = vmatprep.subr.bf16.mxu0 %v930
      %1244 = vmatpush1.bf16.msra.mxu0 %v929
      %1245 = vmatprep.subr.bf16.mxu0 %v933
      %1246 = vmatpush1.bf16.msra.mxu0 %v932
      %1247 = vmatprep.subr.bf16.mxu0 0
      %1248 = vmatpush1.bf16.msra.mxu0 0
      %1249 = vmatprep.subr.bf16.mxu0 0
      %1250 = vmatpush1.bf16.msra.mxu0 0
      %1251 = vmatprep.subr.bf16.mxu0 0
      %1252 = vmatpush1.bf16.msra.mxu0 0
      %1253 = vmatprep.subr.bf16.mxu0 0
      %1254 = vmatpush1.bf16.msra.mxu0 0
      %1255 = vmatprep.subr.bf16.mxu0 0
      %1256 = vmatpush1.bf16.msra.mxu0 0
      %1257 = vmatprep.subr.bf16.mxu0 0
      %1258 = vmatpush1.bf16.msra.mxu0 0
      %1259 = vmatprep.subr.bf16.mxu0 0
      %1260 = vmatpush1.bf16.msra.mxu0 0
      %1261 = vmatprep.subr.bf16.mxu0 0
      %1262 = vmatpush1.bf16.msra.mxu0 0
      %1263 = vmatprep.mubr.bf16.mxu0 0
      %1264 = vmatmul.mubr.bf16.gmra.mrb[0].mxu0 %v1230
      %v1265 = vpop.f32.mrb[0].mxu0
      %v1266 = vadd.f32 0.0, %v1265
      %v1267 = vpop.f32.mrb[0].mxu0
      %v1268 = vadd.f32 0.0, %v1267
      %v1269 = vpop.f32.mrb[0].mxu0
      %v1270 = vadd.f32 0.0, %v1269
      %v1271 = vpop.f32.mrb[0].mxu0
      %v1272 = vadd.f32 0.0, %v1271
      %1273 = vdwg.mxu0
      %1274 = vmatprep.subr.bf16.mxu0 0
      %1275 = vmatpush1.bf16.msra.mxu0 %v913
      %1276 = vmatprep.subr.bf16.mxu0 0
      %1277 = vmatpush1.bf16.msra.mxu0 %v916
      %1278 = vmatprep.subr.bf16.mxu0 0
      %1279 = vmatpush1.bf16.msra.mxu0 %v919
      %1280 = vmatprep.subr.bf16.mxu0 0
      %1281 = vmatpush1.bf16.msra.mxu0 %v922
      %1282 = vmatprep.subr.bf16.mxu0 0
      %1283 = vmatpush1.bf16.msra.mxu0 %v925
      %1284 = vmatprep.subr.bf16.mxu0 0
      %1285 = vmatpush1.bf16.msra.mxu0 %v928
      %1286 = vmatprep.subr.bf16.mxu0 0
      %1287 = vmatpush1.bf16.msra.mxu0 %v931
      %1288 = vmatprep.subr.bf16.mxu0 0
      %1289 = vmatpush1.bf16.msra.mxu0 %v934
      %1290 = vmatprep.subr.bf16.mxu0 0
      %1291 = vmatpush1.bf16.msra.mxu0 0
      %1292 = vmatprep.subr.bf16.mxu0 0
      %1293 = vmatpush1.bf16.msra.mxu0 0
      %1294 = vmatprep.subr.bf16.mxu0 0
      %1295 = vmatpush1.bf16.msra.mxu0 0
      %1296 = vmatprep.subr.bf16.mxu0 0
      %1297 = vmatpush1.bf16.msra.mxu0 0
      %1298 = vmatprep.subr.bf16.mxu0 0
      %1299 = vmatpush1.bf16.msra.mxu0 0
      %1300 = vmatprep.subr.bf16.mxu0 0
      %1301 = vmatpush1.bf16.msra.mxu0 0
      %1302 = vmatprep.subr.bf16.mxu0 0
      %1303 = vmatpush1.bf16.msra.mxu0 0
      %1304 = vmatprep.subr.bf16.mxu0 0
      %1305 = vmatpush1.bf16.msra.mxu0 0
      %1306 = vmatprep.mubr.bf16.mxu0 0
      %1307 = vmatmul.mubr.bf16.gmra.mrb[0].mxu0 %v1230
      %v1308 = vpop.f32.mrb[0].mxu0
      %v1309 = vadd.f32 0.0, %v1308
      %v1310 = vpop.f32.mrb[0].mxu0
      %v1311 = vpop.f32.mrb[0].mxu0
      %v1312 = vadd.f32 0.0, %v1311
      %v1313 = vpop.f32.mrb[0].mxu0
      %1314 = vdwg.mxu0
      %v1315 = vadd.f32 %v1224, %v1266
      %v1316 = vadd.f32 %v1227, %v1270
      %v1317 = vxor.u32 %v1315, 2147483648
      %v1318 = vxor.u32 %v1316, 2147483648
      %v1319 = vmul.f32 %v1317, 1.442695
      %v1320 = vpow.pop %v1319
      %v1321 = vmul.f32 %v1318, 1.442695
      %v1322 = vpow.pop %v1321
      %v1323 = vadd.f32 %v1320, 1.0
      %v1324 = vadd.f32 %v1322, 1.0
      %v1325 = vrcp.pop %v1323
      %v1326 = vmul.f32 1.0, %v1325
      %v1327 = vrcp.pop %v1324
      %v1328 = vmul.f32 1.0, %v1327
      %v1329 = vadd.f32 %v1225, %v1268
      %v1330 = vadd.f32 %v1228, %v1272
      %v1331 = vxor.u32 %v1329, 2147483648
      %v1332 = vxor.u32 %v1330, 2147483648
      %v1333 = vmul.f32 %v1331, 1.442695
      %v1334 = vpow.pop %v1333
      %v1335 = vmul.f32 %v1332, 1.442695
      %v1336 = vpow.pop %v1335
      %v1337 = vadd.f32 %v1334, 1.0
      %v1338 = vadd.f32 %v1336, 1.0
      %v1339 = vrcp.pop %v1337
      %v1340 = vmul.f32 1.0, %v1339
      %v1341 = vrcp.pop %v1338
      %v1342 = vmul.f32 1.0, %v1341
      %v1343 = vadd.f32 %v1309, %v820
      %v1344 = vadd.f32 %v1312, %v820
      %v1345 = vmul.f32 %v1326, %v1343
      %v1346 = vmul.f32 %v1328, %v1344
      %v1347 = vadd.f32 %v1226, %v1345
      %v1348 = vadd.f32 %v1229, %v1346
      %v1349 = vtanh.pop %v1347
      %v1350 = vtanh.pop %v1348
      %v1351 = vsub.f32 1.0, %v1340
      %v1352 = vsub.f32 1.0, %v1342
      %v1353 = vmul.f32 %v1351, %v1349
      %v1354 = vmul.f32 %v1352, %v1350
      %v1355 = vmul.f32 %v1340, %v1221
      %v1356 = vmul.f32 %v1342, %v1222
      %v1357 = vadd.f32 %v1353, %v1355
      %v1358 = vadd.f32 %v1354, %v1356
      %s1359 = scalar_lea.vmem [#allocation2], 144
      %v1360 = vld [vmem:[%s1359] sm:$0xff]
      %v1361 = vld [vmem:[%s1359 + $0x8] sm:$0xff]
      %v1362 = vld [vmem:[%s1359 + $0x10] sm:$0xff]
      %v1363 = vld [vmem:[%s1359 + $0x18] sm:$0xff]
      %v1364 = vld [vmem:[%s1359 + $0x20] sm:$0xff]
      %v1365 = vld [vmem:[%s1359 + $0x28] sm:$0xff]
      %v1366 = vpack.c.bf16 %v1358, %v1357
      %1367 = vmatprep.subr.bf16.mxu0 %v912
      %1368 = vmatpush1.bf16.msra.mxu0 %v911
      %1369 = vmatprep.subr.bf16.mxu0 %v915
      %1370 = vmatpush1.bf16.msra.mxu0 %v914
      %1371 = vmatprep.subr.bf16.mxu0 %v918
      %1372 = vmatpush1.bf16.msra.mxu0 %v917
      %1373 = vmatprep.subr.bf16.mxu0 %v921
      %1374 = vmatpush1.bf16.msra.mxu0 %v920
      %1375 = vmatprep.subr.bf16.mxu0 %v924
      %1376 = vmatpush1.bf16.msra.mxu0 %v923
      %1377 = vmatprep.subr.bf16.mxu0 %v927
      %1378 = vmatpush1.bf16.msra.mxu0 %v926
      %1379 = vmatprep.subr.bf16.mxu0 %v930
      %1380 = vmatpush1.bf16.msra.mxu0 %v929
      %1381 = vmatprep.subr.bf16.mxu0 %v933
      %1382 = vmatpush1.bf16.msra.mxu0 %v932
      %1383 = vmatprep.subr.bf16.mxu0 0
      %1384 = vmatpush1.bf16.msra.mxu0 0
      %1385 = vmatprep.subr.bf16.mxu0 0
      %1386 = vmatpush1.bf16.msra.mxu0 0
      %1387 = vmatprep.subr.bf16.mxu0 0
      %1388 = vmatpush1.bf16.msra.mxu0 0
      %1389 = vmatprep.subr.bf16.mxu0 0
      %1390 = vmatpush1.bf16.msra.mxu0 0
      %1391 = vmatprep.subr.bf16.mxu0 0
      %1392 = vmatpush1.bf16.msra.mxu0 0
      %1393 = vmatprep.subr.bf16.mxu0 0
      %1394 = vmatpush1.bf16.msra.mxu0 0
      %1395 = vmatprep.subr.bf16.mxu0 0
      %1396 = vmatpush1.bf16.msra.mxu0 0
      %1397 = vmatprep.subr.bf16.mxu0 0
      %1398 = vmatpush1.bf16.msra.mxu0 0
      %1399 = vmatprep.mubr.bf16.mxu0 0
      %1400 = vmatmul.mubr.bf16.gmra.mrb[0].mxu0 %v1366
      %v1401 = vpop.f32.mrb[0].mxu0
      %v1402 = vadd.f32 0.0, %v1401
      %v1403 = vpop.f32.mrb[0].mxu0
      %v1404 = vadd.f32 0.0, %v1403
      %v1405 = vpop.f32.mrb[0].mxu0
      %v1406 = vadd.f32 0.0, %v1405
      %v1407 = vpop.f32.mrb[0].mxu0
      %v1408 = vadd.f32 0.0, %v1407
      %1409 = vdwg.mxu0
      %1410 = vmatprep.subr.bf16.mxu0 0
      %1411 = vmatpush1.bf16.msra.mxu0 %v913
      %1412 = vmatprep.subr.bf16.mxu0 0
      %1413 = vmatpush1.bf16.msra.mxu0 %v916
      %1414 = vmatprep.subr.bf16.mxu0 0
      %1415 = vmatpush1.bf16.msra.mxu0 %v919
      %1416 = vmatprep.subr.bf16.mxu0 0
      %1417 = vmatpush1.bf16.msra.mxu0 %v922
      %1418 = vmatprep.subr.bf16.mxu0 0
      %1419 = vmatpush1.bf16.msra.mxu0 %v925
      %1420 = vmatprep.subr.bf16.mxu0 0
      %1421 = vmatpush1.bf16.msra.mxu0 %v928
      %1422 = vmatprep.subr.bf16.mxu0 0
      %1423 = vmatpush1.bf16.msra.mxu0 %v931
      %1424 = vmatprep.subr.bf16.mxu0 0
      %1425 = vmatpush1.bf16.msra.mxu0 %v934
      %1426 = vmatprep.subr.bf16.mxu0 0
      %1427 = vmatpush1.bf16.msra.mxu0 0
      %1428 = vmatprep.subr.bf16.mxu0 0
      %1429 = vmatpush1.bf16.msra.mxu0 0
      %1430 = vmatprep.subr.bf16.mxu0 0
      %1431 = vmatpush1.bf16.msra.mxu0 0
      %1432 = vmatprep.subr.bf16.mxu0 0
      %1433 = vmatpush1.bf16.msra.mxu0 0
      %1434 = vmatprep.subr.bf16.mxu0 0
      %1435 = vmatpush1.bf16.msra.mxu0 0
      %1436 = vmatprep.subr.bf16.mxu0 0
      %1437 = vmatpush1.bf16.msra.mxu0 0
      %1438 = vmatprep.subr.bf16.mxu0 0
      %1439 = vmatpush1.bf16.msra.mxu0 0
      %1440 = vmatprep.subr.bf16.mxu0 0
      %1441 = vmatpush1.bf16.msra.mxu0 0
      %1442 = vmatprep.mubr.bf16.mxu0 0
      %1443 = vmatmul.mubr.bf16.gmra.mrb[0].mxu0 %v1366
      %v1444 = vpop.f32.mrb[0].mxu0
      %v1445 = vadd.f32 0.0, %v1444
      %v1446 = vpop.f32.mrb[0].mxu0
      %v1447 = vpop.f32.mrb[0].mxu0
      %v1448 = vadd.f32 0.0, %v1447
      %v1449 = vpop.f32.mrb[0].mxu0
      %1450 = vdwg.mxu0
      %v1451 = vadd.f32 %v1360, %v1402
      %v1452 = vadd.f32 %v1363, %v1406
      %v1453 = vxor.u32 %v1451, 2147483648
      %v1454 = vxor.u32 %v1452, 2147483648
      %v1455 = vmul.f32 %v1453, 1.442695
      %v1456 = vpow.pop %v1455
      %v1457 = vmul.f32 %v1454, 1.442695
      %v1458 = vpow.pop %v1457
      %v1459 = vadd.f32 %v1456, 1.0
      %v1460 = vadd.f32 %v1458, 1.0
      %v1461 = vrcp.pop %v1459
      %v1462 = vmul.f32 1.0, %v1461
      %v1463 = vrcp.pop %v1460
      %v1464 = vmul.f32 1.0, %v1463
      %v1465 = vadd.f32 %v1361, %v1404
      %v1466 = vadd.f32 %v1364, %v1408
      %v1467 = vxor.u32 %v1465, 2147483648
      %v1468 = vxor.u32 %v1466, 2147483648
      %v1469 = vmul.f32 %v1467, 1.442695
      %v1470 = vpow.pop %v1469
      %v1471 = vmul.f32 %v1468, 1.442695
      %v1472 = vpow.pop %v1471
      %v1473 = vadd.f32 %v1470, 1.0
      %v1474 = vadd.f32 %v1472, 1.0
      %v1475 = vrcp.pop %v1473
      %v1476 = vmul.f32 1.0, %v1475
      %v1477 = vrcp.pop %v1474
      %v1478 = vmul.f32 1.0, %v1477
      %v1479 = vadd.f32 %v1445, %v820
      %v1480 = vadd.f32 %v1448, %v820
      %v1481 = vmul.f32 %v1462, %v1479
      %v1482 = vmul.f32 %v1464, %v1480
      %v1483 = vadd.f32 %v1362, %v1481
      %v1484 = vadd.f32 %v1365, %v1482
      %v1485 = vtanh.pop %v1483
      %v1486 = vtanh.pop %v1484
      %v1487 = vsub.f32 1.0, %v1476
      %v1488 = vsub.f32 1.0, %v1478
      %v1489 = vmul.f32 %v1487, %v1485
      %v1490 = vmul.f32 %v1488, %v1486
      %v1491 = vmul.f32 %v1476, %v1357
      %v1492 = vmul.f32 %v1478, %v1358
      %v1493 = vadd.f32 %v1489, %v1491
      %v1494 = vadd.f32 %v1490, %v1492
      %1495 = vst [vmem:[#allocation3] sm:$0xff] %v1493
      %1496 = vst [vmem:[#allocation3 + $0x8] sm:$0xff] %v1494
      %p1497 = scmp.eq.s32.totalorder %s26, 1
      // Predicated region
      $region57: #{grunet_forward.3} parent=51 // pred_check
        %p1498 = pneg %p1497
      $region58: #{grunet_forward.3} parent=51 // pred_check_branch
        %1500 = sbr.rel (%p1498) target = $region60
      $region59: #{grunet_forward.3} parent=51 // pred_region
        %1501 = vst [vmem:[%s401] sm:$0xff] %v1493
        %1502 = vst [vmem:[%s401 + $0x8] sm:$0xff] %v1494
        %v1503 = vmax.f32 %v1493, 0.0
        %v1504 = vmax.f32 %v1494, 0.0
        %v1505 = vpack.c.bf16 %v1504, %v1503
        %v1506 = vld [vmem:[%s6] sm:$0xf]
        %v1507 = vld [vmem:[%s6 + $0x4] sm:$0xf]
        %v1508 = vld [vmem:[%s6 + $0x8] sm:$0xf]
        %v1509 = vld [vmem:[%s6 + $0xc] sm:$0xf]
        %v1510 = vld [vmem:[%s6 + $0x10] sm:$0xf]
        %v1511 = vld [vmem:[%s6 + $0x14] sm:$0xf]
        %v1512 = vld [vmem:[%s6 + $0x18] sm:$0xf]
        %v1513 = vld [vmem:[%s6 + $0x1c] sm:$0xf]
        %v1514 = vld [vmem:[%s6 + $0x20] sm:$0xf]
        %v1515 = vld [vmem:[%s6 + $0x24] sm:$0xf]
        %v1516 = vld [vmem:[%s6 + $0x28] sm:$0xf]
        %v1517 = vld [vmem:[%s6 + $0x2c] sm:$0xf]
        %v1518 = vld [vmem:[%s6 + $0x30] sm:$0xf]
        %v1519 = vld [vmem:[%s6 + $0x34] sm:$0xf]
        %v1520 = vld [vmem:[%s6 + $0x38] sm:$0xf]
        %v1521 = vld [vmem:[%s6 + $0x3c] sm:$0xf]
        %v1522 = vld [vmem:[%s7] sm:$0x1]
        %v1524 = vlaneseq
        %v1525 = vshrl.u32 %v1524, 7
        %v1526 = vsub.s32 0, %v1525
        %v1527 = vrot.slane %v1522, %v1526
        %v1545 = vunpack.c.l.b16 %v1506
        %v1546 = vunpack.c.l.b16 %v1507
        %v1547 = vunpack.c.l.b16 %v1508
        %v1548 = vunpack.c.l.b16 %v1509
        %v1549 = vunpack.c.l.b16 %v1510
        %v1550 = vunpack.c.l.b16 %v1511
        %v1551 = vunpack.c.l.b16 %v1512
        %v1552 = vunpack.c.l.b16 %v1513
        %v1553 = vunpack.c.l.b16 %v1514
        %v1554 = vunpack.c.l.b16 %v1515
        %v1555 = vunpack.c.l.b16 %v1516
        %v1556 = vunpack.c.l.b16 %v1517
        %v1557 = vunpack.c.l.b16 %v1518
        %v1558 = vunpack.c.l.b16 %v1519
        %v1559 = vunpack.c.l.b16 %v1520
        %v1560 = vunpack.c.l.b16 %v1521
        %v1561 = vpack.c.b16 %v1546, %v1545
        %v1562 = vpack.c.b16 %v1548, %v1547
        %v1563 = vpack.c.b16 %v1550, %v1549
        %v1564 = vpack.c.b16 %v1552, %v1551
        %v1565 = vpack.c.b16 %v1554, %v1553
        %v1566 = vpack.c.b16 %v1556, %v1555
        %v1567 = vpack.c.b16 %v1558, %v1557
        %v1568 = vpack.c.b16 %v1560, %v1559
        %1577 = vmatprep.subr.bf16.mxu0 0
        %1578 = vmatpush1.bf16.msra.mxu0 %v1561
        %1579 = vmatprep.subr.bf16.mxu0 0
        %1580 = vmatpush1.bf16.msra.mxu0 %v1562
        %1581 = vmatprep.subr.bf16.mxu0 0
        %1582 = vmatpush1.bf16.msra.mxu0 %v1563
        %1583 = vmatprep.subr.bf16.mxu0 0
        %1584 = vmatpush1.bf16.msra.mxu0 %v1564
        %1585 = vmatprep.subr.bf16.mxu0 0
        %1586 = vmatpush1.bf16.msra.mxu0 %v1565
        %1587 = vmatprep.subr.bf16.mxu0 0
        %1588 = vmatpush1.bf16.msra.mxu0 %v1566
        %1589 = vmatprep.subr.bf16.mxu0 0
        %1590 = vmatpush1.bf16.msra.mxu0 %v1567
        %1591 = vmatprep.subr.bf16.mxu0 0
        %1592 = vmatpush1.bf16.msra.mxu0 %v1568
        %1593 = vmatprep.subr.bf16.mxu0 0
        %1594 = vmatpush1.bf16.msra.mxu0 0
        %1595 = vmatprep.subr.bf16.mxu0 0
        %1596 = vmatpush1.bf16.msra.mxu0 0
        %1597 = vmatprep.subr.bf16.mxu0 0
        %1598 = vmatpush1.bf16.msra.mxu0 0
        %1599 = vmatprep.subr.bf16.mxu0 0
        %1600 = vmatpush1.bf16.msra.mxu0 0
        %1601 = vmatprep.subr.bf16.mxu0 0
        %1602 = vmatpush1.bf16.msra.mxu0 0
        %1603 = vmatprep.subr.bf16.mxu0 0
        %1604 = vmatpush1.bf16.msra.mxu0 0
        %1605 = vmatprep.subr.bf16.mxu0 0
        %1606 = vmatpush1.bf16.msra.mxu0 0
        %1607 = vmatprep.subr.bf16.mxu0 0
        %1608 = vmatpush1.bf16.msra.mxu0 0
        %1609 = vmatprep.mubr.bf16.mxu0 0
        %1610 = vmatmul.mubr.bf16.gmra.mrb[0].mxu0 %v1505
        %v1611 = vpop.f32.mrb[0].mxu0
        %v1612 = vadd.f32 %v1527, %v1611
        %v1613 = vpop.f32.mrb[0].mxu0
        %v1614 = vpop.f32.mrb[0].mxu0
        %v1615 = vadd.f32 %v1527, %v1614
        %v1616 = vpop.f32.mrb[0].mxu0
        %1617 = vdwg.mxu0
        %1618 = vst [vmem:[%s395] sm:$0xff] %v1612
        %1619 = vst [vmem:[%s395 + $0x8] sm:$0xff] %v1615
      $region60: #{grunet_forward.3} parent=51 // pred_fallthru
        _
      %s1620 = smul.u32 2, %s25
      %p1621 = scmp.lt.s32.totalorder %s1620, 1
      %s1622 = scalar_select %p1621, %s1620, 1
      %s1623 = smul.addr %s1622, 8
      %s1624 = scalar_lea.vmem %s8, %s1623
      %s1625 = smul.u32 2, %s25
      %p1626 = scmp.lt.s32.totalorder %s1625, 1
      %s1627 = scalar_select %p1626, %s1625, 1
      %s1628 = smul.addr %s1627, 8
      %s1629 = scalar_lea.vmem %s9, %s1628
      // Predicated region
      $region61: #{grunet_forward.3} parent=51 // pred_check
        %p1630 = pneg %p231
      $region62: #{grunet_forward.3} parent=51 // pred_check_branch
        %1632 = sbr.rel (%p1630) target = $region64
      $region63: #{grunet_forward.3} parent=51 // pred_region
        %s1633 = smul.u32 2, %s25
      $region64: #{grunet_forward.3} parent=51 // pred_fallthru
        _
      // Predicated region
      $region65: #{grunet_forward.3} parent=51 // pred_check
        %p1634 = pneg %p257
      $region66: #{grunet_forward.3} parent=51 // pred_check_branch
        %1636 = sbr.rel (%p1634) target = $region68
      $region67: #{grunet_forward.3} parent=51 // pred_region
        %s1637 = smul.u32 2, %s25
      $region68: #{grunet_forward.3} parent=51 // pred_fallthru
        _
      // Predicated region
      $region69: #{grunet_forward.3} parent=51 // pred_check
        %p1638 = pneg %p231
      $region70: #{grunet_forward.3} parent=51 // pred_check_branch
        %1640 = sbr.rel (%p1638) target = $region72
      $region71: #{grunet_forward.3} parent=51 // pred_region
        %s1641 = smul.u32 2, %s25
        %p1642 = scmp.lt.s32.totalorder %s1641, 1
        %s1643 = scalar_select %p1642, %s1641, 1
        %s1644 = smul.addr %s1643, 8
        %s1645 = scalar_lea.vmem %s8, %s1644
      $region72: #{grunet_forward.3} parent=51 // pred_fallthru
        _
      // Predicated region
      $region73: #{grunet_forward.3} parent=51 // pred_check
        %p1646 = pneg %p257
      $region74: #{grunet_forward.3} parent=51 // pred_check_branch
        %1648 = sbr.rel (%p1646) target = $region76
      $region75: #{grunet_forward.3} parent=51 // pred_region
        %s1649 = smul.u32 2, %s25
        %p1650 = scmp.lt.s32.totalorder %s1649, 1
        %s1651 = scalar_select %p1650, %s1649, 1
        %s1652 = smul.addr %s1651, 8
        %s1653 = scalar_lea.vmem %s9, %s1652
      $region76: #{grunet_forward.3} parent=51 // pred_fallthru
        _
    $region52: #{grunet_forward.3} parent=5 // pred_fallthru
      _
    %p1654 = scmp.le.s32.totalorder 2, %s16
    // Predicated region
    $region77: #{grunet_forward.3} parent=5 // pred_check
      %p1655 = pneg %p1654
    $region78: #{grunet_forward.3} parent=5 // pred_check_branch
      %1657 = sbr.rel (%p1655) target = $region80
    $region79: #{grunet_forward.3} parent=5 // pred_region
      %s1658 = ssub.s32 %s16, 2
    $region80: #{grunet_forward.3} parent=5 // pred_fallthru
      _
  $region6: #{grunet_forward.3} parent=0 // loop_footer
    %s20 = sadd.s32 1, %s16
  $region7: #{grunet_forward.3} parent=0 // loop_footer_branch
    %15 = sbr.rel target = $region3
  $region8: #{grunet_forward.3} parent=0 // loop_exit
    _

// kernel: grunet_forward.2
$region0: #{grunet_forward.2}
  #allocation0 [shape = 'u32[]', space=smem, size = 0x4, offset = 0x4, fixed_abs, tag = 'smem constant byte address 0x4 - core index']
  #allocation1 [shape = 'u32[144,128]{1,0:T(1,128)}', space=vmem, size = 0x12000, scoped, tag = 'internal scratch']
  #allocation2 [shape = 'f32[4,16,384]{2,1,0:T(8,128)}', space=vmem, size = 0x18000, scoped, tag = 'scratch operand']
  #allocation3 [shape = 'f32[16,128]{1,0:T(8,128)}', space=vmem, size = 0x2000, scoped, tag = 'scratch operand']
  %s0 = inlined_call_operand.vmem [shape: bf16[8,16,128], index: 0, kind: input, shape index: {}]
  %s1 = inlined_call_operand.vmem [shape: f32[16,128], index: 1, kind: input, shape index: {}]
  %s2 = inlined_call_operand.hbm [shape: bf16[128,384], index: 2, kind: input, shape index: {}]
  %s3 = inlined_call_operand.hbm [shape: bf16[128,384], index: 3, kind: input, shape index: {}]
  %s4 = inlined_call_operand.vmem [shape: f32[1,384], index: 4, kind: input, shape index: {}]
  %s5 = inlined_call_operand.vmem [shape: f32[1,128], index: 5, kind: input, shape index: {}]
  %s6 = inlined_call_operand.vmem [shape: bf16[8,16,128], index: 6, kind: output, shape index: {0}]
  %s7 = inlined_call_operand.vmem [shape: f32[16,128], index: 7, kind: output, shape index: {1}]
  %8 = xla_tuple %s6, %s7
  %s9 = sld [smem:[#allocation0]]
  $region81: #{grunet_forward.2} parent=0
    _
  %s11 = ssub.s32 1, %s9
  %s12 = scalar_select 0, %s11, %s9
  $region1: #{grunet_forward.2} parent=0
    #allocation4 [shape = 'u8[98304]{0}', space=vmem, size = 0x18000, scoped, tag = 'input window, operand 2, single buffered']
    #allocation5 [shape = 's32[2]{0}', space=sflag, size = 0x8, scoped, tag = 'scoped memory for grunet_forward.2']
    #allocation6 [shape = 'u8[98304]{0}', space=vmem, size = 0x18000, scoped, tag = 'input window, operand 3, single buffered']
    #allocation7 [shape = 's32[1]{0}', space=sflag, size = 0x4, scoped, tag = 'scoped memory for grunet_forward.2']
    %13 = vsyncpa [#allocation5], 0
    %14 = vsyncpa [#allocation7], 0
    loop: start=0, step=1, limit=4
    $region2: #{grunet_forward.2} parent=1 // loop_pre_header
      _
    $region3: #{grunet_forward.2} parent=1 // loop_header
      %s16 = sphi 0, %s20
      %p17 = scmp.ge.s32.totalorder %s16, 4
      %s23 = sphi 0, %s35
      %s24 = sphi 0, %s31
      %s25 = sphi 0, %s23
      %s26 = sphi 0, %s24
      %s27 = sphi 0, %s25
      %s28 = sphi 0, %s26
      %s40 = sphi 0, %s42
      %s43 = sphi 0, %s40
      %s44 = sphi 0, %s43
      %s60 = sphi 0, %s44
      %s66 = sphi 0, %s68
      %s69 = sphi 0, %s66
      %s70 = sphi 0, %s69
      %s86 = sphi 0, %s70
      %s90 = sphi 0, %s90
      %s92 = sphi 0, %s90
      %s93 = sphi 0, %s92
      %s107 = sphi 0, %s93
      %s111 = sphi 0, %s111
      %s113 = sphi 0, %s111
      %s114 = sphi 0, %s113
      %s128 = sphi 0, %s114
      %s132 = sphi 0, %s132
      %s134 = sphi 0, %s132
      %s135 = sphi 0, %s134
      %s149 = sphi 0, %s135
      %s153 = sphi 0, %s153
      %s155 = sphi 0, %s153
      %s156 = sphi 0, %s155
      %s170 = sphi 0, %s156
      %s178 = sphi 0, %s180
      %s181 = sphi 0, %s178
      %s182 = sphi 0, %s181
      %s198 = sphi 0, %s182
      %s204 = sphi 0, %s206
      %s207 = sphi 0, %s204
      %s208 = sphi 0, %s207
      %s224 = sphi 0, %s208
    $region4: #{grunet_forward.2} parent=1 // loop_header_branch
      %19 = sbr.rel (%p17) target = $region8
    $region5: #{grunet_forward.2} parent=1 // loop_body
      %s21 = ssub.s32 %s16, 1
      %s22 = ssub.s32 %s16, 2
      %s29 = sadd.s32 1, %s24
      %p30 = scmp.ge.s32.totalorder %s29, 2
      %s31 = scalar_select %p30, 0, %s29
      %s32 = sadd.s32 1, %s23
      %s33 = scalar_select %p30, %s32, %s23
      %p34 = scmp.ge.s32.totalorder %s33, 1
      %s35 = scalar_select %p34, 0, %s33
      %s36 = ssub.s32 %s24, %s31
      %s37 = ssub.s32 %s23, %s35
      %s38 = sor.u32 %s36, %s37
      %p39 = scmp.eq.s32.totalorder %s38, 0
      %s41 = sadd.s32 %s40, 1
      %s42 = scalar_select %p39, %s40, %s41
      %p45 = pneg %p39
      %p46 = scmp.eq.s32.totalorder %s16, 1
      %p47 = por %p45, %p46
      %p48 = scmp.ne.s32.totalorder %s40, %s43
      %p49 = scmp.eq.s32.totalorder %s16, 0
      %p50 = por %p48, %p49
      %p51 = scmp.ne.s32.totalorder %s40, %s43
      %p52 = scmp.eq.s32.totalorder %s21, 1
      %p53 = por %p51, %p52
      %p54 = scmp.ne.s32.totalorder %s43, %s44
      %p55 = scmp.eq.s32.totalorder %s21, 0
      %p56 = por %p54, %p55
      %p57 = scmp.ne.s32.totalorder %s43, %s44
      %p58 = scmp.eq.s32.totalorder %s22, 1
      %p59 = por %p57, %p58
      %p61 = scmp.ne.s32.totalorder %s44, %s60
      %p62 = scmp.eq.s32.totalorder %s22, 0
      %p63 = por %p61, %p62
      %s64 = ssub.s32 %s23, %s35
      %p65 = scmp.eq.s32.totalorder %s64, 0
      %s67 = sadd.s32 %s66, 1
      %s68 = scalar_select %p65, %s66, %s67
      %p71 = pneg %p65
      %p72 = scmp.eq.s32.totalorder %s16, 1
      %p73 = por %p71, %p72
      %p74 = scmp.ne.s32.totalorder %s66, %s69
      %p75 = scmp.eq.s32.totalorder %s16, 0
      %p76 = por %p74, %p75
      %p77 = scmp.ne.s32.totalorder %s66, %s69
      %p78 = scmp.eq.s32.totalorder %s21, 1
      %p79 = por %p77, %p78
      %p80 = scmp.ne.s32.totalorder %s69, %s70
      %p81 = scmp.eq.s32.totalorder %s21, 0
      %p82 = por %p80, %p81
      %p83 = scmp.ne.s32.totalorder %s69, %s70
      %p84 = scmp.eq.s32.totalorder %s22, 1
      %p85 = por %p83, %p84
      %p87 = scmp.ne.s32.totalorder %s70, %s86
      %p88 = scmp.eq.s32.totalorder %s22, 0
      %p89 = por %p87, %p88
      %s91 = sadd.s32 %s90, 1
      %p94 = scmp.eq.s32.totalorder %s16, 1
      %p95 = scmp.ne.s32.totalorder %s90, %s92
      %p96 = scmp.eq.s32.totalorder %s16, 0
      %p97 = por %p95, %p96
      %p98 = scmp.ne.s32.totalorder %s90, %s92
      %p99 = scmp.eq.s32.totalorder %s21, 1
      %p100 = por %p98, %p99
      %p101 = scmp.ne.s32.totalorder %s92, %s93
      %p102 = scmp.eq.s32.totalorder %s21, 0
      %p103 = por %p101, %p102
      %p104 = scmp.ne.s32.totalorder %s92, %s93
      %p105 = scmp.eq.s32.totalorder %s22, 1
      %p106 = por %p104, %p105
      %p108 = scmp.ne.s32.totalorder %s93, %s107
      %p109 = scmp.eq.s32.totalorder %s22, 0
      %p110 = por %p108, %p109
      %s112 = sadd.s32 %s111, 1
      %p115 = scmp.eq.s32.totalorder %s16, 1
      %p116 = scmp.ne.s32.totalorder %s111, %s113
      %p117 = scmp.eq.s32.totalorder %s16, 0
      %p118 = por %p116, %p117
      %p119 = scmp.ne.s32.totalorder %s111, %s113
      %p120 = scmp.eq.s32.totalorder %s21, 1
      %p121 = por %p119, %p120
      %p122 = scmp.ne.s32.totalorder %s113, %s114
      %p123 = scmp.eq.s32.totalorder %s21, 0
      %p124 = por %p122, %p123
      %p125 = scmp.ne.s32.totalorder %s113, %s114
      %p126 = scmp.eq.s32.totalorder %s22, 1
      %p127 = por %p125, %p126
      %p129 = scmp.ne.s32.totalorder %s114, %s128
      %p130 = scmp.eq.s32.totalorder %s22, 0
      %p131 = por %p129, %p130
      %s133 = sadd.s32 %s132, 1
      %p136 = scmp.eq.s32.totalorder %s16, 1
      %p137 = scmp.ne.s32.totalorder %s132, %s134
      %p138 = scmp.eq.s32.totalorder %s16, 0
      %p139 = por %p137, %p138
      %p140 = scmp.ne.s32.totalorder %s132, %s134
      %p141 = scmp.eq.s32.totalorder %s21, 1
      %p142 = por %p140, %p141
      %p143 = scmp.ne.s32.totalorder %s134, %s135
      %p144 = scmp.eq.s32.totalorder %s21, 0
      %p145 = por %p143, %p144
      %p146 = scmp.ne.s32.totalorder %s134, %s135
      %p147 = scmp.eq.s32.totalorder %s22, 1
      %p148 = por %p146, %p147
      %p150 = scmp.ne.s32.totalorder %s135, %s149
      %p151 = scmp.eq.s32.totalorder %s22, 0
      %p152 = por %p150, %p151
      %s154 = sadd.s32 %s153, 1
      %p157 = scmp.eq.s32.totalorder %s16, 1
      %p158 = scmp.ne.s32.totalorder %s153, %s155
      %p159 = scmp.eq.s32.totalorder %s16, 0
      %p160 = por %p158, %p159
      %p161 = scmp.ne.s32.totalorder %s153, %s155
      %p162 = scmp.eq.s32.totalorder %s21, 1
      %p163 = por %p161, %p162
      %p164 = scmp.ne.s32.totalorder %s155, %s156
      %p165 = scmp.eq.s32.totalorder %s21, 0
      %p166 = por %p164, %p165
      %p167 = scmp.ne.s32.totalorder %s155, %s156
      %p168 = scmp.eq.s32.totalorder %s22, 1
      %p169 = por %p167, %p168
      %p171 = scmp.ne.s32.totalorder %s156, %s170
      %p172 = scmp.eq.s32.totalorder %s22, 0
      %p173 = por %p171, %p172
      %s174 = ssub.s32 %s24, %s31
      %s175 = ssub.s32 %s23, %s35
      %s176 = sor.u32 %s174, %s175
      %p177 = scmp.eq.s32.totalorder %s176, 0
      %s179 = sadd.s32 %s178, 1
      %s180 = scalar_select %p177, %s178, %s179
      %p183 = pneg %p177
      %p184 = scmp.eq.s32.totalorder %s16, 1
      %p185 = por %p183, %p184
      %p186 = scmp.ne.s32.totalorder %s178, %s181
      %p187 = scmp.eq.s32.totalorder %s16, 0
      %p188 = por %p186, %p187
      %p189 = scmp.ne.s32.totalorder %s178, %s181
      %p190 = scmp.eq.s32.totalorder %s21, 1
      %p191 = por %p189, %p190
      %p192 = scmp.ne.s32.totalorder %s181, %s182
      %p193 = scmp.eq.s32.totalorder %s21, 0
      %p194 = por %p192, %p193
      %p195 = scmp.ne.s32.totalorder %s181, %s182
      %p196 = scmp.eq.s32.totalorder %s22, 1
      %p197 = por %p195, %p196
      %p199 = scmp.ne.s32.totalorder %s182, %s198
      %p200 = scmp.eq.s32.totalorder %s22, 0
      %p201 = por %p199, %p200
      %s202 = ssub.s32 %s23, %s35
      %p203 = scmp.eq.s32.totalorder %s202, 0
      %s205 = sadd.s32 %s204, 1
      %s206 = scalar_select %p203, %s204, %s205
      %p209 = pneg %p203
      %p210 = scmp.eq.s32.totalorder %s16, 1
      %p211 = por %p209, %p210
      %p212 = scmp.ne.s32.totalorder %s204, %s207
      %p213 = scmp.eq.s32.totalorder %s16, 0
      %p214 = por %p212, %p213
      %p215 = scmp.ne.s32.totalorder %s204, %s207
      %p216 = scmp.eq.s32.totalorder %s21, 1
      %p217 = por %p215, %p216
      %p218 = scmp.ne.s32.totalorder %s207, %s208
      %p219 = scmp.eq.s32.totalorder %s21, 0
      %p220 = por %p218, %p219
      %p221 = scmp.ne.s32.totalorder %s207, %s208
      %p222 = scmp.eq.s32.totalorder %s22, 1
      %p223 = por %p221, %p222
      %p225 = scmp.ne.s32.totalorder %s208, %s224
      %p226 = scmp.eq.s32.totalorder %s22, 0
      %p227 = por %p225, %p226
      %p228 = scmp.le.s32.totalorder 1, %s16
      %p229 = scmp.lt.s32.totalorder %s16, 3
      %p230 = pnand %p228, %p229
      %p231 = pneg %p230
      // Predicated region
      $region9: #{grunet_forward.2} parent=5 // pred_check
        _
      $region10: #{grunet_forward.2} parent=5 // pred_check_branch
        %233 = sbr.rel (%p230) target = $region12
      $region11: #{grunet_forward.2} parent=5 // pred_region
        %s234 = ssub.s32 %s16, 1
        // Predicated region
        $region13: #{grunet_forward.2} parent=11 // pred_check
          %p235 = pneg %p82
        $region14: #{grunet_forward.2} parent=11 // pred_check_branch
          %237 = sbr.rel (%p235) target = $region16
        $region15: #{grunet_forward.2} parent=11 // pred_region
          %s238 = smul.u32 2, %s25
          %p239 = scmp.lt.s32.totalorder %s238, 1
          %s240 = scalar_select %p239, %s238, 1
          %s241 = smul.addr %s240, 8
          %s242 = scalar_lea.vmem %s1, %s241
          %s243 = smul.u32 2, %s25
        $region16: #{grunet_forward.2} parent=11 // pred_fallthru
          _
        // Predicated region
        $region17: #{grunet_forward.2} parent=11 // pred_check
          %p244 = pneg %p103
        $region18: #{grunet_forward.2} parent=11 // pred_check_branch
          %246 = sbr.rel (%p244) target = $region20
        $region19: #{grunet_forward.2} parent=11 // pred_region
          %s248 = ssub.s32 3072, 3072
          %249 = vsyncadd [#allocation5], %s248
          %s250 = sshll.u32 [#allocation4], 4
          %s251 = int_to_ptr.vmem [resolvable:$true] %s250
          %256 = dma.hbm_to_vmem [thread:$0]  %s2, 3072, %s251, [#allocation5], 192, 192, 12
        $region20: #{grunet_forward.2} parent=11 // pred_fallthru
          _
        // Predicated region
        $region21: #{grunet_forward.2} parent=11 // pred_check
          %p257 = pneg %p124
        $region22: #{grunet_forward.2} parent=11 // pred_check_branch
          %259 = sbr.rel (%p257) target = $region24
        $region23: #{grunet_forward.2} parent=11 // pred_region
          %s261 = ssub.s32 3072, 3072
          %262 = vsyncadd [#allocation7], %s261
          %s263 = sshll.u32 [#allocation6], 4
          %s264 = int_to_ptr.vmem [resolvable:$true] %s263
          %269 = dma.hbm_to_vmem [thread:$0]  %s3, 3072, %s264, [#allocation7], 192, 192, 12
        $region24: #{grunet_forward.2} parent=11 // pred_fallthru
          _
        // Predicated region
        $region25: #{grunet_forward.2} parent=11 // pred_check
          %p270 = pneg %p145
        $region26: #{grunet_forward.2} parent=11 // pred_check_branch
          %272 = sbr.rel (%p270) target = $region28
        $region27: #{grunet_forward.2} parent=11 // pred_region
          _
        $region28: #{grunet_forward.2} parent=11 // pred_fallthru
          _
        // Predicated region
        $region29: #{grunet_forward.2} parent=11 // pred_check
          %p273 = pneg %p166
        $region30: #{grunet_forward.2} parent=11 // pred_check_branch
          %275 = sbr.rel (%p273) target = $region32
        $region31: #{grunet_forward.2} parent=11 // pred_region
          _
        $region32: #{grunet_forward.2} parent=11 // pred_fallthru
          _
      $region12: #{grunet_forward.2} parent=5 // pred_fallthru
        _
      %p276 = scmp.lt.s32.totalorder %s16, 2
      // Predicated region
      $region33: #{grunet_forward.2} parent=5 // pred_check
        %p277 = pneg %p276
      $region34: #{grunet_forward.2} parent=5 // pred_check_branch
        %279 = sbr.rel (%p277) target = $region36
      $region35: #{grunet_forward.2} parent=5 // pred_region
        // Predicated region
        $region37: #{grunet_forward.2} parent=35 // pred_check
          %p280 = pneg %p50
        $region38: #{grunet_forward.2} parent=35 // pred_check_branch
          %282 = sbr.rel (%p280) target = $region40
        $region39: #{grunet_forward.2} parent=35 // pred_region
          %s283 = smul.u32 4, %s24
          %s284 = smul.u32 2, %s23
          %p285 = scmp.lt.s32.totalorder %s283, 7
          %s286 = scalar_select %p285, %s283, 7
          %p287 = scmp.lt.s32.totalorder %s284, 1
          %s288 = scalar_select %p287, %s284, 1
          %s289 = smul.addr %s286, 2
          %s290 = sadd.s32 %s288, %s289
          %s291 = smul.addr %s290, 4
          %s292 = scalar_lea.vmem %s0, %s291
          %s293 = smul.u32 4, %s24
          %s294 = smul.u32 2, %s23
        $region40: #{grunet_forward.2} parent=35 // pred_fallthru
          _
      $region36: #{grunet_forward.2} parent=5 // pred_fallthru
        _
      %p295 = scmp.le.s32.totalorder 1, %s16
      %p296 = scmp.lt.s32.totalorder %s16, 3
      %p297 = pnand %p295, %p296
      %p298 = pneg %p297
      // Predicated region
      $region41: #{grunet_forward.2} parent=5 // pred_check
        _
      $region42: #{grunet_forward.2} parent=5 // pred_check_branch
        %300 = sbr.rel (%p297) target = $region44
      $region43: #{grunet_forward.2} parent=5 // pred_region
        %s301 = ssub.s32 %s16, 1
        // Predicated region
        $region45: #{grunet_forward.2} parent=43 // pred_check
          %p302 = pneg %p103
        $region46: #{grunet_forward.2} parent=43 // pred_check_branch
          %304 = sbr.rel (%p302) target = $region48
        $region47: #{grunet_forward.2} parent=43 // pred_region
          %305 = dma.done [#allocation5], 3072
        $region48: #{grunet_forward.2} parent=43 // pred_fallthru
          _
        // Predicated region
        $region49: #{grunet_forward.2} parent=43 // pred_check
          %p306 = pneg %p124
        $region50: #{grunet_forward.2} parent=43 // pred_check_branch
          %308 = sbr.rel (%p306) target = $region52
        $region51: #{grunet_forward.2} parent=43 // pred_region
          %309 = dma.done [#allocation7], 3072
        $region52: #{grunet_forward.2} parent=43 // pred_fallthru
          _
        %s310 = smul.u32 4, %s26
        %s311 = smul.u32 2, %s25
        %p312 = scmp.lt.s32.totalorder %s310, 7
        %s313 = scalar_select %p312, %s310, 7
        %p314 = scmp.lt.s32.totalorder %s311, 1
        %s315 = scalar_select %p314, %s311, 1
        %s316 = smul.addr %s313, 2
        %s317 = sadd.s32 %s315, %s316
        %s318 = smul.addr %s317, 4
        %s319 = scalar_lea.vmem %s0, %s318
        %p320 = pneg %p56
        %p321 = pneg %p53
        %s322 = smul.u32 2, %s25
        %p323 = scmp.lt.s32.totalorder %s322, 1
        %s324 = scalar_select %p323, %s322, 1
        %s325 = smul.addr %s324, 8
        %s326 = scalar_lea.vmem %s1, %s325
        %p327 = pneg %p82
        %p328 = pneg %p79
        %p329 = pneg %p103
        %p330 = pneg %p100
        %p331 = pneg %p124
        %p332 = pneg %p121
        %p333 = pneg %p145
        %p334 = pneg %p142
        %p335 = pneg %p166
        %p336 = pneg %p163
        %p337 = pneg %p194
        %p338 = pneg %p191
        %s339 = smul.u32 4, %s26
        %s340 = smul.u32 2, %s25
        %p341 = scmp.lt.s32.totalorder %s339, 7
        %s342 = scalar_select %p341, %s339, 7
        %p343 = scmp.lt.s32.totalorder %s340, 1
        %s344 = scalar_select %p343, %s340, 1
        %s345 = smul.addr %s342, 2
        %s346 = sadd.s32 %s344, %s345
        %s347 = smul.addr %s346, 4
        %s348 = scalar_lea.vmem %s6, %s347
        %p349 = pneg %p220
        %p350 = pneg %p217
        %s351 = smul.u32 2, %s25
        %p352 = scmp.lt.s32.totalorder %s351, 1
        %s353 = scalar_select %p352, %s351, 1
        %s354 = smul.addr %s353, 8
        %s355 = scalar_lea.vmem %s7, %s354
        %s356 = smul.u32 4, %s26
        %s357 = smul.u32 2, %s25
        %p358 = scmp.lt.s32.totalorder %s356, 7
        %s359 = scalar_select %p358, %s356, 7
        %p360 = scmp.lt.s32.totalorder %s357, 1
        %s361 = scalar_select %p360, %s357, 1
        %s362 = smul.addr %s359, 2
        %s363 = sadd.s32 %s361, %s362
        %s364 = smul.addr %s363, 4
        %s365 = scalar_lea.vmem %s0, %s364
        %s366 = smul.u32 4, %s26
        %s367 = smul.u32 2, %s25
        %s368 = smul.u32 2, %s25
        %p369 = scmp.lt.s32.totalorder %s368, 1
        %s370 = scalar_select %p369, %s368, 1
        %s371 = smul.addr %s370, 8
        %s372 = scalar_lea.vmem %s1, %s371
        %s373 = smul.u32 2, %s25
        %s374 = smul.u32 4, %s26
        %s375 = smul.u32 2, %s25
        %p376 = scmp.lt.s32.totalorder %s374, 7
        %s377 = scalar_select %p376, %s374, 7
        %p378 = scmp.lt.s32.totalorder %s375, 1
        %s379 = scalar_select %p378, %s375, 1
        %s380 = smul.addr %s377, 2
        %s381 = sadd.s32 %s379, %s380
        %s382 = smul.addr %s381, 4
        %s383 = scalar_lea.vmem %s6, %s382
        %s384 = smul.u32 4, %s26
        %s385 = smul.u32 2, %s25
        %s386 = smul.u32 2, %s25
        %p387 = scmp.lt.s32.totalorder %s386, 1
        %s388 = scalar_select %p387, %s386, 1
        %s389 = smul.addr %s388, 8
        %s390 = scalar_lea.vmem %s7, %s389
        %s391 = smul.u32 2, %s25
        %p393 = scmp.eq.s32.totalorder %s26, 0
        // Predicated region
        $region53: #{grunet_forward.2} parent=43 // pred_check
          %p394 = pneg %p393
        $region54: #{grunet_forward.2} parent=43 // pred_check_branch
          %396 = sbr.rel (%p394) target = $region56
        $region55: #{grunet_forward.2} parent=43 // pred_region
          %v397 = vld [vmem:[%s372] sm:$0xff]
          %v398 = vld [vmem:[%s372 + $0x8] sm:$0xff]
          %399 = vst [vmem:[#allocation3] sm:$0xff] %v397
          %400 = vst [vmem:[#allocation3 + $0x8] sm:$0xff] %v398
        $region56: #{grunet_forward.2} parent=43 // pred_fallthru
          _
        %v401 = vld [vmem:[%s365] sm:$0xf]
        %v402 = vld [vmem:[%s365 + $0x4] sm:$0xf]
        %v403 = vld [vmem:[%s365 + $0x8] sm:$0xf]
        %v404 = vld [vmem:[%s365 + $0xc] sm:$0xf]
        %v405 = vld [vmem:[%s365 + $0x10] sm:$0xf]
        %v406 = vld [vmem:[%s365 + $0x14] sm:$0xf]
        %v407 = vld [vmem:[%s365 + $0x18] sm:$0xf]
        %v408 = vld [vmem:[%s365 + $0x1c] sm:$0xf]
        %v409 = vld [vmem:[#allocation4] sm:$0xff]
        %v410 = vld [vmem:[#allocation4 + $0x8] sm:$0xf]
        %v411 = vld [vmem:[#allocation4 + $0xc] sm:$0xff]
        %v412 = vld [vmem:[#allocation4 + $0x14] sm:$0xf]
        %v413 = vld [vmem:[#allocation4 + $0x18] sm:$0xff]
        %v414 = vld [vmem:[#allocation4 + $0x20] sm:$0xf]
        %v415 = vld [vmem:[#allocation4 + $0x24] sm:$0xff]
        %v416 = vld [vmem:[#allocation4 + $0x2c] sm:$0xf]
        %v417 = vld [vmem:[#allocation4 + $0x30] sm:$0xff]
        %v418 = vld [vmem:[#allocation4 + $0x38] sm:$0xf]
        %v419 = vld [vmem:[#allocation4 + $0x3c] sm:$0xff]
        %v420 = vld [vmem:[#allocation4 + $0x44] sm:$0xf]
        %v421 = vld [vmem:[#allocation4 + $0x48] sm:$0xff]
        %v422 = vld [vmem:[#allocation4 + $0x50] sm:$0xf]
        %v423 = vld [vmem:[#allocation4 + $0x54] sm:$0xff]
        %v424 = vld [vmem:[#allocation4 + $0x5c] sm:$0xf]
        %v425 = vld [vmem:[#allocation4 + $0x60] sm:$0xff]
        %v426 = vld [vmem:[#allocation4 + $0x68] sm:$0xf]
        %v427 = vld [vmem:[#allocation4 + $0x6c] sm:$0xff]
        %v428 = vld [vmem:[#allocation4 + $0x74] sm:$0xf]
        %v429 = vld [vmem:[#allocation4 + $0x78] sm:$0xff]
        %v430 = vld [vmem:[#allocation4 + $0x80] sm:$0xf]
        %v431 = vld [vmem:[#allocation4 + $0x84] sm:$0xff]
        %v432 = vld [vmem:[#allocation4 + $0x8c] sm:$0xf]
        %v433 = vld [vmem:[#allocation4 + $0x90] sm:$0xff]
        %v434 = vld [vmem:[#allocation4 + $0x98] sm:$0xf]
        %v435 = vld [vmem:[#allocation4 + $0x9c] sm:$0xff]
        %v436 = vld [vmem:[#allocation4 + $0xa4] sm:$0xf]
        %v437 = vld [vmem:[#allocation4 + $0xa8] sm:$0xff]
        %v438 = vld [vmem:[#allocation4 + $0xb0] sm:$0xf]
        %v439 = vld [vmem:[#allocation4 + $0xb4] sm:$0xff]
        %v440 = vld [vmem:[#allocation4 + $0xbc] sm:$0xf]
        %v441 = vld [vmem:[%s4] sm:$0x7]
        %v443 = vlaneseq
        %v444 = vshrl.u32 %v443, 7
        %v445 = vsub.s32 0, %v444
        %v446 = vrot.slane %v441, %v445
        %v447 = vlaneseq
        %v448 = vshrl.u32 %v447, 7
        %v449 = vsub.s32 1, %v448
        %v450 = vrot.slane %v441, %v449
        %v451 = vlaneseq
        %v452 = vshrl.u32 %v451, 7
        %v453 = vsub.s32 2, %v452
        %v454 = vrot.slane %v441, %v453
        %v466 = vunpack.c.l.b16 %v401
        %v467 = vunpack.c.l.b16 %v402
        %v468 = vunpack.c.l.b16 %v403
        %v469 = vunpack.c.l.b16 %v404
        %v470 = vunpack.c.l.b16 %v405
        %v471 = vunpack.c.l.b16 %v406
        %v472 = vunpack.c.l.b16 %v407
        %v473 = vunpack.c.l.b16 %v408
        %v474 = vpack.c.b16 %v467, %v466
        %v475 = vpack.c.b16 %v469, %v468
        %v476 = vpack.c.b16 %v471, %v470
        %v477 = vpack.c.b16 %v473, %v472
        %v514 = vunpack.c.l.b16 %v409
        %v515 = vunpack.c.h.b16 %v409
        %v516 = vunpack.c.l.b16 %v410
        %v517 = vunpack.c.l.b16 %v411
        %v518 = vunpack.c.h.b16 %v411
        %v519 = vunpack.c.l.b16 %v412
        %v520 = vunpack.c.l.b16 %v413
        %v521 = vunpack.c.h.b16 %v413
        %v522 = vunpack.c.l.b16 %v414
        %v523 = vunpack.c.l.b16 %v415
        %v524 = vunpack.c.h.b16 %v415
        %v525 = vunpack.c.l.b16 %v416
        %v526 = vunpack.c.l.b16 %v417
        %v527 = vunpack.c.h.b16 %v417
        %v528 = vunpack.c.l.b16 %v418
        %v529 = vunpack.c.l.b16 %v419
        %v530 = vunpack.c.h.b16 %v419
        %v531 = vunpack.c.l.b16 %v420
        %v532 = vunpack.c.l.b16 %v421
        %v533 = vunpack.c.h.b16 %v421
        %v534 = vunpack.c.l.b16 %v422
        %v535 = vunpack.c.l.b16 %v423
        %v536 = vunpack.c.h.b16 %v423
        %v537 = vunpack.c.l.b16 %v424
        %v538 = vunpack.c.l.b16 %v425
        %v539 = vunpack.c.h.b16 %v425
        %v540 = vunpack.c.l.b16 %v426
        %v541 = vunpack.c.l.b16 %v427
        %v542 = vunpack.c.h.b16 %v427
        %v543 = vunpack.c.l.b16 %v428
        %v544 = vunpack.c.l.b16 %v429
        %v545 = vunpack.c.h.b16 %v429
        %v546 = vunpack.c.l.b16 %v430
        %v547 = vunpack.c.l.b16 %v431
        %v548 = vunpack.c.h.b16 %v431
        %v549 = vunpack.c.l.b16 %v432
        %v550 = vunpack.c.l.b16 %v433
        %v551 = vunpack.c.h.b16 %v433
        %v552 = vunpack.c.l.b16 %v434
        %v553 = vunpack.c.l.b16 %v435
        %v554 = vunpack.c.h.b16 %v435
        %v555 = vunpack.c.l.b16 %v436
        %v556 = vunpack.c.l.b16 %v437
        %v557 = vunpack.c.h.b16 %v437
        %v558 = vunpack.c.l.b16 %v438
        %v559 = vunpack.c.l.b16 %v439
        %v560 = vunpack.c.h.b16 %v439
        %v561 = vunpack.c.l.b16 %v440
        %v562 = vpack.c.b16 %v517, %v514
        %v563 = vpack.c.b16 %v518, %v515
        %v564 = vpack.c.b16 %v519, %v516
        %v565 = vpack.c.b16 %v523, %v520
        %v566 = vpack.c.b16 %v524, %v521
        %v567 = vpack.c.b16 %v525, %v522
        %v568 = vpack.c.b16 %v529, %v526
        %v569 = vpack.c.b16 %v530, %v527
        %v570 = vpack.c.b16 %v531, %v528
        %v571 = vpack.c.b16 %v535, %v532
        %v572 = vpack.c.b16 %v536, %v533
        %v573 = vpack.c.b16 %v537, %v534
        %v574 = vpack.c.b16 %v541, %v538
        %v575 = vpack.c.b16 %v542, %v539
        %v576 = vpack.c.b16 %v543, %v540
        %v577 = vpack.c.b16 %v547, %v544
        %v578 = vpack.c.b16 %v548, %v545
        %v579 = vpack.c.b16 %v549, %v546
        %v580 = vpack.c.b16 %v553, %v550
        %v581 = vpack.c.b16 %v554, %v551
        %v582 = vpack.c.b16 %v555, %v552
        %v583 = vpack.c.b16 %v559, %v556
        %v584 = vpack.c.b16 %v560, %v557
        %v585 = vpack.c.b16 %v561, %v558
        %610 = vmatprep.subr.bf16.mxu0 %v563
        %611 = vmatpush1.bf16.msra.mxu0 %v562
        %612 = vmatprep.subr.bf16.mxu0 %v566
        %613 = vmatpush1.bf16.msra.mxu0 %v565
        %614 = vmatprep.subr.bf16.mxu0 %v569
        %615 = vmatpush1.bf16.msra.mxu0 %v568
        %616 = vmatprep.subr.bf16.mxu0 %v572
        %617 = vmatpush1.bf16.msra.mxu0 %v571
        %618 = vmatprep.subr.bf16.mxu0 %v575
        %619 = vmatpush1.bf16.msra.mxu0 %v574
        %620 = vmatprep.subr.bf16.mxu0 %v578
        %621 = vmatpush1.bf16.msra.mxu0 %v577
        %622 = vmatprep.subr.bf16.mxu0 %v581
        %623 = vmatpush1.bf16.msra.mxu0 %v580
        %624 = vmatprep.subr.bf16.mxu0 %v584
        %625 = vmatpush1.bf16.msra.mxu0 %v583
        %626 = vmatprep.subr.bf16.mxu0 0
        %627 = vmatpush1.bf16.msra.mxu0 0
        %628 = vmatprep.subr.bf16.mxu0 0
        %629 = vmatpush1.bf16.msra.mxu0 0
        %630 = vmatprep.subr.bf16.mxu0 0
        %631 = vmatpush1.bf16.msra.mxu0 0
        %632 = vmatprep.subr.bf16.mxu0 0
        %633 = vmatpush1.bf16.msra.mxu0 0
        %634 = vmatprep.subr.bf16.mxu0 0
        %635 = vmatpush1.bf16.msra.mxu0 0
        %636 = vmatprep.subr.bf16.mxu0 0
        %637 = vmatpush1.bf16.msra.mxu0 0
        %638 = vmatprep.subr.bf16.mxu0 0
        %639 = vmatpush1.bf16.msra.mxu0 0
        %640 = vmatprep.subr.bf16.mxu0 0
        %641 = vmatpush1.bf16.msra.mxu0 0
        %642 = vmatprep.mubr.bf16.mxu0 0
        %643 = vmatmul.mubr.bf16.gmra.mrb[0].mxu0 %v474
        %v644 = vpop.f32.mrb[0].mxu0
        %v645 = vadd.f32 %v446, %v644
        %v646 = vpop.f32.mrb[0].mxu0
        %v647 = vadd.f32 %v450, %v646
        %v648 = vpop.f32.mrb[0].mxu0
        %v649 = vadd.f32 %v446, %v648
        %v650 = vpop.f32.mrb[0].mxu0
        %v651 = vadd.f32 %v450, %v650
        %652 = vmatprep.mubr.bf16.mxu0 0
        %653 = vmatmul.mubr.bf16.gmra.mrb[0].mxu0 %v475
        %v654 = vpop.f32.mrb[0].mxu0
        %v655 = vadd.f32 %v446, %v654
        %v656 = vpop.f32.mrb[0].mxu0
        %v657 = vadd.f32 %v450, %v656
        %v658 = vpop.f32.mrb[0].mxu0
        %v659 = vadd.f32 %v446, %v658
        %v660 = vpop.f32.mrb[0].mxu0
        %v661 = vadd.f32 %v450, %v660
        %662 = vmatprep.mubr.bf16.mxu0 0
        %663 = vmatmul.mubr.bf16.gmra.mrb[0].mxu0 %v476
        %v664 = vpop.f32.mrb[0].mxu0
        %v665 = vadd.f32 %v446, %v664
        %v666 = vpop.f32.mrb[0].mxu0
        %v667 = vadd.f32 %v450, %v666
        %v668 = vpop.f32.mrb[0].mxu0
        %v669 = vadd.f32 %v446, %v668
        %v670 = vpop.f32.mrb[0].mxu0
        %v671 = vadd.f32 %v450, %v670
        %672 = vmatprep.mubr.bf16.mxu0 0
        %673 = vmatmul.mubr.bf16.gmra.mrb[0].mxu0 %v477
        %v674 = vpop.f32.mrb[0].mxu0
        %v675 = vadd.f32 %v446, %v674
        %v676 = vpop.f32.mrb[0].mxu0
        %v677 = vadd.f32 %v450, %v676
        %v678 = vpop.f32.mrb[0].mxu0
        %v679 = vadd.f32 %v446, %v678
        %v680 = vpop.f32.mrb[0].mxu0
        %v681 = vadd.f32 %v450, %v680
        %682 = vdwg.mxu0
        %683 = vmatprep.subr.bf16.mxu0 0
        %684 = vmatpush1.bf16.msra.mxu0 %v564
        %685 = vmatprep.subr.bf16.mxu0 0
        %686 = vmatpush1.bf16.msra.mxu0 %v567
        %687 = vmatprep.subr.bf16.mxu0 0
        %688 = vmatpush1.bf16.msra.mxu0 %v570
        %689 = vmatprep.subr.bf16.mxu0 0
        %690 = vmatpush1.bf16.msra.mxu0 %v573
        %691 = vmatprep.subr.bf16.mxu0 0
        %692 = vmatpush1.bf16.msra.mxu0 %v576
        %693 = vmatprep.subr.bf16.mxu0 0
        %694 = vmatpush1.bf16.msra.mxu0 %v579
        %695 = vmatprep.subr.bf16.mxu0 0
        %696 = vmatpush1.bf16.msra.mxu0 %v582
        %697 = vmatprep.subr.bf16.mxu0 0
        %698 = vmatpush1.bf16.msra.mxu0 %v585
        %699 = vmatprep.subr.bf16.mxu0 0
        %700 = vmatpush1.bf16.msra.mxu0 0
        %701 = vmatprep.subr.bf16.mxu0 0
        %702 = vmatpush1.bf16.msra.mxu0 0
        %703 = vmatprep.subr.bf16.mxu0 0
        %704 = vmatpush1.bf16.msra.mxu0 0
        %705 = vmatprep.subr.bf16.mxu0 0
        %706 = vmatpush1.bf16.msra.mxu0 0
        %707 = vmatprep.subr.bf16.mxu0 0
        %708 = vmatpush1.bf16.msra.mxu0 0
        %709 = vmatprep.subr.bf16.mxu0 0
        %710 = vmatpush1.bf16.msra.mxu0 0
        %711 = vmatprep.subr.bf16.mxu0 0
        %712 = vmatpush1.bf16.msra.mxu0 0
        %713 = vmatprep.subr.bf16.mxu0 0
        %714 = vmatpush1.bf16.msra.mxu0 0
        %715 = vmatprep.mubr.bf16.mxu0 0
        %716 = vmatmul.mubr.bf16.gmra.mrb[0].mxu0 %v474
        %v717 = vpop.f32.mrb[0].mxu0
        %v718 = vadd.f32 %v454, %v717
        %v719 = vpop.f32.mrb[0].mxu0
        %v720 = vpop.f32.mrb[0].mxu0
        %v721 = vadd.f32 %v454, %v720
        %v722 = vpop.f32.mrb[0].mxu0
        %723 = vmatprep.mubr.bf16.mxu0 0
        %724 = vmatmul.mubr.bf16.gmra.mrb[0].mxu0 %v475
        %v725 = vpop.f32.mrb[0].mxu0
        %v726 = vadd.f32 %v454, %v725
        %v727 = vpop.f32.mrb[0].mxu0
        %v728 = vpop.f32.mrb[0].mxu0
        %v729 = vadd.f32 %v454, %v728
        %v730 = vpop.f32.mrb[0].mxu0
        %731 = vmatprep.mubr.bf16.mxu0 0
        %732 = vmatmul.mubr.bf16.gmra.mrb[0].mxu0 %v476
        %v733 = vpop.f32.mrb[0].mxu0
        %v734 = vadd.f32 %v454, %v733
        %v735 = vpop.f32.mrb[0].mxu0
        %v736 = vpop.f32.mrb[0].mxu0
        %v737 = vadd.f32 %v454, %v736
        %v738 = vpop.f32.mrb[0].mxu0
        %739 = vmatprep.mubr.bf16.mxu0 0
        %740 = vmatmul.mubr.bf16.gmra.mrb[0].mxu0 %v477
        %v741 = vpop.f32.mrb[0].mxu0
        %v742 = vadd.f32 %v454, %v741
        %v743 = vpop.f32.mrb[0].mxu0
        %v744 = vpop.f32.mrb[0].mxu0
        %v745 = vadd.f32 %v454, %v744
        %v746 = vpop.f32.mrb[0].mxu0
        %747 = vdwg.mxu0
        %748 = vst [vmem:[#allocation2] sm:$0xff] %v645
        %749 = vst [vmem:[#allocation2 + $0x8] sm:$0xff] %v647
        %750 = vst [vmem:[#allocation2 + $0x10] sm:$0xff] %v718
        %751 = vst [vmem:[#allocation2 + $0x18] sm:$0xff] %v649
        %752 = vst [vmem:[#allocation2 + $0x20] sm:$0xff] %v651
        %753 = vst [vmem:[#allocation2 + $0x28] sm:$0xff] %v721
        %754 = vst [vmem:[#allocation2 + $0x30] sm:$0xff] %v655
        %755 = vst [vmem:[#allocation2 + $0x38] sm:$0xff] %v657
        %756 = vst [vmem:[#allocation2 + $0x40] sm:$0xff] %v726
        %757 = vst [vmem:[#allocation2 + $0x48] sm:$0xff] %v659
        %758 = vst [vmem:[#allocation2 + $0x50] sm:$0xff] %v661
        %759 = vst [vmem:[#allocation2 + $0x58] sm:$0xff] %v729
        %760 = vst [vmem:[#allocation2 + $0x60] sm:$0xff] %v665
        %761 = vst [vmem:[#allocation2 + $0x68] sm:$0xff] %v667
        %762 = vst [vmem:[#allocation2 + $0x70] sm:$0xff] %v734
        %763 = vst [vmem:[#allocation2 + $0x78] sm:$0xff] %v669
        %764 = vst [vmem:[#allocation2 + $0x80] sm:$0xff] %v671
        %765 = vst [vmem:[#allocation2 + $0x88] sm:$0xff] %v737
        %766 = vst [vmem:[#allocation2 + $0x90] sm:$0xff] %v675
        %767 = vst [vmem:[#allocation2 + $0x98] sm:$0xff] %v677
        %768 = vst [vmem:[#allocation2 + $0xa0] sm:$0xff] %v742
        %769 = vst [vmem:[#allocation2 + $0xa8] sm:$0xff] %v679
        %770 = vst [vmem:[#allocation2 + $0xb0] sm:$0xff] %v681
        %771 = vst [vmem:[#allocation2 + $0xb8] sm:$0xff] %v745
        %v772 = vld [vmem:[#allocation6] sm:$0xff]
        %v773 = vld [vmem:[#allocation6 + $0x8] sm:$0xf]
        %v774 = vld [vmem:[#allocation6 + $0xc] sm:$0xff]
        %v775 = vld [vmem:[#allocation6 + $0x14] sm:$0xf]
        %v776 = vld [vmem:[#allocation6 + $0x18] sm:$0xff]
        %v777 = vld [vmem:[#allocation6 + $0x20] sm:$0xf]
        %v778 = vld [vmem:[#allocation6 + $0x24] sm:$0xff]
        %v779 = vld [vmem:[#allocation6 + $0x2c] sm:$0xf]
        %v780 = vld [vmem:[#allocation6 + $0x30] sm:$0xff]
        %v781 = vld [vmem:[#allocation6 + $0x38] sm:$0xf]
        %v782 = vld [vmem:[#allocation6 + $0x3c] sm:$0xff]
        %v783 = vld [vmem:[#allocation6 + $0x44] sm:$0xf]
        %v784 = vld [vmem:[#allocation6 + $0x48] sm:$0xff]
        %v785 = vld [vmem:[#allocation6 + $0x50] sm:$0xf]
        %v786 = vld [vmem:[#allocation6 + $0x54] sm:$0xff]
        %v787 = vld [vmem:[#allocation6 + $0x5c] sm:$0xf]
        %v788 = vld [vmem:[#allocation6 + $0x60] sm:$0xff]
        %v789 = vld [vmem:[#allocation6 + $0x68] sm:$0xf]
        %v790 = vld [vmem:[#allocation6 + $0x6c] sm:$0xff]
        %v791 = vld [vmem:[#allocation6 + $0x74] sm:$0xf]
        %v792 = vld [vmem:[#allocation6 + $0x78] sm:$0xff]
        %v793 = vld [vmem:[#allocation6 + $0x80] sm:$0xf]
        %v794 = vld [vmem:[#allocation6 + $0x84] sm:$0xff]
        %v795 = vld [vmem:[#allocation6 + $0x8c] sm:$0xf]
        %v796 = vld [vmem:[#allocation6 + $0x90] sm:$0xff]
        %v797 = vld [vmem:[#allocation6 + $0x98] sm:$0xf]
        %v798 = vld [vmem:[#allocation6 + $0x9c] sm:$0xff]
        %v799 = vld [vmem:[#allocation6 + $0xa4] sm:$0xf]
        %v800 = vld [vmem:[#allocation6 + $0xa8] sm:$0xff]
        %v801 = vld [vmem:[#allocation6 + $0xb0] sm:$0xf]
        %v802 = vld [vmem:[#allocation6 + $0xb4] sm:$0xff]
        %v803 = vld [vmem:[#allocation6 + $0xbc] sm:$0xf]
        %v804 = vld [vmem:[%s5] sm:$0x1]
        %v806 = vlaneseq
        %v807 = vshrl.u32 %v806, 7
        %v808 = vsub.s32 0, %v807
        %v809 = vrot.slane %v804, %v808
        %v811 = vld [vmem:[#allocation3] sm:$0xff]
        %v812 = vld [vmem:[#allocation3 + $0x8] sm:$0xff]
        %v813 = vld [vmem:[#allocation2] sm:$0xff]
        %v814 = vld [vmem:[#allocation2 + $0x8] sm:$0xff]
        %v815 = vld [vmem:[#allocation2 + $0x10] sm:$0xff]
        %v816 = vld [vmem:[#allocation2 + $0x18] sm:$0xff]
        %v817 = vld [vmem:[#allocation2 + $0x20] sm:$0xff]
        %v818 = vld [vmem:[#allocation2 + $0x28] sm:$0xff]
        %v819 = vpack.c.bf16 %v812, %v811
        %v852 = vunpack.c.l.b16 %v772
        %v853 = vunpack.c.h.b16 %v772
        %v854 = vunpack.c.l.b16 %v773
        %v855 = vunpack.c.l.b16 %v774
        %v856 = vunpack.c.h.b16 %v774
        %v857 = vunpack.c.l.b16 %v775
        %v858 = vunpack.c.l.b16 %v776
        %v859 = vunpack.c.h.b16 %v776
        %v860 = vunpack.c.l.b16 %v777
        %v861 = vunpack.c.l.b16 %v778
        %v862 = vunpack.c.h.b16 %v778
        %v863 = vunpack.c.l.b16 %v779
        %v864 = vunpack.c.l.b16 %v780
        %v865 = vunpack.c.h.b16 %v780
        %v866 = vunpack.c.l.b16 %v781
        %v867 = vunpack.c.l.b16 %v782
        %v868 = vunpack.c.h.b16 %v782
        %v869 = vunpack.c.l.b16 %v783
        %v870 = vunpack.c.l.b16 %v784
        %v871 = vunpack.c.h.b16 %v784
        %v872 = vunpack.c.l.b16 %v785
        %v873 = vunpack.c.l.b16 %v786
        %v874 = vunpack.c.h.b16 %v786
        %v875 = vunpack.c.l.b16 %v787
        %v876 = vunpack.c.l.b16 %v788
        %v877 = vunpack.c.h.b16 %v788
        %v878 = vunpack.c.l.b16 %v789
        %v879 = vunpack.c.l.b16 %v790
        %v880 = vunpack.c.h.b16 %v790
        %v881 = vunpack.c.l.b16 %v791
        %v882 = vunpack.c.l.b16 %v792
        %v883 = vunpack.c.h.b16 %v792
        %v884 = vunpack.c.l.b16 %v793
        %v885 = vunpack.c.l.b16 %v794
        %v886 = vunpack.c.h.b16 %v794
        %v887 = vunpack.c.l.b16 %v795
        %v888 = vunpack.c.l.b16 %v796
        %v889 = vunpack.c.h.b16 %v796
        %v890 = vunpack.c.l.b16 %v797
        %v891 = vunpack.c.l.b16 %v798
        %v892 = vunpack.c.h.b16 %v798
        %v893 = vunpack.c.l.b16 %v799
        %v894 = vunpack.c.l.b16 %v800
        %v895 = vunpack.c.h.b16 %v800
        %v896 = vunpack.c.l.b16 %v801
        %v897 = vunpack.c.l.b16 %v802
        %v898 = vunpack.c.h.b16 %v802
        %v899 = vunpack.c.l.b16 %v803
        %v900 = vpack.c.b16 %v855, %v852
        %v901 = vpack.c.b16 %v856, %v853
        %v902 = vpack.c.b16 %v857, %v854
        %v903 = vpack.c.b16 %v861, %v858
        %v904 = vpack.c.b16 %v862, %v859
        %v905 = vpack.c.b16 %v863, %v860
        %v906 = vpack.c.b16 %v867, %v864
        %v907 = vpack.c.b16 %v868, %v865
        %v908 = vpack.c.b16 %v869, %v866
        %v909 = vpack.c.b16 %v873, %v870
        %v910 = vpack.c.b16 %v874, %v871
        %v911 = vpack.c.b16 %v875, %v872
        %v912 = vpack.c.b16 %v879, %v876
        %v913 = vpack.c.b16 %v880, %v877
        %v914 = vpack.c.b16 %v881, %v878
        %v915 = vpack.c.b16 %v885, %v882
        %v916 = vpack.c.b16 %v886, %v883
        %v917 = vpack.c.b16 %v887, %v884
        %v918 = vpack.c.b16 %v891, %v888
        %v919 = vpack.c.b16 %v892, %v889
        %v920 = vpack.c.b16 %v893, %v890
        %v921 = vpack.c.b16 %v897, %v894
        %v922 = vpack.c.b16 %v898, %v895
        %v923 = vpack.c.b16 %v899, %v896
        %948 = vmatprep.subr.bf16.mxu0 %v901
        %949 = vmatpush1.bf16.msra.mxu0 %v900
        %950 = vmatprep.subr.bf16.mxu0 %v904
        %951 = vmatpush1.bf16.msra.mxu0 %v903
        %952 = vmatprep.subr.bf16.mxu0 %v907
        %953 = vmatpush1.bf16.msra.mxu0 %v906
        %954 = vmatprep.subr.bf16.mxu0 %v910
        %955 = vmatpush1.bf16.msra.mxu0 %v909
        %956 = vmatprep.subr.bf16.mxu0 %v913
        %957 = vmatpush1.bf16.msra.mxu0 %v912
        %958 = vmatprep.subr.bf16.mxu0 %v916
        %959 = vmatpush1.bf16.msra.mxu0 %v915
        %960 = vmatprep.subr.bf16.mxu0 %v919
        %961 = vmatpush1.bf16.msra.mxu0 %v918
        %962 = vmatprep.subr.bf16.mxu0 %v922
        %963 = vmatpush1.bf16.msra.mxu0 %v921
        %964 = vmatprep.subr.bf16.mxu0 0
        %965 = vmatpush1.bf16.msra.mxu0 0
        %966 = vmatprep.subr.bf16.mxu0 0
        %967 = vmatpush1.bf16.msra.mxu0 0
        %968 = vmatprep.subr.bf16.mxu0 0
        %969 = vmatpush1.bf16.msra.mxu0 0
        %970 = vmatprep.subr.bf16.mxu0 0
        %971 = vmatpush1.bf16.msra.mxu0 0
        %972 = vmatprep.subr.bf16.mxu0 0
        %973 = vmatpush1.bf16.msra.mxu0 0
        %974 = vmatprep.subr.bf16.mxu0 0
        %975 = vmatpush1.bf16.msra.mxu0 0
        %976 = vmatprep.subr.bf16.mxu0 0
        %977 = vmatpush1.bf16.msra.mxu0 0
        %978 = vmatprep.subr.bf16.mxu0 0
        %979 = vmatpush1.bf16.msra.mxu0 0
        %980 = vmatprep.mubr.bf16.mxu0 0
        %981 = vmatmul.mubr.bf16.gmra.mrb[0].mxu0 %v819
        %v982 = vpop.f32.mrb[0].mxu0
        %v983 = vadd.f32 0.0, %v982
        %v984 = vpop.f32.mrb[0].mxu0
        %v985 = vadd.f32 0.0, %v984
        %v986 = vpop.f32.mrb[0].mxu0
        %v987 = vadd.f32 0.0, %v986
        %v988 = vpop.f32.mrb[0].mxu0
        %v989 = vadd.f32 0.0, %v988
        %990 = vdwg.mxu0
        %991 = vmatprep.subr.bf16.mxu0 0
        %992 = vmatpush1.bf16.msra.mxu0 %v902
        %993 = vmatprep.subr.bf16.mxu0 0
        %994 = vmatpush1.bf16.msra.mxu0 %v905
        %995 = vmatprep.subr.bf16.mxu0 0
        %996 = vmatpush1.bf16.msra.mxu0 %v908
        %997 = vmatprep.subr.bf16.mxu0 0
        %998 = vmatpush1.bf16.msra.mxu0 %v911
        %999 = vmatprep.subr.bf16.mxu0 0
        %1000 = vmatpush1.bf16.msra.mxu0 %v914
        %1001 = vmatprep.subr.bf16.mxu0 0
        %1002 = vmatpush1.bf16.msra.mxu0 %v917
        %1003 = vmatprep.subr.bf16.mxu0 0
        %1004 = vmatpush1.bf16.msra.mxu0 %v920
        %1005 = vmatprep.subr.bf16.mxu0 0
        %1006 = vmatpush1.bf16.msra.mxu0 %v923
        %1007 = vmatprep.subr.bf16.mxu0 0
        %1008 = vmatpush1.bf16.msra.mxu0 0
        %1009 = vmatprep.subr.bf16.mxu0 0
        %1010 = vmatpush1.bf16.msra.mxu0 0
        %1011 = vmatprep.subr.bf16.mxu0 0
        %1012 = vmatpush1.bf16.msra.mxu0 0
        %1013 = vmatprep.subr.bf16.mxu0 0
        %1014 = vmatpush1.bf16.msra.mxu0 0
        %1015 = vmatprep.subr.bf16.mxu0 0
        %1016 = vmatpush1.bf16.msra.mxu0 0
        %1017 = vmatprep.subr.bf16.mxu0 0
        %1018 = vmatpush1.bf16.msra.mxu0 0
        %1019 = vmatprep.subr.bf16.mxu0 0
        %1020 = vmatpush1.bf16.msra.mxu0 0
        %1021 = vmatprep.subr.bf16.mxu0 0
        %1022 = vmatpush1.bf16.msra.mxu0 0
        %1023 = vmatprep.mubr.bf16.mxu0 0
        %1024 = vmatmul.mubr.bf16.gmra.mrb[0].mxu0 %v819
        %v1025 = vpop.f32.mrb[0].mxu0
        %v1026 = vadd.f32 0.0, %v1025
        %v1027 = vpop.f32.mrb[0].mxu0
        %v1028 = vpop.f32.mrb[0].mxu0
        %v1029 = vadd.f32 0.0, %v1028
        %v1030 = vpop.f32.mrb[0].mxu0
        %1031 = vdwg.mxu0
        %v1032 = vadd.f32 %v813, %v983
        %v1033 = vadd.f32 %v816, %v987
        %v1034 = vxor.u32 %v1032, 2147483648
        %v1035 = vxor.u32 %v1033, 2147483648
        %v1036 = vmul.f32 %v1034, 1.442695
        %v1037 = vpow.pop %v1036
        %v1038 = vmul.f32 %v1035, 1.442695
        %v1039 = vpow.pop %v1038
        %v1040 = vadd.f32 %v1037, 1.0
        %v1041 = vadd.f32 %v1039, 1.0
        %v1042 = vrcp.pop %v1040
        %v1043 = vmul.f32 1.0, %v1042
        %v1044 = vrcp.pop %v1041
        %v1045 = vmul.f32 1.0, %v1044
        %v1046 = vadd.f32 %v814, %v985
        %v1047 = vadd.f32 %v817, %v989
        %v1048 = vxor.u32 %v1046, 2147483648
        %v1049 = vxor.u32 %v1047, 2147483648
        %v1050 = vmul.f32 %v1048, 1.442695
        %v1051 = vpow.pop %v1050
        %v1052 = vmul.f32 %v1049, 1.442695
        %v1053 = vpow.pop %v1052
        %v1054 = vadd.f32 %v1051, 1.0
        %v1055 = vadd.f32 %v1053, 1.0
        %v1056 = vrcp.pop %v1054
        %v1057 = vmul.f32 1.0, %v1056
        %v1058 = vrcp.pop %v1055
        %v1059 = vmul.f32 1.0, %v1058
        %v1060 = vadd.f32 %v1026, %v809
        %v1061 = vadd.f32 %v1029, %v809
        %v1062 = vmul.f32 %v1043, %v1060
        %v1063 = vmul.f32 %v1045, %v1061
        %v1064 = vadd.f32 %v815, %v1062
        %v1065 = vadd.f32 %v818, %v1063
        %v1066 = vtanh.pop %v1064
        %v1067 = vtanh.pop %v1065
        %v1068 = vsub.f32 1.0, %v1057
        %v1069 = vsub.f32 1.0, %v1059
        %v1070 = vmul.f32 %v1068, %v1066
        %v1071 = vmul.f32 %v1069, %v1067
        %v1072 = vmul.f32 %v1057, %v811
        %v1073 = vmul.f32 %v1059, %v812
        %v1074 = vadd.f32 %v1070, %v1072
        %v1075 = vadd.f32 %v1071, %v1073
        %v1076 = vpack.c.bf16 %v1075, %v1074
        %v1078 = vunpack.c.l.b16 %v1076
        %v1079 = vunpack.c.h.b16 %v1076
        %v1080 = vpack.c.b16 %v1078, %v1078
        %v1081 = vpack.c.b16 %v1079, %v1079
        %1084 = vst [vmem:[%s383] sm:$0xf] %v1080
        %1085 = vst [vmem:[%s383 + $0x4] sm:$0xf] %v1081
        %s1086 = scalar_lea.vmem [#allocation2], 48
        %v1087 = vld [vmem:[%s1086] sm:$0xff]
        %v1088 = vld [vmem:[%s1086 + $0x8] sm:$0xff]
        %v1089 = vld [vmem:[%s1086 + $0x10] sm:$0xff]
        %v1090 = vld [vmem:[%s1086 + $0x18] sm:$0xff]
        %v1091 = vld [vmem:[%s1086 + $0x20] sm:$0xff]
        %v1092 = vld [vmem:[%s1086 + $0x28] sm:$0xff]
        %1093 = vmatprep.subr.bf16.mxu0 %v901
        %1094 = vmatpush1.bf16.msra.mxu0 %v900
        %1095 = vmatprep.subr.bf16.mxu0 %v904
        %1096 = vmatpush1.bf16.msra.mxu0 %v903
        %1097 = vmatprep.subr.bf16.mxu0 %v907
        %1098 = vmatpush1.bf16.msra.mxu0 %v906
        %1099 = vmatprep.subr.bf16.mxu0 %v910
        %1100 = vmatpush1.bf16.msra.mxu0 %v909
        %1101 = vmatprep.subr.bf16.mxu0 %v913
        %1102 = vmatpush1.bf16.msra.mxu0 %v912
        %1103 = vmatprep.subr.bf16.mxu0 %v916
        %1104 = vmatpush1.bf16.msra.mxu0 %v915
        %1105 = vmatprep.subr.bf16.mxu0 %v919
        %1106 = vmatpush1.bf16.msra.mxu0 %v918
        %1107 = vmatprep.subr.bf16.mxu0 %v922
        %1108 = vmatpush1.bf16.msra.mxu0 %v921
        %1109 = vmatprep.subr.bf16.mxu0 0
        %1110 = vmatpush1.bf16.msra.mxu0 0
        %1111 = vmatprep.subr.bf16.mxu0 0
        %1112 = vmatpush1.bf16.msra.mxu0 0
        %1113 = vmatprep.subr.bf16.mxu0 0
        %1114 = vmatpush1.bf16.msra.mxu0 0
        %1115 = vmatprep.subr.bf16.mxu0 0
        %1116 = vmatpush1.bf16.msra.mxu0 0
        %1117 = vmatprep.subr.bf16.mxu0 0
        %1118 = vmatpush1.bf16.msra.mxu0 0
        %1119 = vmatprep.subr.bf16.mxu0 0
        %1120 = vmatpush1.bf16.msra.mxu0 0
        %1121 = vmatprep.subr.bf16.mxu0 0
        %1122 = vmatpush1.bf16.msra.mxu0 0
        %1123 = vmatprep.subr.bf16.mxu0 0
        %1124 = vmatpush1.bf16.msra.mxu0 0
        %1125 = vmatprep.mubr.bf16.mxu0 0
        %1126 = vmatmul.mubr.bf16.gmra.mrb[0].mxu0 %v1076
        %v1127 = vpop.f32.mrb[0].mxu0
        %v1128 = vadd.f32 0.0, %v1127
        %v1129 = vpop.f32.mrb[0].mxu0
        %v1130 = vadd.f32 0.0, %v1129
        %v1131 = vpop.f32.mrb[0].mxu0
        %v1132 = vadd.f32 0.0, %v1131
        %v1133 = vpop.f32.mrb[0].mxu0
        %v1134 = vadd.f32 0.0, %v1133
        %1135 = vdwg.mxu0
        %1136 = vmatprep.subr.bf16.mxu0 0
        %1137 = vmatpush1.bf16.msra.mxu0 %v902
        %1138 = vmatprep.subr.bf16.mxu0 0
        %1139 = vmatpush1.bf16.msra.mxu0 %v905
        %1140 = vmatprep.subr.bf16.mxu0 0
        %1141 = vmatpush1.bf16.msra.mxu0 %v908
        %1142 = vmatprep.subr.bf16.mxu0 0
        %1143 = vmatpush1.bf16.msra.mxu0 %v911
        %1144 = vmatprep.subr.bf16.mxu0 0
        %1145 = vmatpush1.bf16.msra.mxu0 %v914
        %1146 = vmatprep.subr.bf16.mxu0 0
        %1147 = vmatpush1.bf16.msra.mxu0 %v917
        %1148 = vmatprep.subr.bf16.mxu0 0
        %1149 = vmatpush1.bf16.msra.mxu0 %v920
        %1150 = vmatprep.subr.bf16.mxu0 0
        %1151 = vmatpush1.bf16.msra.mxu0 %v923
        %1152 = vmatprep.subr.bf16.mxu0 0
        %1153 = vmatpush1.bf16.msra.mxu0 0
        %1154 = vmatprep.subr.bf16.mxu0 0
        %1155 = vmatpush1.bf16.msra.mxu0 0
        %1156 = vmatprep.subr.bf16.mxu0 0
        %1157 = vmatpush1.bf16.msra.mxu0 0
        %1158 = vmatprep.subr.bf16.mxu0 0
        %1159 = vmatpush1.bf16.msra.mxu0 0
        %1160 = vmatprep.subr.bf16.mxu0 0
        %1161 = vmatpush1.bf16.msra.mxu0 0
        %1162 = vmatprep.subr.bf16.mxu0 0
        %1163 = vmatpush1.bf16.msra.mxu0 0
        %1164 = vmatprep.subr.bf16.mxu0 0
        %1165 = vmatpush1.bf16.msra.mxu0 0
        %1166 = vmatprep.subr.bf16.mxu0 0
        %1167 = vmatpush1.bf16.msra.mxu0 0
        %1168 = vmatprep.mubr.bf16.mxu0 0
        %1169 = vmatmul.mubr.bf16.gmra.mrb[0].mxu0 %v1076
        %v1170 = vpop.f32.mrb[0].mxu0
        %v1171 = vadd.f32 0.0, %v1170
        %v1172 = vpop.f32.mrb[0].mxu0
        %v1173 = vpop.f32.mrb[0].mxu0
        %v1174 = vadd.f32 0.0, %v1173
        %v1175 = vpop.f32.mrb[0].mxu0
        %1176 = vdwg.mxu0
        %v1177 = vadd.f32 %v1087, %v1128
        %v1178 = vadd.f32 %v1090, %v1132
        %v1179 = vxor.u32 %v1177, 2147483648
        %v1180 = vxor.u32 %v1178, 2147483648
        %v1181 = vmul.f32 %v1179, 1.442695
        %v1182 = vpow.pop %v1181
        %v1183 = vmul.f32 %v1180, 1.442695
        %v1184 = vpow.pop %v1183
        %v1185 = vadd.f32 %v1182, 1.0
        %v1186 = vadd.f32 %v1184, 1.0
        %v1187 = vrcp.pop %v1185
        %v1188 = vmul.f32 1.0, %v1187
        %v1189 = vrcp.pop %v1186
        %v1190 = vmul.f32 1.0, %v1189
        %v1191 = vadd.f32 %v1088, %v1130
        %v1192 = vadd.f32 %v1091, %v1134
        %v1193 = vxor.u32 %v1191, 2147483648
        %v1194 = vxor.u32 %v1192, 2147483648
        %v1195 = vmul.f32 %v1193, 1.442695
        %v1196 = vpow.pop %v1195
        %v1197 = vmul.f32 %v1194, 1.442695
        %v1198 = vpow.pop %v1197
        %v1199 = vadd.f32 %v1196, 1.0
        %v1200 = vadd.f32 %v1198, 1.0
        %v1201 = vrcp.pop %v1199
        %v1202 = vmul.f32 1.0, %v1201
        %v1203 = vrcp.pop %v1200
        %v1204 = vmul.f32 1.0, %v1203
        %v1205 = vadd.f32 %v1171, %v809
        %v1206 = vadd.f32 %v1174, %v809
        %v1207 = vmul.f32 %v1188, %v1205
        %v1208 = vmul.f32 %v1190, %v1206
        %v1209 = vadd.f32 %v1089, %v1207
        %v1210 = vadd.f32 %v1092, %v1208
        %v1211 = vtanh.pop %v1209
        %v1212 = vtanh.pop %v1210
        %v1213 = vsub.f32 1.0, %v1202
        %v1214 = vsub.f32 1.0, %v1204
        %v1215 = vmul.f32 %v1213, %v1211
        %v1216 = vmul.f32 %v1214, %v1212
        %v1217 = vmul.f32 %v1202, %v1074
        %v1218 = vmul.f32 %v1204, %v1075
        %v1219 = vadd.f32 %v1215, %v1217
        %v1220 = vadd.f32 %v1216, %v1218
        %v1221 = vpack.c.bf16 %v1220, %v1219
        %v1223 = vunpack.c.l.b16 %v1221
        %v1224 = vunpack.c.h.b16 %v1221
        %v1225 = vpack.c.b16 %v1223, %v1223
        %v1226 = vpack.c.b16 %v1224, %v1224
        %s1229 = scalar_lea.vmem %s383, 8
        %1230 = vst [vmem:[%s1229] sm:$0xf] %v1225
        %1231 = vst [vmem:[%s1229 + $0x4] sm:$0xf] %v1226
        %s1232 = scalar_lea.vmem [#allocation2], 96
        %v1233 = vld [vmem:[%s1232] sm:$0xff]
        %v1234 = vld [vmem:[%s1232 + $0x8] sm:$0xff]
        %v1235 = vld [vmem:[%s1232 + $0x10] sm:$0xff]
        %v1236 = vld [vmem:[%s1232 + $0x18] sm:$0xff]
        %v1237 = vld [vmem:[%s1232 + $0x20] sm:$0xff]
        %v1238 = vld [vmem:[%s1232 + $0x28] sm:$0xff]
        %1239 = vmatprep.subr.bf16.mxu0 %v901
        %1240 = vmatpush1.bf16.msra.mxu0 %v900
        %1241 = vmatprep.subr.bf16.mxu0 %v904
        %1242 = vmatpush1.bf16.msra.mxu0 %v903
        %1243 = vmatprep.subr.bf16.mxu0 %v907
        %1244 = vmatpush1.bf16.msra.mxu0 %v906
        %1245 = vmatprep.subr.bf16.mxu0 %v910
        %1246 = vmatpush1.bf16.msra.mxu0 %v909
        %1247 = vmatprep.subr.bf16.mxu0 %v913
        %1248 = vmatpush1.bf16.msra.mxu0 %v912
        %1249 = vmatprep.subr.bf16.mxu0 %v916
        %1250 = vmatpush1.bf16.msra.mxu0 %v915
        %1251 = vmatprep.subr.bf16.mxu0 %v919
        %1252 = vmatpush1.bf16.msra.mxu0 %v918
        %1253 = vmatprep.subr.bf16.mxu0 %v922
        %1254 = vmatpush1.bf16.msra.mxu0 %v921
        %1255 = vmatprep.subr.bf16.mxu0 0
        %1256 = vmatpush1.bf16.msra.mxu0 0
        %1257 = vmatprep.subr.bf16.mxu0 0
        %1258 = vmatpush1.bf16.msra.mxu0 0
        %1259 = vmatprep.subr.bf16.mxu0 0
        %1260 = vmatpush1.bf16.msra.mxu0 0
        %1261 = vmatprep.subr.bf16.mxu0 0
        %1262 = vmatpush1.bf16.msra.mxu0 0
        %1263 = vmatprep.subr.bf16.mxu0 0
        %1264 = vmatpush1.bf16.msra.mxu0 0
        %1265 = vmatprep.subr.bf16.mxu0 0
        %1266 = vmatpush1.bf16.msra.mxu0 0
        %1267 = vmatprep.subr.bf16.mxu0 0
        %1268 = vmatpush1.bf16.msra.mxu0 0
        %1269 = vmatprep.subr.bf16.mxu0 0
        %1270 = vmatpush1.bf16.msra.mxu0 0
        %1271 = vmatprep.mubr.bf16.mxu0 0
        %1272 = vmatmul.mubr.bf16.gmra.mrb[0].mxu0 %v1221
        %v1273 = vpop.f32.mrb[0].mxu0
        %v1274 = vadd.f32 0.0, %v1273
        %v1275 = vpop.f32.mrb[0].mxu0
        %v1276 = vadd.f32 0.0, %v1275
        %v1277 = vpop.f32.mrb[0].mxu0
        %v1278 = vadd.f32 0.0, %v1277
        %v1279 = vpop.f32.mrb[0].mxu0
        %v1280 = vadd.f32 0.0, %v1279
        %1281 = vdwg.mxu0
        %1282 = vmatprep.subr.bf16.mxu0 0
        %1283 = vmatpush1.bf16.msra.mxu0 %v902
        %1284 = vmatprep.subr.bf16.mxu0 0
        %1285 = vmatpush1.bf16.msra.mxu0 %v905
        %1286 = vmatprep.subr.bf16.mxu0 0
        %1287 = vmatpush1.bf16.msra.mxu0 %v908
        %1288 = vmatprep.subr.bf16.mxu0 0
        %1289 = vmatpush1.bf16.msra.mxu0 %v911
        %1290 = vmatprep.subr.bf16.mxu0 0
        %1291 = vmatpush1.bf16.msra.mxu0 %v914
        %1292 = vmatprep.subr.bf16.mxu0 0
        %1293 = vmatpush1.bf16.msra.mxu0 %v917
        %1294 = vmatprep.subr.bf16.mxu0 0
        %1295 = vmatpush1.bf16.msra.mxu0 %v920
        %1296 = vmatprep.subr.bf16.mxu0 0
        %1297 = vmatpush1.bf16.msra.mxu0 %v923
        %1298 = vmatprep.subr.bf16.mxu0 0
        %1299 = vmatpush1.bf16.msra.mxu0 0
        %1300 = vmatprep.subr.bf16.mxu0 0
        %1301 = vmatpush1.bf16.msra.mxu0 0
        %1302 = vmatprep.subr.bf16.mxu0 0
        %1303 = vmatpush1.bf16.msra.mxu0 0
        %1304 = vmatprep.subr.bf16.mxu0 0
        %1305 = vmatpush1.bf16.msra.mxu0 0
        %1306 = vmatprep.subr.bf16.mxu0 0
        %1307 = vmatpush1.bf16.msra.mxu0 0
        %1308 = vmatprep.subr.bf16.mxu0 0
        %1309 = vmatpush1.bf16.msra.mxu0 0
        %1310 = vmatprep.subr.bf16.mxu0 0
        %1311 = vmatpush1.bf16.msra.mxu0 0
        %1312 = vmatprep.subr.bf16.mxu0 0
        %1313 = vmatpush1.bf16.msra.mxu0 0
        %1314 = vmatprep.mubr.bf16.mxu0 0
        %1315 = vmatmul.mubr.bf16.gmra.mrb[0].mxu0 %v1221
        %v1316 = vpop.f32.mrb[0].mxu0
        %v1317 = vadd.f32 0.0, %v1316
        %v1318 = vpop.f32.mrb[0].mxu0
        %v1319 = vpop.f32.mrb[0].mxu0
        %v1320 = vadd.f32 0.0, %v1319
        %v1321 = vpop.f32.mrb[0].mxu0
        %1322 = vdwg.mxu0
        %v1323 = vadd.f32 %v1233, %v1274
        %v1324 = vadd.f32 %v1236, %v1278
        %v1325 = vxor.u32 %v1323, 2147483648
        %v1326 = vxor.u32 %v1324, 2147483648
        %v1327 = vmul.f32 %v1325, 1.442695
        %v1328 = vpow.pop %v1327
        %v1329 = vmul.f32 %v1326, 1.442695
        %v1330 = vpow.pop %v1329
        %v1331 = vadd.f32 %v1328, 1.0
        %v1332 = vadd.f32 %v1330, 1.0
        %v1333 = vrcp.pop %v1331
        %v1334 = vmul.f32 1.0, %v1333
        %v1335 = vrcp.pop %v1332
        %v1336 = vmul.f32 1.0, %v1335
        %v1337 = vadd.f32 %v1234, %v1276
        %v1338 = vadd.f32 %v1237, %v1280
        %v1339 = vxor.u32 %v1337, 2147483648
        %v1340 = vxor.u32 %v1338, 2147483648
        %v1341 = vmul.f32 %v1339, 1.442695
        %v1342 = vpow.pop %v1341
        %v1343 = vmul.f32 %v1340, 1.442695
        %v1344 = vpow.pop %v1343
        %v1345 = vadd.f32 %v1342, 1.0
        %v1346 = vadd.f32 %v1344, 1.0
        %v1347 = vrcp.pop %v1345
        %v1348 = vmul.f32 1.0, %v1347
        %v1349 = vrcp.pop %v1346
        %v1350 = vmul.f32 1.0, %v1349
        %v1351 = vadd.f32 %v1317, %v809
        %v1352 = vadd.f32 %v1320, %v809
        %v1353 = vmul.f32 %v1334, %v1351
        %v1354 = vmul.f32 %v1336, %v1352
        %v1355 = vadd.f32 %v1235, %v1353
        %v1356 = vadd.f32 %v1238, %v1354
        %v1357 = vtanh.pop %v1355
        %v1358 = vtanh.pop %v1356
        %v1359 = vsub.f32 1.0, %v1348
        %v1360 = vsub.f32 1.0, %v1350
        %v1361 = vmul.f32 %v1359, %v1357
        %v1362 = vmul.f32 %v1360, %v1358
        %v1363 = vmul.f32 %v1348, %v1219
        %v1364 = vmul.f32 %v1350, %v1220
        %v1365 = vadd.f32 %v1361, %v1363
        %v1366 = vadd.f32 %v1362, %v1364
        %v1367 = vpack.c.bf16 %v1366, %v1365
        %v1369 = vunpack.c.l.b16 %v1367
        %v1370 = vunpack.c.h.b16 %v1367
        %v1371 = vpack.c.b16 %v1369, %v1369
        %v1372 = vpack.c.b16 %v1370, %v1370
        %s1375 = scalar_lea.vmem %s383, 16
        %1376 = vst [vmem:[%s1375] sm:$0xf] %v1371
        %1377 = vst [vmem:[%s1375 + $0x4] sm:$0xf] %v1372
        %s1378 = scalar_lea.vmem [#allocation2], 144
        %v1379 = vld [vmem:[%s1378] sm:$0xff]
        %v1380 = vld [vmem:[%s1378 + $0x8] sm:$0xff]
        %v1381 = vld [vmem:[%s1378 + $0x10] sm:$0xff]
        %v1382 = vld [vmem:[%s1378 + $0x18] sm:$0xff]
        %v1383 = vld [vmem:[%s1378 + $0x20] sm:$0xff]
        %v1384 = vld [vmem:[%s1378 + $0x28] sm:$0xff]
        %1385 = vmatprep.subr.bf16.mxu0 %v901
        %1386 = vmatpush1.bf16.msra.mxu0 %v900
        %1387 = vmatprep.subr.bf16.mxu0 %v904
        %1388 = vmatpush1.bf16.msra.mxu0 %v903
        %1389 = vmatprep.subr.bf16.mxu0 %v907
        %1390 = vmatpush1.bf16.msra.mxu0 %v906
        %1391 = vmatprep.subr.bf16.mxu0 %v910
        %1392 = vmatpush1.bf16.msra.mxu0 %v909
        %1393 = vmatprep.subr.bf16.mxu0 %v913
        %1394 = vmatpush1.bf16.msra.mxu0 %v912
        %1395 = vmatprep.subr.bf16.mxu0 %v916
        %1396 = vmatpush1.bf16.msra.mxu0 %v915
        %1397 = vmatprep.subr.bf16.mxu0 %v919
        %1398 = vmatpush1.bf16.msra.mxu0 %v918
        %1399 = vmatprep.subr.bf16.mxu0 %v922
        %1400 = vmatpush1.bf16.msra.mxu0 %v921
        %1401 = vmatprep.subr.bf16.mxu0 0
        %1402 = vmatpush1.bf16.msra.mxu0 0
        %1403 = vmatprep.subr.bf16.mxu0 0
        %1404 = vmatpush1.bf16.msra.mxu0 0
        %1405 = vmatprep.subr.bf16.mxu0 0
        %1406 = vmatpush1.bf16.msra.mxu0 0
        %1407 = vmatprep.subr.bf16.mxu0 0
        %1408 = vmatpush1.bf16.msra.mxu0 0
        %1409 = vmatprep.subr.bf16.mxu0 0
        %1410 = vmatpush1.bf16.msra.mxu0 0
        %1411 = vmatprep.subr.bf16.mxu0 0
        %1412 = vmatpush1.bf16.msra.mxu0 0
        %1413 = vmatprep.subr.bf16.mxu0 0
        %1414 = vmatpush1.bf16.msra.mxu0 0
        %1415 = vmatprep.subr.bf16.mxu0 0
        %1416 = vmatpush1.bf16.msra.mxu0 0
        %1417 = vmatprep.mubr.bf16.mxu0 0
        %1418 = vmatmul.mubr.bf16.gmra.mrb[0].mxu0 %v1367
        %v1419 = vpop.f32.mrb[0].mxu0
        %v1420 = vadd.f32 0.0, %v1419
        %v1421 = vpop.f32.mrb[0].mxu0
        %v1422 = vadd.f32 0.0, %v1421
        %v1423 = vpop.f32.mrb[0].mxu0
        %v1424 = vadd.f32 0.0, %v1423
        %v1425 = vpop.f32.mrb[0].mxu0
        %v1426 = vadd.f32 0.0, %v1425
        %1427 = vdwg.mxu0
        %1428 = vmatprep.subr.bf16.mxu0 0
        %1429 = vmatpush1.bf16.msra.mxu0 %v902
        %1430 = vmatprep.subr.bf16.mxu0 0
        %1431 = vmatpush1.bf16.msra.mxu0 %v905
        %1432 = vmatprep.subr.bf16.mxu0 0
        %1433 = vmatpush1.bf16.msra.mxu0 %v908
        %1434 = vmatprep.subr.bf16.mxu0 0
        %1435 = vmatpush1.bf16.msra.mxu0 %v911
        %1436 = vmatprep.subr.bf16.mxu0 0
        %1437 = vmatpush1.bf16.msra.mxu0 %v914
        %1438 = vmatprep.subr.bf16.mxu0 0
        %1439 = vmatpush1.bf16.msra.mxu0 %v917
        %1440 = vmatprep.subr.bf16.mxu0 0
        %1441 = vmatpush1.bf16.msra.mxu0 %v920
        %1442 = vmatprep.subr.bf16.mxu0 0
        %1443 = vmatpush1.bf16.msra.mxu0 %v923
        %1444 = vmatprep.subr.bf16.mxu0 0
        %1445 = vmatpush1.bf16.msra.mxu0 0
        %1446 = vmatprep.subr.bf16.mxu0 0
        %1447 = vmatpush1.bf16.msra.mxu0 0
        %1448 = vmatprep.subr.bf16.mxu0 0
        %1449 = vmatpush1.bf16.msra.mxu0 0
        %1450 = vmatprep.subr.bf16.mxu0 0
        %1451 = vmatpush1.bf16.msra.mxu0 0
        %1452 = vmatprep.subr.bf16.mxu0 0
        %1453 = vmatpush1.bf16.msra.mxu0 0
        %1454 = vmatprep.subr.bf16.mxu0 0
        %1455 = vmatpush1.bf16.msra.mxu0 0
        %1456 = vmatprep.subr.bf16.mxu0 0
        %1457 = vmatpush1.bf16.msra.mxu0 0
        %1458 = vmatprep.subr.bf16.mxu0 0
        %1459 = vmatpush1.bf16.msra.mxu0 0
        %1460 = vmatprep.mubr.bf16.mxu0 0
        %1461 = vmatmul.mubr.bf16.gmra.mrb[0].mxu0 %v1367
        %v1462 = vpop.f32.mrb[0].mxu0
        %v1463 = vadd.f32 0.0, %v1462
        %v1464 = vpop.f32.mrb[0].mxu0
        %v1465 = vpop.f32.mrb[0].mxu0
        %v1466 = vadd.f32 0.0, %v1465
        %v1467 = vpop.f32.mrb[0].mxu0
        %1468 = vdwg.mxu0
        %v1469 = vadd.f32 %v1379, %v1420
        %v1470 = vadd.f32 %v1382, %v1424
        %v1471 = vxor.u32 %v1469, 2147483648
        %v1472 = vxor.u32 %v1470, 2147483648
        %v1473 = vmul.f32 %v1471, 1.442695
        %v1474 = vpow.pop %v1473
        %v1475 = vmul.f32 %v1472, 1.442695
        %v1476 = vpow.pop %v1475
        %v1477 = vadd.f32 %v1474, 1.0
        %v1478 = vadd.f32 %v1476, 1.0
        %v1479 = vrcp.pop %v1477
        %v1480 = vmul.f32 1.0, %v1479
        %v1481 = vrcp.pop %v1478
        %v1482 = vmul.f32 1.0, %v1481
        %v1483 = vadd.f32 %v1380, %v1422
        %v1484 = vadd.f32 %v1383, %v1426
        %v1485 = vxor.u32 %v1483, 2147483648
        %v1486 = vxor.u32 %v1484, 2147483648
        %v1487 = vmul.f32 %v1485, 1.442695
        %v1488 = vpow.pop %v1487
        %v1489 = vmul.f32 %v1486, 1.442695
        %v1490 = vpow.pop %v1489
        %v1491 = vadd.f32 %v1488, 1.0
        %v1492 = vadd.f32 %v1490, 1.0
        %v1493 = vrcp.pop %v1491
        %v1494 = vmul.f32 1.0, %v1493
        %v1495 = vrcp.pop %v1492
        %v1496 = vmul.f32 1.0, %v1495
        %v1497 = vadd.f32 %v1463, %v809
        %v1498 = vadd.f32 %v1466, %v809
        %v1499 = vmul.f32 %v1480, %v1497
        %v1500 = vmul.f32 %v1482, %v1498
        %v1501 = vadd.f32 %v1381, %v1499
        %v1502 = vadd.f32 %v1384, %v1500
        %v1503 = vtanh.pop %v1501
        %v1504 = vtanh.pop %v1502
        %v1505 = vsub.f32 1.0, %v1494
        %v1506 = vsub.f32 1.0, %v1496
        %v1507 = vmul.f32 %v1505, %v1503
        %v1508 = vmul.f32 %v1506, %v1504
        %v1509 = vmul.f32 %v1494, %v1365
        %v1510 = vmul.f32 %v1496, %v1366
        %v1511 = vadd.f32 %v1507, %v1509
        %v1512 = vadd.f32 %v1508, %v1510
        %v1513 = vpack.c.bf16 %v1512, %v1511
        %v1515 = vunpack.c.l.b16 %v1513
        %v1516 = vunpack.c.h.b16 %v1513
        %v1517 = vpack.c.b16 %v1515, %v1515
        %v1518 = vpack.c.b16 %v1516, %v1516
        %s1521 = scalar_lea.vmem %s383, 24
        %1522 = vst [vmem:[%s1521] sm:$0xf] %v1517
        %1523 = vst [vmem:[%s1521 + $0x4] sm:$0xf] %v1518
        %1524 = vst [vmem:[#allocation3] sm:$0xff] %v1511
        %1525 = vst [vmem:[#allocation3 + $0x8] sm:$0xff] %v1512
        %p1526 = scmp.eq.s32.totalorder %s26, 1
        // Predicated region
        $region57: #{grunet_forward.2} parent=43 // pred_check
          %p1527 = pneg %p1526
        $region58: #{grunet_forward.2} parent=43 // pred_check_branch
          %1529 = sbr.rel (%p1527) target = $region60
        $region59: #{grunet_forward.2} parent=43 // pred_region
          %1530 = vst [vmem:[%s390] sm:$0xff] %v1511
          %1531 = vst [vmem:[%s390 + $0x8] sm:$0xff] %v1512
        $region60: #{grunet_forward.2} parent=43 // pred_fallthru
          _
        %s1532 = smul.u32 4, %s26
        %s1533 = smul.u32 2, %s25
        %p1534 = scmp.lt.s32.totalorder %s1532, 7
        %s1535 = scalar_select %p1534, %s1532, 7
        %p1536 = scmp.lt.s32.totalorder %s1533, 1
        %s1537 = scalar_select %p1536, %s1533, 1
        %s1538 = smul.addr %s1535, 2
        %s1539 = sadd.s32 %s1537, %s1538
        %s1540 = smul.addr %s1539, 4
        %s1541 = scalar_lea.vmem %s6, %s1540
        %s1542 = smul.u32 2, %s25
        %p1543 = scmp.lt.s32.totalorder %s1542, 1
        %s1544 = scalar_select %p1543, %s1542, 1
        %s1545 = smul.addr %s1544, 8
        %s1546 = scalar_lea.vmem %s7, %s1545
        // Predicated region
        $region61: #{grunet_forward.2} parent=43 // pred_check
          %p1547 = pneg %p191
        $region62: #{grunet_forward.2} parent=43 // pred_check_branch
          %1549 = sbr.rel (%p1547) target = $region64
        $region63: #{grunet_forward.2} parent=43 // pred_region
          %s1550 = smul.u32 4, %s26
          %s1551 = smul.u32 2, %s25
        $region64: #{grunet_forward.2} parent=43 // pred_fallthru
          _
        // Predicated region
        $region65: #{grunet_forward.2} parent=43 // pred_check
          %p1552 = pneg %p217
        $region66: #{grunet_forward.2} parent=43 // pred_check_branch
          %1554 = sbr.rel (%p1552) target = $region68
        $region67: #{grunet_forward.2} parent=43 // pred_region
          %s1555 = smul.u32 2, %s25
        $region68: #{grunet_forward.2} parent=43 // pred_fallthru
          _
        // Predicated region
        $region69: #{grunet_forward.2} parent=43 // pred_check
          %p1556 = pneg %p217
        $region70: #{grunet_forward.2} parent=43 // pred_check_branch
          %1558 = sbr.rel (%p1556) target = $region72
        $region71: #{grunet_forward.2} parent=43 // pred_region
          %s1559 = smul.u32 2, %s25
          %p1560 = scmp.lt.s32.totalorder %s1559, 1
          %s1561 = scalar_select %p1560, %s1559, 1
          %s1562 = smul.addr %s1561, 8
          %s1563 = scalar_lea.vmem %s7, %s1562
        $region72: #{grunet_forward.2} parent=43 // pred_fallthru
          _
      $region44: #{grunet_forward.2} parent=5 // pred_fallthru
        _
      %p1564 = scmp.le.s32.totalorder 2, %s16
      // Predicated region
      $region73: #{grunet_forward.2} parent=5 // pred_check
        %p1565 = pneg %p1564
      $region74: #{grunet_forward.2} parent=5 // pred_check_branch
        %1567 = sbr.rel (%p1565) target = $region76
      $region75: #{grunet_forward.2} parent=5 // pred_region
        %s1568 = ssub.s32 %s16, 2
        // Predicated region
        $region77: #{grunet_forward.2} parent=75 // pred_check
          %p1569 = pneg %p197
        $region78: #{grunet_forward.2} parent=75 // pred_check_branch
          %1571 = sbr.rel (%p1569) target = $region80
        $region79: #{grunet_forward.2} parent=75 // pred_region
          %s1572 = smul.u32 4, %s28
          %s1573 = smul.u32 2, %s27
          %p1574 = scmp.lt.s32.totalorder %s1572, 7
          %s1575 = scalar_select %p1574, %s1572, 7
          %p1576 = scmp.lt.s32.totalorder %s1573, 1
          %s1577 = scalar_select %p1576, %s1573, 1
          %s1578 = smul.addr %s1575, 2
          %s1579 = sadd.s32 %s1577, %s1578
          %s1580 = smul.addr %s1579, 4
          %s1581 = scalar_lea.vmem %s6, %s1580
        $region80: #{grunet_forward.2} parent=75 // pred_fallthru
          _
      $region76: #{grunet_forward.2} parent=5 // pred_fallthru
        _
    $region6: #{grunet_forward.2} parent=1 // loop_footer
      %s20 = sadd.s32 1, %s16
    $region7: #{grunet_forward.2} parent=1 // loop_footer_branch
      %15 = sbr.rel target = $region3
    $region8: #{grunet_forward.2} parent=1 // loop_exit
      _
    %1582 = vsyncpa [#allocation5], 1
    %s1583 = scalar_lea.sflag [#allocation5], 1
    %1584 = vsyncpa %s1583, 1
    %1585 = vsyncpa [#allocation7], 1

</llo_original>
